<compile_context>
chip_gen: v7x
topology: tpu7x:2x2x1
jax: 0.10.0
libtpu: 0.0.40
codegen_flags: <defaults>
</compile_context>

<pallas_src>
import functools

import jax
import jax.numpy as jnp
from jax import lax
from jax.experimental import pallas as pl
from jax.experimental.pallas import tpu as pltpu


# ------------------------------ helpers -------------------------------------

def _tile(dim, target, base):
    """Largest multiple of `base` that divides `dim` and is <= target; else full dim."""
    if dim <= target or dim % base != 0:
        return dim
    t = (target // base) * base
    while t >= base:
        if dim % t == 0:
            return t
        t -= base
    return dim


# ------------- fused: to_qkv conv + attention + to_out conv + BN stats -------

def _fused_attn_kernel(x_ref, wqkv_ref, wout_ref, bout_ref,
                       y_ref, sum_ref, sq_ref,
                       *, heads, dim_head, scale, tq):
    qi = pl.program_id(1)
    hidden = heads * dim_head

    x = x_ref[...]                                     # (n, C) bf16, one batch element
    row0 = pl.multiple_of(qi * tq, tq)
    xq = x_ref[pl.ds(row0, tq), :]                     # (tq, C) bf16 query rows

    wqkv = wqkv_ref[...]                               # (C, 3*hidden) bf16, resident

    # to_qkv 1x1 conv: q only for the query tile, k/v over all n positions.
    q = jnp.dot(xq, wqkv[:, :hidden],
                preferred_element_type=jnp.float32) * scale          # (tq, hidden) f32
    k = jnp.dot(x, wqkv[:, hidden:2 * hidden],
                preferred_element_type=jnp.float32)                  # (n, hidden) f32
    v = jnp.dot(x, wqkv[:, 2 * hidden:],
                preferred_element_type=jnp.float32)                  # (n, hidden) f32

    # Per-head softmax attention (f32); head outputs concatenated on the lane axis so
    # the downstream matmul / store are lane-dense (no 32-lane masked stores).
    outs = []
    for h in range(heads):
        sl = slice(h * dim_head, (h + 1) * dim_head)
        s = lax.dot_general(q[:, sl], k[:, sl], (((1,), (1,)), ((), ())),
                            preferred_element_type=jnp.float32)      # (tq, n)
        s = s - jnp.max(s, axis=-1, keepdims=True)
        p = jnp.exp(s)
        p = p * pl.reciprocal(jnp.sum(p, axis=-1, keepdims=True), approx=True)
        outs.append(jnp.dot(p, v[:, sl], preferred_element_type=jnp.float32))
    attn = jnp.concatenate(outs, axis=-1)                            # (tq, hidden) f32

    # to_out 1x1 conv + bias (bf16 MXU operands, f32 accumulate); lane-dense f32 store.
    y = jnp.dot(attn.astype(jnp.bfloat16), wout_ref[...],
                preferred_element_type=jnp.float32) + bout_ref[...]  # (tq, C) f32
    y_ref[...] = y

    # BatchNorm statistics fused into the epilogue: per-channel sum / sum-of-squares,
    # accumulated across the query-tile ("arbitrary") axis into a per-b (1, C) block.
    @pl.when(qi == 0)
    def _():
        sum_ref[...] = jnp.zeros_like(sum_ref)
        sq_ref[...] = jnp.zeros_like(sq_ref)

    sum_ref[...] += jnp.sum(y, axis=0, keepdims=True)
    sq_ref[...] += jnp.sum(y * y, axis=0, keepdims=True)


def fused_attention(x_bnc, w_qkv, w_out, b_out, *, heads, dim_head, tq_target=128):
    """x_bnc: (B, n, C) bf16.  Returns (y (B,n,C) f32, sums (B,1,C), sqsums (B,1,C))."""
    B, n, C = x_bnc.shape
    hidden = heads * dim_head
    assert w_qkv.shape == (C, 3 * hidden)
    assert w_out.shape == (hidden, C)
    assert C % 128 == 0 and hidden % 128 == 0 and n % 8 == 0

    tq = _tile(n, tq_target, 8)
    qt = n // tq

    kernel = functools.partial(_fused_attn_kernel, heads=heads, dim_head=dim_head,
                               scale=float(dim_head) ** (-0.5), tq=tq)

    return pl.pallas_call(
        kernel,
        out_shape=(jax.ShapeDtypeStruct((B, n, C), jnp.float32),
                   jax.ShapeDtypeStruct((B, 1, C), jnp.float32),
                   jax.ShapeDtypeStruct((B, 1, C), jnp.float32)),
        grid=(B, qt),
        in_specs=[
            # Full (n, C) rows of batch element b (resident across its q-tiles).
            pl.BlockSpec((pl.Squeezed(), n, C), lambda b, q: (b, 0, 0)),
            # Weights / bias: whole arrays, resident in VMEM.
            pl.BlockSpec((C, 3 * hidden), lambda b, q: (0, 0)),
            pl.BlockSpec((hidden, C), lambda b, q: (0, 0)),
            pl.BlockSpec((1, C), lambda b, q: (0, 0)),
        ],
        out_specs=(
            pl.BlockSpec((pl.Squeezed(), tq, C), lambda b, q: (b, q, 0)),
            pl.BlockSpec((pl.Squeezed(), 1, C), lambda b, q: (b, 0, 0)),
            pl.BlockSpec((pl.Squeezed(), 1, C), lambda b, q: (b, 0, 0)),
        ),
        compiler_params=pltpu.CompilerParams(
            dimension_semantics=("parallel", "arbitrary")),
    )(x_bnc, w_qkv, w_out, b_out)


# ------------------------- BatchNorm apply (scale/shift) ---------------------

def _bn_apply_kernel(y_ref, scale_ref, shift_ref, o_ref):
    o_ref[...] = y_ref[...] * scale_ref[...] + shift_ref[...]


def bn_apply(y2, scale, shift, *, tm_target=512):
    M, C = y2.shape
    tm = _tile(M, tm_target, 8)
    grid = (M // tm,)
    vec = pl.BlockSpec((1, C), lambda i: (0, 0))
    return pl.pallas_call(
        _bn_apply_kernel,
        out_shape=jax.ShapeDtypeStruct((M, C), jnp.float32),
        grid=grid,
        in_specs=[pl.BlockSpec((tm, C), lambda i: (i, 0)), vec, vec],
        out_specs=pl.BlockSpec((tm, C), lambda i: (i, 0)),
        compiler_params=pltpu.CompilerParams(dimension_semantics=("parallel",)),
    )(y2, scale.reshape(1, C), shift.reshape(1, C))


# ------------------------------ full forward ---------------------------------

def attention_forward(params, x_nchw, *, heads=4, dim_head=32, eps=1e-5):
    """Matches Attention.forward (training-mode BatchNorm): NCHW in / NCHW out."""
    B, C, H, W = x_nchw.shape
    n = H * W

    # NCHW -> (B, n, C) bf16 in one fused XLA transpose+cast (row = b, x*W + y).
    xh = jnp.transpose(x_nchw, (0, 2, 3, 1)).reshape(B, n, C).astype(jnp.bfloat16)

    w_qkv = params['to_qkv_w'].astype(jnp.bfloat16)
    w_out = params['to_out_w'].astype(jnp.bfloat16)
    b_out = params['to_out_b'].reshape(1, C).astype(jnp.float32)

    y, sums, sqs = fused_attention(xh, w_qkv, w_out, b_out,
                                   heads=heads, dim_head=dim_head)   # y: (B, n, C) f32

    # BatchNorm2d (training-mode batch statistics, biased variance).  Tiny (C,)-vector
    # math done once in plain JAX; the Pallas apply kernel is a single multiply-add.
    count = float(B * n)
    s = jnp.sum(sums, axis=(0, 1))
    sq = jnp.sum(sqs, axis=(0, 1))
    mean = s / count
    var = jnp.maximum(sq / count - mean * mean, 0.0)
    scale = params['to_out_bn_g'].astype(jnp.float32) * lax.rsqrt(var + eps)
    shift = params['to_out_bn_b'].astype(jnp.float32) - mean * scale

    out2 = bn_apply(y.reshape(B * n, C), scale, shift)               # (B*n, C) f32
    return jnp.transpose(out2.reshape(B, H, W, C), (0, 3, 1, 2))


def init_params(key, dim, *, heads=4, dim_head=32):
    hidden = heads * dim_head
    k1, k2, k3 = jax.random.split(key, 3)
    return {
        # Equivalent to Conv2d(dim, 3*hidden, 1, bias=False).weight reshaped/transposed.
        'to_qkv_w': 0.1 * jax.random.normal(k1, (dim, 3 * hidden), jnp.float32),
        # Equivalent to Conv2d(hidden, dim, 1).weight reshaped/transposed + bias.
        'to_out_w': 0.1 * jax.random.normal(k2, (hidden, dim), jnp.float32),
        'to_out_b': 0.05 * jax.random.normal(k3, (dim,), jnp.float32),
        'to_out_bn_g': jnp.ones((dim,), jnp.float32),
        'to_out_bn_b': jnp.zeros((dim,), jnp.float32),
    }


if __name__ == "__main__":
    key = jax.random.PRNGKey(0)
    kp, kx = jax.random.split(key, 2)

    B, dim, H, W = 2, 128, 16, 16      # dim=128 keeps every channel axis lane-dense
    heads, dim_head = 4, 32

    params = init_params(kp, dim, heads=heads, dim_head=dim_head)
    x = jax.random.normal(kx, (B, dim, H, W), jnp.float32)

    fwd = jax.jit(functools.partial(attention_forward, heads=heads, dim_head=dim_head))
    out = fwd(params, x)
    jax.block_until_ready(out)

    assert out.shape == (B, dim, H, W), out.shape
    assert bool(jnp.all(jnp.isfinite(out)))
    print("KERNEL_OK")
</pallas_src>

<mosaic_0001>
module attributes {stable_mosaic.version = 11 : i64} {
  func.func @_fused_attn_kernel(%arg0: i32, %arg1: i32, %arg2: memref<1x256x128xbf16, #tpu.memory_space<vmem>>, %arg3: memref<128x384xbf16, #tpu.memory_space<vmem>>, %arg4: memref<128x128xbf16, #tpu.memory_space<vmem>>, %arg5: memref<1x128xf32, #tpu.memory_space<vmem>>, %arg6: memref<1x128x128xf32, #tpu.memory_space<vmem>>, %arg7: memref<1x1x128xf32, #tpu.memory_space<vmem>>, %arg8: memref<1x1x128xf32, #tpu.memory_space<vmem>>) attributes {dimension_semantics = [#tpu.dimension_semantics<parallel>, #tpu.dimension_semantics<arbitrary>], iteration_bounds = array<i64: 2, 2>, scalar_prefetch = 0 : i64, scratch_operands = 0 : i64, tpu.core_type = #tpu.core_type<tc>, window_params = [{transform_indices = @transform_0, window_bounds = array<i64: 1, 256, 128>}, {pipeline_mode = #tpu.pipeline_mode<synchronous>, transform_indices = @transform_1, window_bounds = array<i64: 128, 384>}, {pipeline_mode = #tpu.pipeline_mode<synchronous>, transform_indices = @transform_2, window_bounds = array<i64: 128, 128>}, {pipeline_mode = #tpu.pipeline_mode<synchronous>, transform_indices = @transform_3, window_bounds = array<i64: 1, 128>}, {transform_indices = @transform_4, window_bounds = array<i64: 1, 128, 128>}, {transform_indices = @transform_5, window_bounds = array<i64: 1, 1, 128>}, {transform_indices = @transform_6, window_bounds = array<i64: 1, 1, 128>}]} {
    %c0 = arith.constant 0 : index
    %c0_0 = arith.constant 0 : index
    %c0_1 = arith.constant 0 : index
    %0 = vector.load %arg2[%c0, %c0_0, %c0_1] : memref<1x256x128xbf16, #tpu.memory_space<vmem>>, vector<1x256x128xbf16>
    %1 = vector.shape_cast %0 : vector<1x256x128xbf16> to vector<256x128xbf16>
    %c128_i32 = arith.constant 128 : i32
    %2 = arith.muli %arg1, %c128_i32 : i32
    %3 = tpu.assume_multiple %2, 128 : i32
    %c0_2 = arith.constant 0 : index
    %4 = arith.index_cast %3 : i32 to index
    %c0_3 = arith.constant 0 : index
    %5 = vector.load %arg2[%c0_2, %4, %c0_3] : memref<1x256x128xbf16, #tpu.memory_space<vmem>>, vector<1x128x128xbf16>
    %6 = vector.shape_cast %5 : vector<1x128x128xbf16> to vector<128x128xbf16>
    %c0_4 = arith.constant 0 : index
    %c0_5 = arith.constant 0 : index
    %7 = vector.load %arg3[%c0_4, %c0_5] : memref<128x384xbf16, #tpu.memory_space<vmem>>, vector<128x384xbf16>
    %8 = vector.extract_strided_slice %7 {offsets = [0, 0], sizes = [128, 128], strides = [1, 1]} : vector<128x384xbf16> to vector<128x128xbf16>
    %cst = arith.constant dense<0.000000e+00> : vector<128x128xf32>
    %9 = tpu.matmul %6, %8, %cst {dimension_numbers = #tpu.dot_dimension_numbers<[1], [0], [0], [1], [0, 0, 1, 1], [], []>} : vector<128x128xbf16>, vector<128x128xbf16>, vector<128x128xf32> -> vector<128x128xf32>
    %cst_6 = arith.constant 0.176776692 : f32
    %10 = vector.broadcast %cst_6 : f32 to vector<128x128xf32>
    %11 = arith.mulf %9, %10 : vector<128x128xf32>
    %12 = vector.extract_strided_slice %7 {offsets = [0, 128], sizes = [128, 128], strides = [1, 1]} : vector<128x384xbf16> to vector<128x128xbf16>
    %cst_7 = arith.constant dense<0.000000e+00> : vector<256x128xf32>
    %13 = tpu.matmul %1, %12, %cst_7 {dimension_numbers = #tpu.dot_dimension_numbers<[1], [0], [0], [1], [0, 0, 1, 1], [], []>} : vector<256x128xbf16>, vector<128x128xbf16>, vector<256x128xf32> -> vector<256x128xf32>
    %14 = vector.extract_strided_slice %7 {offsets = [0, 256], sizes = [128, 128], strides = [1, 1]} : vector<128x384xbf16> to vector<128x128xbf16>
    %cst_8 = arith.constant dense<0.000000e+00> : vector<256x128xf32>
    %15 = tpu.matmul %1, %14, %cst_8 {dimension_numbers = #tpu.dot_dimension_numbers<[1], [0], [0], [1], [0, 0, 1, 1], [], []>} : vector<256x128xbf16>, vector<128x128xbf16>, vector<256x128xf32> -> vector<256x128xf32>
    %16 = vector.extract_strided_slice %11 {offsets = [0, 0], sizes = [128, 32], strides = [1, 1]} : vector<128x128xf32> to vector<128x32xf32>
    %17 = vector.extract_strided_slice %13 {offsets = [0, 0], sizes = [256, 32], strides = [1, 1]} : vector<256x128xf32> to vector<256x32xf32>
    %cst_9 = arith.constant dense<0.000000e+00> : vector<128x256xf32>
    %18 = tpu.matmul %16, %17, %cst_9 {dimension_numbers = #tpu.dot_dimension_numbers<[1], [1], [0], [0], [0, 0, 1, 0], [], []>} : vector<128x32xf32>, vector<256x32xf32>, vector<128x256xf32> -> vector<128x256xf32>
    %cst_10 = arith.constant dense<0xFF800000> : vector<128xf32>
    %19 = vector.multi_reduction <maximumf>, %18, %cst_10 [1] : vector<128x256xf32> to vector<128xf32>
    %20 = vector.shape_cast %19 : vector<128xf32> to vector<128x1xf32>
    %21 = vector.broadcast %20 : vector<128x1xf32> to vector<128x256xf32>
    %22 = arith.subf %18, %21 : vector<128x256xf32>
    %23 = math.exp %22 : vector<128x256xf32>
    %cst_11 = arith.constant dense<0.000000e+00> : vector<128xf32>
    %24 = vector.multi_reduction <add>, %23, %cst_11 [1] : vector<128x256xf32> to vector<128xf32>
    %25 = vector.shape_cast %24 : vector<128xf32> to vector<128x1xf32>
    %26 = tpu.reciprocal %25 {approx = true} : vector<128x1xf32> -> vector<128x1xf32>
    %27 = vector.broadcast %26 : vector<128x1xf32> to vector<128x256xf32>
    %28 = arith.mulf %23, %27 : vector<128x256xf32>
    %29 = vector.extract_strided_slice %15 {offsets = [0, 0], sizes = [256, 32], strides = [1, 1]} : vector<256x128xf32> to vector<256x32xf32>
    %cst_12 = arith.constant dense<0.000000e+00> : vector<128x32xf32>
    %30 = tpu.matmul %28, %29, %cst_12 {dimension_numbers = #tpu.dot_dimension_numbers<[1], [0], [0], [1], [0, 0, 1, 1], [], []>} : vector<128x256xf32>, vector<256x32xf32>, vector<128x32xf32> -> vector<128x32xf32>
    %31 = vector.extract_strided_slice %11 {offsets = [0, 32], sizes = [128, 32], strides = [1, 1]} : vector<128x128xf32> to vector<128x32xf32>
    %32 = vector.extract_strided_slice %13 {offsets = [0, 32], sizes = [256, 32], strides = [1, 1]} : vector<256x128xf32> to vector<256x32xf32>
    %cst_13 = arith.constant dense<0.000000e+00> : vector<128x256xf32>
    %33 = tpu.matmul %31, %32, %cst_13 {dimension_numbers = #tpu.dot_dimension_numbers<[1], [1], [0], [0], [0, 0, 1, 0], [], []>} : vector<128x32xf32>, vector<256x32xf32>, vector<128x256xf32> -> vector<128x256xf32>
    %cst_14 = arith.constant dense<0xFF800000> : vector<128xf32>
    %34 = vector.multi_reduction <maximumf>, %33, %cst_14 [1] : vector<128x256xf32> to vector<128xf32>
    %35 = vector.shape_cast %34 : vector<128xf32> to vector<128x1xf32>
    %36 = vector.broadcast %35 : vector<128x1xf32> to vector<128x256xf32>
    %37 = arith.subf %33, %36 : vector<128x256xf32>
    %38 = math.exp %37 : vector<128x256xf32>
    %cst_15 = arith.constant dense<0.000000e+00> : vector<128xf32>
    %39 = vector.multi_reduction <add>, %38, %cst_15 [1] : vector<128x256xf32> to vector<128xf32>
    %40 = vector.shape_cast %39 : vector<128xf32> to vector<128x1xf32>
    %41 = tpu.reciprocal %40 {approx = true} : vector<128x1xf32> -> vector<128x1xf32>
    %42 = vector.broadcast %41 : vector<128x1xf32> to vector<128x256xf32>
    %43 = arith.mulf %38, %42 : vector<128x256xf32>
    %44 = vector.extract_strided_slice %15 {offsets = [0, 32], sizes = [256, 32], strides = [1, 1]} : vector<256x128xf32> to vector<256x32xf32>
    %cst_16 = arith.constant dense<0.000000e+00> : vector<128x32xf32>
    %45 = tpu.matmul %43, %44, %cst_16 {dimension_numbers = #tpu.dot_dimension_numbers<[1], [0], [0], [1], [0, 0, 1, 1], [], []>} : vector<128x256xf32>, vector<256x32xf32>, vector<128x32xf32> -> vector<128x32xf32>
    %46 = vector.extract_strided_slice %11 {offsets = [0, 64], sizes = [128, 32], strides = [1, 1]} : vector<128x128xf32> to vector<128x32xf32>
    %47 = vector.extract_strided_slice %13 {offsets = [0, 64], sizes = [256, 32], strides = [1, 1]} : vector<256x128xf32> to vector<256x32xf32>
    %cst_17 = arith.constant dense<0.000000e+00> : vector<128x256xf32>
    %48 = tpu.matmul %46, %47, %cst_17 {dimension_numbers = #tpu.dot_dimension_numbers<[1], [1], [0], [0], [0, 0, 1, 0], [], []>} : vector<128x32xf32>, vector<256x32xf32>, vector<128x256xf32> -> vector<128x256xf32>
    %cst_18 = arith.constant dense<0xFF800000> : vector<128xf32>
    %49 = vector.multi_reduction <maximumf>, %48, %cst_18 [1] : vector<128x256xf32> to vector<128xf32>
    %50 = vector.shape_cast %49 : vector<128xf32> to vector<128x1xf32>
    %51 = vector.broadcast %50 : vector<128x1xf32> to vector<128x256xf32>
    %52 = arith.subf %48, %51 : vector<128x256xf32>
    %53 = math.exp %52 : vector<128x256xf32>
    %cst_19 = arith.constant dense<0.000000e+00> : vector<128xf32>
    %54 = vector.multi_reduction <add>, %53, %cst_19 [1] : vector<128x256xf32> to vector<128xf32>
    %55 = vector.shape_cast %54 : vector<128xf32> to vector<128x1xf32>
    %56 = tpu.reciprocal %55 {approx = true} : vector<128x1xf32> -> vector<128x1xf32>
    %57 = vector.broadcast %56 : vector<128x1xf32> to vector<128x256xf32>
    %58 = arith.mulf %53, %57 : vector<128x256xf32>
    %59 = vector.extract_strided_slice %15 {offsets = [0, 64], sizes = [256, 32], strides = [1, 1]} : vector<256x128xf32> to vector<256x32xf32>
    %cst_20 = arith.constant dense<0.000000e+00> : vector<128x32xf32>
    %60 = tpu.matmul %58, %59, %cst_20 {dimension_numbers = #tpu.dot_dimension_numbers<[1], [0], [0], [1], [0, 0, 1, 1], [], []>} : vector<128x256xf32>, vector<256x32xf32>, vector<128x32xf32> -> vector<128x32xf32>
    %61 = vector.extract_strided_slice %11 {offsets = [0, 96], sizes = [128, 32], strides = [1, 1]} : vector<128x128xf32> to vector<128x32xf32>
    %62 = vector.extract_strided_slice %13 {offsets = [0, 96], sizes = [256, 32], strides = [1, 1]} : vector<256x128xf32> to vector<256x32xf32>
    %cst_21 = arith.constant dense<0.000000e+00> : vector<128x256xf32>
    %63 = tpu.matmul %61, %62, %cst_21 {dimension_numbers = #tpu.dot_dimension_numbers<[1], [1], [0], [0], [0, 0, 1, 0], [], []>} : vector<128x32xf32>, vector<256x32xf32>, vector<128x256xf32> -> vector<128x256xf32>
    %cst_22 = arith.constant dense<0xFF800000> : vector<128xf32>
    %64 = vector.multi_reduction <maximumf>, %63, %cst_22 [1] : vector<128x256xf32> to vector<128xf32>
    %65 = vector.shape_cast %64 : vector<128xf32> to vector<128x1xf32>
    %66 = vector.broadcast %65 : vector<128x1xf32> to vector<128x256xf32>
    %67 = arith.subf %63, %66 : vector<128x256xf32>
    %68 = math.exp %67 : vector<128x256xf32>
    %cst_23 = arith.constant dense<0.000000e+00> : vector<128xf32>
    %69 = vector.multi_reduction <add>, %68, %cst_23 [1] : vector<128x256xf32> to vector<128xf32>
    %70 = vector.shape_cast %69 : vector<128xf32> to vector<128x1xf32>
    %71 = tpu.reciprocal %70 {approx = true} : vector<128x1xf32> -> vector<128x1xf32>
    %72 = vector.broadcast %71 : vector<128x1xf32> to vector<128x256xf32>
    %73 = arith.mulf %68, %72 : vector<128x256xf32>
    %74 = vector.extract_strided_slice %15 {offsets = [0, 96], sizes = [256, 32], strides = [1, 1]} : vector<256x128xf32> to vector<256x32xf32>
    %cst_24 = arith.constant dense<0.000000e+00> : vector<128x32xf32>
    %75 = tpu.matmul %73, %74, %cst_24 {dimension_numbers = #tpu.dot_dimension_numbers<[1], [0], [0], [1], [0, 0, 1, 1], [], []>} : vector<128x256xf32>, vector<256x32xf32>, vector<128x32xf32> -> vector<128x32xf32>
    %76 = tpu.concatenate %30, %45, %60, %75 in 1 : vector<128x32xf32>, vector<128x32xf32>, vector<128x32xf32>, vector<128x32xf32> -> vector<128x128xf32>
    %77 = arith.truncf %76 : vector<128x128xf32> to vector<128x128xbf16>
    %c0_25 = arith.constant 0 : index
    %c0_26 = arith.constant 0 : index
    %78 = vector.load %arg4[%c0_25, %c0_26] : memref<128x128xbf16, #tpu.memory_space<vmem>>, vector<128x128xbf16>
    %cst_27 = arith.constant dense<0.000000e+00> : vector<128x128xf32>
    %79 = tpu.matmul %77, %78, %cst_27 {dimension_numbers = #tpu.dot_dimension_numbers<[1], [0], [0], [1], [0, 0, 1, 1], [], []>} : vector<128x128xbf16>, vector<128x128xbf16>, vector<128x128xf32> -> vector<128x128xf32>
    %c0_28 = arith.constant 0 : index
    %c0_29 = arith.constant 0 : index
    %80 = vector.load %arg5[%c0_28, %c0_29] : memref<1x128xf32, #tpu.memory_space<vmem>>, vector<1x128xf32>
    %81 = vector.broadcast %80 : vector<1x128xf32> to vector<128x128xf32>
    %82 = arith.addf %79, %81 : vector<128x128xf32>
    %c0_30 = arith.constant 0 : index
    %c0_31 = arith.constant 0 : index
    %c0_32 = arith.constant 0 : index
    %83 = vector.load %arg6[%c0_30, %c0_31, %c0_32] : memref<1x128x128xf32, #tpu.memory_space<vmem>>, vector<1x128x128xf32>
    %84 = vector.shape_cast %83 : vector<1x128x128xf32> to vector<128x128xf32>
    %85 = vector.shape_cast %82 : vector<128x128xf32> to vector<1x128x128xf32>
    tpu.vector_store %arg6[%c0_30, %c0_31, %c0_32], %85 {strides = array<i32>} : memref<1x128x128xf32, #tpu.memory_space<vmem>>, vector<1x128x128xf32>,
    %c0_i32 = arith.constant 0 : i32
    %86 = arith.cmpi eq, %arg1, %c0_i32 : i32
    %87 = arith.extui %86 : i1 to i32
    %c0_i32_33 = arith.constant 0 : i32
    %88 = arith.cmpi ne, %87, %c0_i32_33 : i32
    scf.if %88 {
      %cst_48 = arith.constant 0.000000e+00 : f32
      %106 = vector.broadcast %cst_48 : f32 to vector<1x128xf32>
      %c0_49 = arith.constant 0 : index
      %c0_50 = arith.constant 0 : index
      %c0_51 = arith.constant 0 : index
      %107 = vector.load %arg7[%c0_49, %c0_50, %c0_51] : memref<1x1x128xf32, #tpu.memory_space<vmem>>, vector<1x1x128xf32>
      %108 = vector.shape_cast %107 : vector<1x1x128xf32> to vector<1x128xf32>
      %109 = vector.shape_cast %106 : vector<1x128xf32> to vector<1x1x128xf32>
      tpu.vector_store %arg7[%c0_49, %c0_50, %c0_51], %109 {strides = array<i32>} : memref<1x1x128xf32, #tpu.memory_space<vmem>>, vector<1x1x128xf32>,
      %cst_52 = arith.constant 0.000000e+00 : f32
      %110 = vector.broadcast %cst_52 : f32 to vector<1x128xf32>
      %c0_53 = arith.constant 0 : index
      %c0_54 = arith.constant 0 : index
      %c0_55 = arith.constant 0 : index
      %111 = vector.load %arg8[%c0_53, %c0_54, %c0_55] : memref<1x1x128xf32, #tpu.memory_space<vmem>>, vector<1x1x128xf32>
      %112 = vector.shape_cast %111 : vector<1x1x128xf32> to vector<1x128xf32>
      %113 = vector.shape_cast %110 : vector<1x128xf32> to vector<1x1x128xf32>
      tpu.vector_store %arg8[%c0_53, %c0_54, %c0_55], %113 {strides = array<i32>} : memref<1x1x128xf32, #tpu.memory_space<vmem>>, vector<1x1x128xf32>,
    } else {
    }
    %c0_34 = arith.constant 0 : index
    %c0_35 = arith.constant 0 : index
    %c0_36 = arith.constant 0 : index
    %89 = vector.load %arg7[%c0_34, %c0_35, %c0_36] : memref<1x1x128xf32, #tpu.memory_space<vmem>>, vector<1x1x128xf32>
    %90 = vector.shape_cast %89 : vector<1x1x128xf32> to vector<1x128xf32>
    %cst_37 = arith.constant dense<0.000000e+00> : vector<128xf32>
    %91 = vector.multi_reduction <add>, %82, %cst_37 [0] : vector<128x128xf32> to vector<128xf32>
    %92 = vector.shape_cast %91 : vector<128xf32> to vector<1x128xf32>
    %93 = arith.addf %90, %92 : vector<1x128xf32>
    %c0_38 = arith.constant 0 : index
    %c0_39 = arith.constant 0 : index
    %c0_40 = arith.constant 0 : index
    %94 = vector.load %arg7[%c0_38, %c0_39, %c0_40] : memref<1x1x128xf32, #tpu.memory_space<vmem>>, vector<1x1x128xf32>
    %95 = vector.shape_cast %94 : vector<1x1x128xf32> to vector<1x128xf32>
    %96 = vector.shape_cast %93 : vector<1x128xf32> to vector<1x1x128xf32>
    tpu.vector_store %arg7[%c0_38, %c0_39, %c0_40], %96 {strides = array<i32>} : memref<1x1x128xf32, #tpu.memory_space<vmem>>, vector<1x1x128xf32>,
    %c0_41 = arith.constant 0 : index
    %c0_42 = arith.constant 0 : index
    %c0_43 = arith.constant 0 : index
    %97 = vector.load %arg8[%c0_41, %c0_42, %c0_43] : memref<1x1x128xf32, #tpu.memory_space<vmem>>, vector<1x1x128xf32>
    %98 = vector.shape_cast %97 : vector<1x1x128xf32> to vector<1x128xf32>
    %99 = arith.mulf %82, %82 : vector<128x128xf32>
    %cst_44 = arith.constant dense<0.000000e+00> : vector<128xf32>
    %100 = vector.multi_reduction <add>, %99, %cst_44 [0] : vector<128x128xf32> to vector<128xf32>
    %101 = vector.shape_cast %100 : vector<128xf32> to vector<1x128xf32>
    %102 = arith.addf %98, %101 : vector<1x128xf32>
    %c0_45 = arith.constant 0 : index
    %c0_46 = arith.constant 0 : index
    %c0_47 = arith.constant 0 : index
    %103 = vector.load %arg8[%c0_45, %c0_46, %c0_47] : memref<1x1x128xf32, #tpu.memory_space<vmem>>, vector<1x1x128xf32>
    %104 = vector.shape_cast %103 : vector<1x1x128xf32> to vector<1x128xf32>
    %105 = vector.shape_cast %102 : vector<1x128xf32> to vector<1x1x128xf32>
    tpu.vector_store %arg8[%c0_45, %c0_46, %c0_47], %105 {strides = array<i32>} : memref<1x1x128xf32, #tpu.memory_space<vmem>>, vector<1x1x128xf32>,
    return
  }
  func.func @transform_0(%arg0: i32, %arg1: i32) -> (i32, i32, i32) {
    %c0_i32 = arith.constant 0 : i32
    %c0_i32_0 = arith.constant 0 : i32
    %c0_i32_1 = arith.constant 0 : i32
    return %arg0, %c0_i32, %c0_i32_0 : i32, i32, i32
  }
  func.func @transform_1(%arg0: i32, %arg1: i32) -> (i32, i32) {
    %c0_i32 = arith.constant 0 : i32
    %c0_i32_0 = arith.constant 0 : i32
    %c0_i32_1 = arith.constant 0 : i32
    return %c0_i32, %c0_i32_0 : i32, i32
  }
  func.func @transform_2(%arg0: i32, %arg1: i32) -> (i32, i32) {
    %c0_i32 = arith.constant 0 : i32
    %c0_i32_0 = arith.constant 0 : i32
    %c0_i32_1 = arith.constant 0 : i32
    return %c0_i32, %c0_i32_0 : i32, i32
  }
  func.func @transform_3(%arg0: i32, %arg1: i32) -> (i32, i32) {
    %c0_i32 = arith.constant 0 : i32
    %c0_i32_0 = arith.constant 0 : i32
    %c0_i32_1 = arith.constant 0 : i32
    return %c0_i32, %c0_i32_0 : i32, i32
  }
  func.func @transform_4(%arg0: i32, %arg1: i32) -> (i32, i32, i32) {
    %c0_i32 = arith.constant 0 : i32
    %c0_i32_0 = arith.constant 0 : i32
    return %arg0, %arg1, %c0_i32 : i32, i32, i32
  }
  func.func @transform_5(%arg0: i32, %arg1: i32) -> (i32, i32, i32) {
    %c0_i32 = arith.constant 0 : i32
    %c0_i32_0 = arith.constant 0 : i32
    %c0_i32_1 = arith.constant 0 : i32
    return %arg0, %c0_i32, %c0_i32_0 : i32, i32, i32
  }
  func.func @transform_6(%arg0: i32, %arg1: i32) -> (i32, i32, i32) {
    %c0_i32 = arith.constant 0 : i32
    %c0_i32_0 = arith.constant 0 : i32
    %c0_i32_1 = arith.constant 0 : i32
    return %arg0, %c0_i32, %c0_i32_0 : i32, i32, i32
  }
}

module attributes {stable_mosaic.version = 11 : i64} {
  func.func @_bn_apply_kernel(%arg0: i32, %arg1: memref<512x128xf32, #tpu.memory_space<vmem>>, %arg2: memref<1x128xf32, #tpu.memory_space<vmem>>, %arg3: memref<1x128xf32, #tpu.memory_space<vmem>>, %arg4: memref<512x128xf32, #tpu.memory_space<vmem>>) attributes {dimension_semantics = [#tpu.dimension_semantics<parallel>], iteration_bounds = array<i64: 1>, scalar_prefetch = 0 : i64, scratch_operands = 0 : i64, tpu.core_type = #tpu.core_type<tc>, window_params = [{transform_indices = @transform_0, window_bounds = array<i64: 512, 128>}, {pipeline_mode = #tpu.pipeline_mode<synchronous>, transform_indices = @transform_1, window_bounds = array<i64: 1, 128>}, {pipeline_mode = #tpu.pipeline_mode<synchronous>, transform_indices = @transform_2, window_bounds = array<i64: 1, 128>}, {transform_indices = @transform_3, window_bounds = array<i64: 512, 128>}]} {
    %c0 = arith.constant 0 : index
    %c0_0 = arith.constant 0 : index
    %0 = vector.load %arg1[%c0, %c0_0] : memref<512x128xf32, #tpu.memory_space<vmem>>, vector<512x128xf32>
    %c0_1 = arith.constant 0 : index
    %c0_2 = arith.constant 0 : index
    %1 = vector.load %arg2[%c0_1, %c0_2] : memref<1x128xf32, #tpu.memory_space<vmem>>, vector<1x128xf32>
    %2 = vector.broadcast %1 : vector<1x128xf32> to vector<512x128xf32>
    %3 = arith.mulf %0, %2 : vector<512x128xf32>
    %c0_3 = arith.constant 0 : index
    %c0_4 = arith.constant 0 : index
    %4 = vector.load %arg3[%c0_3, %c0_4] : memref<1x128xf32, #tpu.memory_space<vmem>>, vector<1x128xf32>
    %5 = vector.broadcast %4 : vector<1x128xf32> to vector<512x128xf32>
    %6 = arith.addf %3, %5 : vector<512x128xf32>
    %c0_5 = arith.constant 0 : index
    %c0_6 = arith.constant 0 : index
    %7 = vector.load %arg4[%c0_5, %c0_6] : memref<512x128xf32, #tpu.memory_space<vmem>>, vector<512x128xf32>
    tpu.vector_store %arg4[%c0_5, %c0_6], %6 {strides = array<i32>} : memref<512x128xf32, #tpu.memory_space<vmem>>, vector<512x128xf32>,
    return
  }
  func.func @transform_0(%arg0: i32) -> (i32, i32) {
    %c0_i32 = arith.constant 0 : i32
    %c0_i32_0 = arith.constant 0 : i32
    return %arg0, %c0_i32 : i32, i32
  }
  func.func @transform_1(%arg0: i32) -> (i32, i32) {
    %c0_i32 = arith.constant 0 : i32
    %c0_i32_0 = arith.constant 0 : i32
    %c0_i32_1 = arith.constant 0 : i32
    return %c0_i32, %c0_i32_0 : i32, i32
  }
  func.func @transform_2(%arg0: i32) -> (i32, i32) {
    %c0_i32 = arith.constant 0 : i32
    %c0_i32_0 = arith.constant 0 : i32
    %c0_i32_1 = arith.constant 0 : i32
    return %c0_i32, %c0_i32_0 : i32, i32
  }
  func.func @transform_3(%arg0: i32) -> (i32, i32) {
    %c0_i32 = arith.constant 0 : i32
    %c0_i32_0 = arith.constant 0 : i32
    return %arg0, %c0_i32 : i32, i32
  }
}

</mosaic_0001>

<llo_original>
// kernel: attention_forward.3
$region0: #{attention_forward.3}
  #allocation0 [shape = 'u32[]', space=smem, size = 0x4, offset = 0x4, fixed_abs, tag = 'smem constant byte address 0x4 - core index']
  #allocation1 [shape = 'u32[144,128]{1,0:T(1,128)}', space=vmem, size = 0x12000, scoped, tag = 'internal scratch']
  %s0 = inlined_call_operand.vmem [shape: f32[512,128], index: 0, kind: input, shape index: {}]
  %s1 = inlined_call_operand.vmem [shape: f32[1,128], index: 1, kind: input, shape index: {}]
  %s2 = inlined_call_operand.vmem [shape: f32[1,128], index: 2, kind: input, shape index: {}]
  %s3 = inlined_call_operand.hbm [shape: f32[512,128], index: 3, kind: output, shape index: {}]
  %s4 = sld [smem:[#allocation0]]
  $region22: #{attention_forward.3} parent=0
    _
  %s6 = ssub.s32 1, %s4
  %s7 = scalar_select 0, %s6, %s4
  $region1: #{attention_forward.3} parent=0
    #allocation2 [shape = 'u8[262144]{0}', space=vmem, size = 0x40000, scoped, tag = 'output window, operand 0, single buffered']
    #allocation3 [shape = 's32[1]{0}', space=sflag, size = 0x4, scoped, tag = 'scoped memory for attention_forward.3']
    %8 = vsyncpa [#allocation3], 0
    // Predicated region
    $region2: #{attention_forward.3} parent=1 // pred_check
      _
    $region3: #{attention_forward.3} parent=1 // pred_check_branch
      %10 = sbr.rel (0) target = $region5
    $region4: #{attention_forward.3} parent=1 // pred_region
      _
    $region5: #{attention_forward.3} parent=1 // pred_fallthru
      _
    // Predicated region
    $region6: #{attention_forward.3} parent=1 // pred_check
      _
    $region7: #{attention_forward.3} parent=1 // pred_check_branch
      %12 = sbr.rel (0) target = $region9
    $region8: #{attention_forward.3} parent=1 // pred_region
      _
    $region9: #{attention_forward.3} parent=1 // pred_fallthru
      _
    // Predicated region
    $region10: #{attention_forward.3} parent=1 // pred_check
      _
    $region11: #{attention_forward.3} parent=1 // pred_check_branch
      %14 = sbr.rel (0) target = $region13
    $region12: #{attention_forward.3} parent=1 // pred_region
      _
    $region13: #{attention_forward.3} parent=1 // pred_fallthru
      _
    %v15 = vld [vmem:[%s0] sm:$0xff]
    %v16 = vld [vmem:[%s0 + $0x8] sm:$0xff]
    %v17 = vld [vmem:[%s0 + $0x10] sm:$0xff]
    %v18 = vld [vmem:[%s0 + $0x18] sm:$0xff]
    %v19 = vld [vmem:[%s0 + $0x20] sm:$0xff]
    %v20 = vld [vmem:[%s0 + $0x28] sm:$0xff]
    %v21 = vld [vmem:[%s0 + $0x30] sm:$0xff]
    %v22 = vld [vmem:[%s0 + $0x38] sm:$0xff]
    %v23 = vld [vmem:[%s0 + $0x40] sm:$0xff]
    %v24 = vld [vmem:[%s0 + $0x48] sm:$0xff]
    %v25 = vld [vmem:[%s0 + $0x50] sm:$0xff]
    %v26 = vld [vmem:[%s0 + $0x58] sm:$0xff]
    %v27 = vld [vmem:[%s0 + $0x60] sm:$0xff]
    %v28 = vld [vmem:[%s0 + $0x68] sm:$0xff]
    %v29 = vld [vmem:[%s0 + $0x70] sm:$0xff]
    %v30 = vld [vmem:[%s0 + $0x78] sm:$0xff]
    %v31 = vld [vmem:[%s0 + $0x80] sm:$0xff]
    %v32 = vld [vmem:[%s0 + $0x88] sm:$0xff]
    %v33 = vld [vmem:[%s0 + $0x90] sm:$0xff]
    %v34 = vld [vmem:[%s0 + $0x98] sm:$0xff]
    %v35 = vld [vmem:[%s0 + $0xa0] sm:$0xff]
    %v36 = vld [vmem:[%s0 + $0xa8] sm:$0xff]
    %v37 = vld [vmem:[%s0 + $0xb0] sm:$0xff]
    %v38 = vld [vmem:[%s0 + $0xb8] sm:$0xff]
    %v39 = vld [vmem:[%s0 + $0xc0] sm:$0xff]
    %v40 = vld [vmem:[%s0 + $0xc8] sm:$0xff]
    %v41 = vld [vmem:[%s0 + $0xd0] sm:$0xff]
    %v42 = vld [vmem:[%s0 + $0xd8] sm:$0xff]
    %v43 = vld [vmem:[%s0 + $0xe0] sm:$0xff]
    %v44 = vld [vmem:[%s0 + $0xe8] sm:$0xff]
    %v45 = vld [vmem:[%s0 + $0xf0] sm:$0xff]
    %v46 = vld [vmem:[%s0 + $0xf8] sm:$0xff]
    %v47 = vld [vmem:[%s0 + $0x100] sm:$0xff]
    %v48 = vld [vmem:[%s0 + $0x108] sm:$0xff]
    %v49 = vld [vmem:[%s0 + $0x110] sm:$0xff]
    %v50 = vld [vmem:[%s0 + $0x118] sm:$0xff]
    %v51 = vld [vmem:[%s0 + $0x120] sm:$0xff]
    %v52 = vld [vmem:[%s0 + $0x128] sm:$0xff]
    %v53 = vld [vmem:[%s0 + $0x130] sm:$0xff]
    %v54 = vld [vmem:[%s0 + $0x138] sm:$0xff]
    %v55 = vld [vmem:[%s0 + $0x140] sm:$0xff]
    %v56 = vld [vmem:[%s0 + $0x148] sm:$0xff]
    %v57 = vld [vmem:[%s0 + $0x150] sm:$0xff]
    %v58 = vld [vmem:[%s0 + $0x158] sm:$0xff]
    %v59 = vld [vmem:[%s0 + $0x160] sm:$0xff]
    %v60 = vld [vmem:[%s0 + $0x168] sm:$0xff]
    %v61 = vld [vmem:[%s0 + $0x170] sm:$0xff]
    %v62 = vld [vmem:[%s0 + $0x178] sm:$0xff]
    %v63 = vld [vmem:[%s0 + $0x180] sm:$0xff]
    %v64 = vld [vmem:[%s0 + $0x188] sm:$0xff]
    %v65 = vld [vmem:[%s0 + $0x190] sm:$0xff]
    %v66 = vld [vmem:[%s0 + $0x198] sm:$0xff]
    %v67 = vld [vmem:[%s0 + $0x1a0] sm:$0xff]
    %v68 = vld [vmem:[%s0 + $0x1a8] sm:$0xff]
    %v69 = vld [vmem:[%s0 + $0x1b0] sm:$0xff]
    %v70 = vld [vmem:[%s0 + $0x1b8] sm:$0xff]
    %v71 = vld [vmem:[%s0 + $0x1c0] sm:$0xff]
    %v72 = vld [vmem:[%s0 + $0x1c8] sm:$0xff]
    %v73 = vld [vmem:[%s0 + $0x1d0] sm:$0xff]
    %v74 = vld [vmem:[%s0 + $0x1d8] sm:$0xff]
    %v75 = vld [vmem:[%s0 + $0x1e0] sm:$0xff]
    %v76 = vld [vmem:[%s0 + $0x1e8] sm:$0xff]
    %v77 = vld [vmem:[%s0 + $0x1f0] sm:$0xff]
    %v78 = vld [vmem:[%s0 + $0x1f8] sm:$0xff]
    %v79 = vld [vmem:[%s1] sm:$0x1]
    %v81 = vlaneseq
    %v82 = vshrl.u32 %v81, 7
    %v83 = vsub.s32 0, %v82
    %v84 = vrot.slane %v79, %v83
    %v86 = vmul.f32 %v15, %v84
    %v87 = vmul.f32 %v16, %v84
    %v88 = vmul.f32 %v17, %v84
    %v89 = vmul.f32 %v18, %v84
    %v90 = vmul.f32 %v19, %v84
    %v91 = vmul.f32 %v20, %v84
    %v92 = vmul.f32 %v21, %v84
    %v93 = vmul.f32 %v22, %v84
    %v94 = vmul.f32 %v23, %v84
    %v95 = vmul.f32 %v24, %v84
    %v96 = vmul.f32 %v25, %v84
    %v97 = vmul.f32 %v26, %v84
    %v98 = vmul.f32 %v27, %v84
    %v99 = vmul.f32 %v28, %v84
    %v100 = vmul.f32 %v29, %v84
    %v101 = vmul.f32 %v30, %v84
    %v102 = vmul.f32 %v31, %v84
    %v103 = vmul.f32 %v32, %v84
    %v104 = vmul.f32 %v33, %v84
    %v105 = vmul.f32 %v34, %v84
    %v106 = vmul.f32 %v35, %v84
    %v107 = vmul.f32 %v36, %v84
    %v108 = vmul.f32 %v37, %v84
    %v109 = vmul.f32 %v38, %v84
    %v110 = vmul.f32 %v39, %v84
    %v111 = vmul.f32 %v40, %v84
    %v112 = vmul.f32 %v41, %v84
    %v113 = vmul.f32 %v42, %v84
    %v114 = vmul.f32 %v43, %v84
    %v115 = vmul.f32 %v44, %v84
    %v116 = vmul.f32 %v45, %v84
    %v117 = vmul.f32 %v46, %v84
    %v118 = vmul.f32 %v47, %v84
    %v119 = vmul.f32 %v48, %v84
    %v120 = vmul.f32 %v49, %v84
    %v121 = vmul.f32 %v50, %v84
    %v122 = vmul.f32 %v51, %v84
    %v123 = vmul.f32 %v52, %v84
    %v124 = vmul.f32 %v53, %v84
    %v125 = vmul.f32 %v54, %v84
    %v126 = vmul.f32 %v55, %v84
    %v127 = vmul.f32 %v56, %v84
    %v128 = vmul.f32 %v57, %v84
    %v129 = vmul.f32 %v58, %v84
    %v130 = vmul.f32 %v59, %v84
    %v131 = vmul.f32 %v60, %v84
    %v132 = vmul.f32 %v61, %v84
    %v133 = vmul.f32 %v62, %v84
    %v134 = vmul.f32 %v63, %v84
    %v135 = vmul.f32 %v64, %v84
    %v136 = vmul.f32 %v65, %v84
    %v137 = vmul.f32 %v66, %v84
    %v138 = vmul.f32 %v67, %v84
    %v139 = vmul.f32 %v68, %v84
    %v140 = vmul.f32 %v69, %v84
    %v141 = vmul.f32 %v70, %v84
    %v142 = vmul.f32 %v71, %v84
    %v143 = vmul.f32 %v72, %v84
    %v144 = vmul.f32 %v73, %v84
    %v145 = vmul.f32 %v74, %v84
    %v146 = vmul.f32 %v75, %v84
    %v147 = vmul.f32 %v76, %v84
    %v148 = vmul.f32 %v77, %v84
    %v149 = vmul.f32 %v78, %v84
    %v150 = vld [vmem:[%s2] sm:$0x1]
    %v152 = vlaneseq
    %v153 = vshrl.u32 %v152, 7
    %v154 = vsub.s32 0, %v153
    %v155 = vrot.slane %v150, %v154
    %v157 = vadd.f32 %v86, %v155
    %v158 = vadd.f32 %v87, %v155
    %v159 = vadd.f32 %v88, %v155
    %v160 = vadd.f32 %v89, %v155
    %v161 = vadd.f32 %v90, %v155
    %v162 = vadd.f32 %v91, %v155
    %v163 = vadd.f32 %v92, %v155
    %v164 = vadd.f32 %v93, %v155
    %v165 = vadd.f32 %v94, %v155
    %v166 = vadd.f32 %v95, %v155
    %v167 = vadd.f32 %v96, %v155
    %v168 = vadd.f32 %v97, %v155
    %v169 = vadd.f32 %v98, %v155
    %v170 = vadd.f32 %v99, %v155
    %v171 = vadd.f32 %v100, %v155
    %v172 = vadd.f32 %v101, %v155
    %v173 = vadd.f32 %v102, %v155
    %v174 = vadd.f32 %v103, %v155
    %v175 = vadd.f32 %v104, %v155
    %v176 = vadd.f32 %v105, %v155
    %v177 = vadd.f32 %v106, %v155
    %v178 = vadd.f32 %v107, %v155
    %v179 = vadd.f32 %v108, %v155
    %v180 = vadd.f32 %v109, %v155
    %v181 = vadd.f32 %v110, %v155
    %v182 = vadd.f32 %v111, %v155
    %v183 = vadd.f32 %v112, %v155
    %v184 = vadd.f32 %v113, %v155
    %v185 = vadd.f32 %v114, %v155
    %v186 = vadd.f32 %v115, %v155
    %v187 = vadd.f32 %v116, %v155
    %v188 = vadd.f32 %v117, %v155
    %v189 = vadd.f32 %v118, %v155
    %v190 = vadd.f32 %v119, %v155
    %v191 = vadd.f32 %v120, %v155
    %v192 = vadd.f32 %v121, %v155
    %v193 = vadd.f32 %v122, %v155
    %v194 = vadd.f32 %v123, %v155
    %v195 = vadd.f32 %v124, %v155
    %v196 = vadd.f32 %v125, %v155
    %v197 = vadd.f32 %v126, %v155
    %v198 = vadd.f32 %v127, %v155
    %v199 = vadd.f32 %v128, %v155
    %v200 = vadd.f32 %v129, %v155
    %v201 = vadd.f32 %v130, %v155
    %v202 = vadd.f32 %v131, %v155
    %v203 = vadd.f32 %v132, %v155
    %v204 = vadd.f32 %v133, %v155
    %v205 = vadd.f32 %v134, %v155
    %v206 = vadd.f32 %v135, %v155
    %v207 = vadd.f32 %v136, %v155
    %v208 = vadd.f32 %v137, %v155
    %v209 = vadd.f32 %v138, %v155
    %v210 = vadd.f32 %v139, %v155
    %v211 = vadd.f32 %v140, %v155
    %v212 = vadd.f32 %v141, %v155
    %v213 = vadd.f32 %v142, %v155
    %v214 = vadd.f32 %v143, %v155
    %v215 = vadd.f32 %v144, %v155
    %v216 = vadd.f32 %v145, %v155
    %v217 = vadd.f32 %v146, %v155
    %v218 = vadd.f32 %v147, %v155
    %v219 = vadd.f32 %v148, %v155
    %v220 = vadd.f32 %v149, %v155
    %221 = vst [vmem:[#allocation2] sm:$0xff] %v157
    %222 = vst [vmem:[#allocation2 + $0x8] sm:$0xff] %v158
    %223 = vst [vmem:[#allocation2 + $0x10] sm:$0xff] %v159
    %224 = vst [vmem:[#allocation2 + $0x18] sm:$0xff] %v160
    %225 = vst [vmem:[#allocation2 + $0x20] sm:$0xff] %v161
    %226 = vst [vmem:[#allocation2 + $0x28] sm:$0xff] %v162
    %227 = vst [vmem:[#allocation2 + $0x30] sm:$0xff] %v163
    %228 = vst [vmem:[#allocation2 + $0x38] sm:$0xff] %v164
    %229 = vst [vmem:[#allocation2 + $0x40] sm:$0xff] %v165
    %230 = vst [vmem:[#allocation2 + $0x48] sm:$0xff] %v166
    %231 = vst [vmem:[#allocation2 + $0x50] sm:$0xff] %v167
    %232 = vst [vmem:[#allocation2 + $0x58] sm:$0xff] %v168
    %233 = vst [vmem:[#allocation2 + $0x60] sm:$0xff] %v169
    %234 = vst [vmem:[#allocation2 + $0x68] sm:$0xff] %v170
    %235 = vst [vmem:[#allocation2 + $0x70] sm:$0xff] %v171
    %236 = vst [vmem:[#allocation2 + $0x78] sm:$0xff] %v172
    %237 = vst [vmem:[#allocation2 + $0x80] sm:$0xff] %v173
    %238 = vst [vmem:[#allocation2 + $0x88] sm:$0xff] %v174
    %239 = vst [vmem:[#allocation2 + $0x90] sm:$0xff] %v175
    %240 = vst [vmem:[#allocation2 + $0x98] sm:$0xff] %v176
    %241 = vst [vmem:[#allocation2 + $0xa0] sm:$0xff] %v177
    %242 = vst [vmem:[#allocation2 + $0xa8] sm:$0xff] %v178
    %243 = vst [vmem:[#allocation2 + $0xb0] sm:$0xff] %v179
    %244 = vst [vmem:[#allocation2 + $0xb8] sm:$0xff] %v180
    %245 = vst [vmem:[#allocation2 + $0xc0] sm:$0xff] %v181
    %246 = vst [vmem:[#allocation2 + $0xc8] sm:$0xff] %v182
    %247 = vst [vmem:[#allocation2 + $0xd0] sm:$0xff] %v183
    %248 = vst [vmem:[#allocation2 + $0xd8] sm:$0xff] %v184
    %249 = vst [vmem:[#allocation2 + $0xe0] sm:$0xff] %v185
    %250 = vst [vmem:[#allocation2 + $0xe8] sm:$0xff] %v186
    %251 = vst [vmem:[#allocation2 + $0xf0] sm:$0xff] %v187
    %252 = vst [vmem:[#allocation2 + $0xf8] sm:$0xff] %v188
    %253 = vst [vmem:[#allocation2 + $0x100] sm:$0xff] %v189
    %254 = vst [vmem:[#allocation2 + $0x108] sm:$0xff] %v190
    %255 = vst [vmem:[#allocation2 + $0x110] sm:$0xff] %v191
    %256 = vst [vmem:[#allocation2 + $0x118] sm:$0xff] %v192
    %257 = vst [vmem:[#allocation2 + $0x120] sm:$0xff] %v193
    %258 = vst [vmem:[#allocation2 + $0x128] sm:$0xff] %v194
    %259 = vst [vmem:[#allocation2 + $0x130] sm:$0xff] %v195
    %260 = vst [vmem:[#allocation2 + $0x138] sm:$0xff] %v196
    %261 = vst [vmem:[#allocation2 + $0x140] sm:$0xff] %v197
    %262 = vst [vmem:[#allocation2 + $0x148] sm:$0xff] %v198
    %263 = vst [vmem:[#allocation2 + $0x150] sm:$0xff] %v199
    %264 = vst [vmem:[#allocation2 + $0x158] sm:$0xff] %v200
    %265 = vst [vmem:[#allocation2 + $0x160] sm:$0xff] %v201
    %266 = vst [vmem:[#allocation2 + $0x168] sm:$0xff] %v202
    %267 = vst [vmem:[#allocation2 + $0x170] sm:$0xff] %v203
    %268 = vst [vmem:[#allocation2 + $0x178] sm:$0xff] %v204
    %269 = vst [vmem:[#allocation2 + $0x180] sm:$0xff] %v205
    %270 = vst [vmem:[#allocation2 + $0x188] sm:$0xff] %v206
    %271 = vst [vmem:[#allocation2 + $0x190] sm:$0xff] %v207
    %272 = vst [vmem:[#allocation2 + $0x198] sm:$0xff] %v208
    %273 = vst [vmem:[#allocation2 + $0x1a0] sm:$0xff] %v209
    %274 = vst [vmem:[#allocation2 + $0x1a8] sm:$0xff] %v210
    %275 = vst [vmem:[#allocation2 + $0x1b0] sm:$0xff] %v211
    %276 = vst [vmem:[#allocation2 + $0x1b8] sm:$0xff] %v212
    %277 = vst [vmem:[#allocation2 + $0x1c0] sm:$0xff] %v213
    %278 = vst [vmem:[#allocation2 + $0x1c8] sm:$0xff] %v214
    %279 = vst [vmem:[#allocation2 + $0x1d0] sm:$0xff] %v215
    %280 = vst [vmem:[#allocation2 + $0x1d8] sm:$0xff] %v216
    %281 = vst [vmem:[#allocation2 + $0x1e0] sm:$0xff] %v217
    %282 = vst [vmem:[#allocation2 + $0x1e8] sm:$0xff] %v218
    %283 = vst [vmem:[#allocation2 + $0x1f0] sm:$0xff] %v219
    %284 = vst [vmem:[#allocation2 + $0x1f8] sm:$0xff] %v220
    // Predicated region
    $region14: #{attention_forward.3} parent=1 // pred_check
      _
    $region15: #{attention_forward.3} parent=1 // pred_check_branch
      %286 = sbr.rel (0) target = $region17
    $region16: #{attention_forward.3} parent=1 // pred_region
      %s288 = ssub.s32 8192, 8192
      %289 = vsyncadd [#allocation3], %s288
      %s290 = sshll.u32 [#allocation2], 4
      %s291 = int_to_ptr.vmem [resolvable:$true] %s290
      %296 = dma.vmem_to_hbm [thread:$0]  %s291, 8192, %s3, [#allocation3], 128, 128, 8
    $region17: #{attention_forward.3} parent=1 // pred_fallthru
      _
    // Predicated region
    $region18: #{attention_forward.3} parent=1 // pred_check
      _
    $region19: #{attention_forward.3} parent=1 // pred_check_branch
      %298 = sbr.rel (0) target = $region21
    $region20: #{attention_forward.3} parent=1 // pred_region
      %299 = dma.done [#allocation3], 8192
    $region21: #{attention_forward.3} parent=1 // pred_fallthru
      _
    %300 = vsyncpa [#allocation3], 1

// kernel: attention_forward.2
$region0: #{attention_forward.2}
  #allocation0 [shape = 'u32[]', space=smem, size = 0x4, offset = 0x4, fixed_abs, tag = 'smem constant byte address 0x4 - core index']
  #allocation1 [shape = 'u32[144,128]{1,0:T(1,128)}', space=vmem, size = 0x12000, scoped, tag = 'internal scratch']
  %s0 = inlined_call_operand.vmem [shape: bf16[2,256,128], index: 0, kind: input, shape index: {}]
  %s1 = inlined_call_operand.vmem [shape: bf16[128,384], index: 1, kind: input, shape index: {}]
  %s2 = inlined_call_operand.vmem [shape: bf16[128,128], index: 2, kind: input, shape index: {}]
  %s3 = inlined_call_operand.vmem [shape: f32[1,128], index: 3, kind: input, shape index: {}]
  %s4 = inlined_call_operand.vmem [shape: f32[2,256,128], index: 4, kind: output, shape index: {0}]
  %s5 = inlined_call_operand.vmem [shape: f32[2,1,128], index: 5, kind: output, shape index: {1}]
  %s6 = inlined_call_operand.vmem [shape: f32[2,1,128], index: 6, kind: output, shape index: {2}]
  %7 = xla_tuple %s4, %s5, %s6
  %s8 = sld [smem:[#allocation0]]
  $region69: #{attention_forward.2} parent=0
    _
  %s10 = ssub.s32 1, %s8
  %s11 = scalar_select 0, %s10, %s8
  loop: start=0, step=1, limit=6
  $region2: #{attention_forward.2} parent=0 // loop_pre_header
    _
  $region3: #{attention_forward.2} parent=0 // loop_header
    %s13 = sphi 0, %s17
    %p14 = scmp.ge.s32.totalorder %s13, 6
    %s20 = sphi 0, %s32
    %s21 = sphi 0, %s28
    %s22 = sphi 0, %s20
    %s23 = sphi 0, %s21
    %s24 = sphi 0, %s22
    %s25 = sphi 0, %s23
    %s35 = sphi 0, %s37
    %s38 = sphi 0, %s35
    %s39 = sphi 0, %s38
    %s55 = sphi 0, %s39
    %s59 = sphi 0, %s59
    %s61 = sphi 0, %s59
    %s62 = sphi 0, %s61
    %s76 = sphi 0, %s62
    %s80 = sphi 0, %s80
    %s82 = sphi 0, %s80
    %s83 = sphi 0, %s82
    %s97 = sphi 0, %s83
    %s101 = sphi 0, %s101
    %s103 = sphi 0, %s101
    %s104 = sphi 0, %s103
    %s118 = sphi 0, %s104
    %s126 = sphi 0, %s128
    %s129 = sphi 0, %s126
    %s130 = sphi 0, %s129
    %s146 = sphi 0, %s130
    %s152 = sphi 0, %s154
    %s155 = sphi 0, %s152
    %s156 = sphi 0, %s155
    %s172 = sphi 0, %s156
    %s178 = sphi 0, %s180
    %s181 = sphi 0, %s178
    %s182 = sphi 0, %s181
    %s198 = sphi 0, %s182
  $region4: #{attention_forward.2} parent=0 // loop_header_branch
    %16 = sbr.rel (%p14) target = $region8
  $region5: #{attention_forward.2} parent=0 // loop_body
    %s18 = ssub.s32 %s13, 1
    %s19 = ssub.s32 %s13, 2
    %s26 = sadd.s32 1, %s21
    %p27 = scmp.ge.s32.totalorder %s26, 2
    %s28 = scalar_select %p27, 0, %s26
    %s29 = sadd.s32 1, %s20
    %s30 = scalar_select %p27, %s29, %s20
    %p31 = scmp.ge.s32.totalorder %s30, 2
    %s32 = scalar_select %p31, 0, %s30
    %s33 = ssub.s32 %s20, %s32
    %p34 = scmp.eq.s32.totalorder %s33, 0
    %s36 = sadd.s32 %s35, 1
    %s37 = scalar_select %p34, %s35, %s36
    %p40 = pneg %p34
    %p41 = scmp.eq.s32.totalorder %s13, 3
    %p42 = por %p40, %p41
    %p43 = scmp.ne.s32.totalorder %s35, %s38
    %p44 = scmp.eq.s32.totalorder %s13, 0
    %p45 = por %p43, %p44
    %p46 = scmp.ne.s32.totalorder %s35, %s38
    %p47 = scmp.eq.s32.totalorder %s18, 3
    %p48 = por %p46, %p47
    %p49 = scmp.ne.s32.totalorder %s38, %s39
    %p50 = scmp.eq.s32.totalorder %s18, 0
    %p51 = por %p49, %p50
    %p52 = scmp.ne.s32.totalorder %s38, %s39
    %p53 = scmp.eq.s32.totalorder %s19, 3
    %p54 = por %p52, %p53
    %p56 = scmp.ne.s32.totalorder %s39, %s55
    %p57 = scmp.eq.s32.totalorder %s19, 0
    %p58 = por %p56, %p57
    %s60 = sadd.s32 %s59, 1
    %p63 = scmp.eq.s32.totalorder %s13, 3
    %p64 = scmp.ne.s32.totalorder %s59, %s61
    %p65 = scmp.eq.s32.totalorder %s13, 0
    %p66 = por %p64, %p65
    %p67 = scmp.ne.s32.totalorder %s59, %s61
    %p68 = scmp.eq.s32.totalorder %s18, 3
    %p69 = por %p67, %p68
    %p70 = scmp.ne.s32.totalorder %s61, %s62
    %p71 = scmp.eq.s32.totalorder %s18, 0
    %p72 = por %p70, %p71
    %p73 = scmp.ne.s32.totalorder %s61, %s62
    %p74 = scmp.eq.s32.totalorder %s19, 3
    %p75 = por %p73, %p74
    %p77 = scmp.ne.s32.totalorder %s62, %s76
    %p78 = scmp.eq.s32.totalorder %s19, 0
    %p79 = por %p77, %p78
    %s81 = sadd.s32 %s80, 1
    %p84 = scmp.eq.s32.totalorder %s13, 3
    %p85 = scmp.ne.s32.totalorder %s80, %s82
    %p86 = scmp.eq.s32.totalorder %s13, 0
    %p87 = por %p85, %p86
    %p88 = scmp.ne.s32.totalorder %s80, %s82
    %p89 = scmp.eq.s32.totalorder %s18, 3
    %p90 = por %p88, %p89
    %p91 = scmp.ne.s32.totalorder %s82, %s83
    %p92 = scmp.eq.s32.totalorder %s18, 0
    %p93 = por %p91, %p92
    %p94 = scmp.ne.s32.totalorder %s82, %s83
    %p95 = scmp.eq.s32.totalorder %s19, 3
    %p96 = por %p94, %p95
    %p98 = scmp.ne.s32.totalorder %s83, %s97
    %p99 = scmp.eq.s32.totalorder %s19, 0
    %p100 = por %p98, %p99
    %s102 = sadd.s32 %s101, 1
    %p105 = scmp.eq.s32.totalorder %s13, 3
    %p106 = scmp.ne.s32.totalorder %s101, %s103
    %p107 = scmp.eq.s32.totalorder %s13, 0
    %p108 = por %p106, %p107
    %p109 = scmp.ne.s32.totalorder %s101, %s103
    %p110 = scmp.eq.s32.totalorder %s18, 3
    %p111 = por %p109, %p110
    %p112 = scmp.ne.s32.totalorder %s103, %s104
    %p113 = scmp.eq.s32.totalorder %s18, 0
    %p114 = por %p112, %p113
    %p115 = scmp.ne.s32.totalorder %s103, %s104
    %p116 = scmp.eq.s32.totalorder %s19, 3
    %p117 = por %p115, %p116
    %p119 = scmp.ne.s32.totalorder %s104, %s118
    %p120 = scmp.eq.s32.totalorder %s19, 0
    %p121 = por %p119, %p120
    %s122 = ssub.s32 %s20, %s32
    %s123 = ssub.s32 %s21, %s28
    %s124 = sor.u32 %s122, %s123
    %p125 = scmp.eq.s32.totalorder %s124, 0
    %s127 = sadd.s32 %s126, 1
    %s128 = scalar_select %p125, %s126, %s127
    %p131 = pneg %p125
    %p132 = scmp.eq.s32.totalorder %s13, 3
    %p133 = por %p131, %p132
    %p134 = scmp.ne.s32.totalorder %s126, %s129
    %p135 = scmp.eq.s32.totalorder %s13, 0
    %p136 = por %p134, %p135
    %p137 = scmp.ne.s32.totalorder %s126, %s129
    %p138 = scmp.eq.s32.totalorder %s18, 3
    %p139 = por %p137, %p138
    %p140 = scmp.ne.s32.totalorder %s129, %s130
    %p141 = scmp.eq.s32.totalorder %s18, 0
    %p142 = por %p140, %p141
    %p143 = scmp.ne.s32.totalorder %s129, %s130
    %p144 = scmp.eq.s32.totalorder %s19, 3
    %p145 = por %p143, %p144
    %p147 = scmp.ne.s32.totalorder %s130, %s146
    %p148 = scmp.eq.s32.totalorder %s19, 0
    %p149 = por %p147, %p148
    %s150 = ssub.s32 %s20, %s32
    %p151 = scmp.eq.s32.totalorder %s150, 0
    %s153 = sadd.s32 %s152, 1
    %s154 = scalar_select %p151, %s152, %s153
    %p157 = pneg %p151
    %p158 = scmp.eq.s32.totalorder %s13, 3
    %p159 = por %p157, %p158
    %p160 = scmp.ne.s32.totalorder %s152, %s155
    %p161 = scmp.eq.s32.totalorder %s13, 0
    %p162 = por %p160, %p161
    %p163 = scmp.ne.s32.totalorder %s152, %s155
    %p164 = scmp.eq.s32.totalorder %s18, 3
    %p165 = por %p163, %p164
    %p166 = scmp.ne.s32.totalorder %s155, %s156
    %p167 = scmp.eq.s32.totalorder %s18, 0
    %p168 = por %p166, %p167
    %p169 = scmp.ne.s32.totalorder %s155, %s156
    %p170 = scmp.eq.s32.totalorder %s19, 3
    %p171 = por %p169, %p170
    %p173 = scmp.ne.s32.totalorder %s156, %s172
    %p174 = scmp.eq.s32.totalorder %s19, 0
    %p175 = por %p173, %p174
    %s176 = ssub.s32 %s20, %s32
    %p177 = scmp.eq.s32.totalorder %s176, 0
    %s179 = sadd.s32 %s178, 1
    %s180 = scalar_select %p177, %s178, %s179
    %p183 = pneg %p177
    %p184 = scmp.eq.s32.totalorder %s13, 3
    %p185 = por %p183, %p184
    %p186 = scmp.ne.s32.totalorder %s178, %s181
    %p187 = scmp.eq.s32.totalorder %s13, 0
    %p188 = por %p186, %p187
    %p189 = scmp.ne.s32.totalorder %s178, %s181
    %p190 = scmp.eq.s32.totalorder %s18, 3
    %p191 = por %p189, %p190
    %p192 = scmp.ne.s32.totalorder %s181, %s182
    %p193 = scmp.eq.s32.totalorder %s18, 0
    %p194 = por %p192, %p193
    %p195 = scmp.ne.s32.totalorder %s181, %s182
    %p196 = scmp.eq.s32.totalorder %s19, 3
    %p197 = por %p195, %p196
    %p199 = scmp.ne.s32.totalorder %s182, %s198
    %p200 = scmp.eq.s32.totalorder %s19, 0
    %p201 = por %p199, %p200
    %p202 = scmp.le.s32.totalorder 1, %s13
    %p203 = scmp.lt.s32.totalorder %s13, 5
    %p204 = pnand %p202, %p203
    %p205 = pneg %p204
    // Predicated region
    $region9: #{attention_forward.2} parent=5 // pred_check
      _
    $region10: #{attention_forward.2} parent=5 // pred_check_branch
      %207 = sbr.rel (%p204) target = $region12
    $region11: #{attention_forward.2} parent=5 // pred_region
      %s208 = ssub.s32 %s13, 1
      // Predicated region
      $region13: #{attention_forward.2} parent=11 // pred_check
        %p209 = pneg %p72
      $region14: #{attention_forward.2} parent=11 // pred_check_branch
        %211 = sbr.rel (%p209) target = $region16
      $region15: #{attention_forward.2} parent=11 // pred_region
        _
      $region16: #{attention_forward.2} parent=11 // pred_fallthru
        _
      // Predicated region
      $region17: #{attention_forward.2} parent=11 // pred_check
        %p212 = pneg %p93
      $region18: #{attention_forward.2} parent=11 // pred_check_branch
        %214 = sbr.rel (%p212) target = $region20
      $region19: #{attention_forward.2} parent=11 // pred_region
        _
      $region20: #{attention_forward.2} parent=11 // pred_fallthru
        _
      // Predicated region
      $region21: #{attention_forward.2} parent=11 // pred_check
        %p215 = pneg %p114
      $region22: #{attention_forward.2} parent=11 // pred_check_branch
        %217 = sbr.rel (%p215) target = $region24
      $region23: #{attention_forward.2} parent=11 // pred_region
        _
      $region24: #{attention_forward.2} parent=11 // pred_fallthru
        _
    $region12: #{attention_forward.2} parent=5 // pred_fallthru
      _
    %p218 = scmp.lt.s32.totalorder %s13, 4
    // Predicated region
    $region25: #{attention_forward.2} parent=5 // pred_check
      %p219 = pneg %p218
    $region26: #{attention_forward.2} parent=5 // pred_check_branch
      %221 = sbr.rel (%p219) target = $region28
    $region27: #{attention_forward.2} parent=5 // pred_region
      // Predicated region
      $region29: #{attention_forward.2} parent=27 // pred_check
        %p222 = pneg %p45
      $region30: #{attention_forward.2} parent=27 // pred_check_branch
        %224 = sbr.rel (%p222) target = $region32
      $region31: #{attention_forward.2} parent=27 // pred_region
        %p225 = scmp.lt.s32.totalorder %s20, 1
        %s226 = scalar_select %p225, %s20, 1
        %s227 = smul.addr %s226, 32
        %s228 = smul.addr %s227, 4
        %s229 = scalar_lea.vmem %s0, %s228
      $region32: #{attention_forward.2} parent=27 // pred_fallthru
        _
    $region28: #{attention_forward.2} parent=5 // pred_fallthru
      _
    %p230 = scmp.le.s32.totalorder 1, %s13
    %p231 = scmp.lt.s32.totalorder %s13, 5
    %p232 = pnand %p230, %p231
    %p233 = pneg %p232
    // Predicated region
    $region33: #{attention_forward.2} parent=5 // pred_check
      _
    $region34: #{attention_forward.2} parent=5 // pred_check_branch
      %235 = sbr.rel (%p232) target = $region36
    $region35: #{attention_forward.2} parent=5 // pred_region
      %s236 = ssub.s32 %s13, 1
      %p237 = scmp.lt.s32.totalorder %s22, 1
      %s238 = scalar_select %p237, %s22, 1
      %s239 = smul.addr %s238, 32
      %s240 = smul.addr %s239, 4
      %s241 = scalar_lea.vmem %s0, %s240
      %p242 = pneg %p51
      %p243 = pneg %p48
      %p244 = pneg %p72
      %p245 = pneg %p69
      %p246 = pneg %p93
      %p247 = pneg %p90
      %p248 = pneg %p114
      %p249 = pneg %p111
      %p250 = pneg %p142
      %p251 = pneg %p139
      %s252 = smul.u32 16, %s23
      %p253 = scmp.lt.s32.totalorder %s22, 1
      %s254 = scalar_select %p253, %s22, 1
      %p255 = scmp.lt.s32.totalorder %s252, 31
      %s256 = scalar_select %p255, %s252, 31
      %s257 = smul.addr %s254, 32
      %s258 = sadd.s32 %s256, %s257
      %s259 = smul.addr %s258, 8
      %s260 = scalar_lea.vmem %s4, %s259
      %p261 = pneg %p168
      %p262 = pneg %p165
      %p263 = scmp.lt.s32.totalorder %s22, 1
      %s264 = scalar_select %p263, %s22, 1
      %s265 = scalar_lea.vmem %s5, %s264
      %p266 = pneg %p194
      %p267 = pneg %p191
      %p268 = scmp.lt.s32.totalorder %s22, 1
      %s269 = scalar_select %p268, %s22, 1
      %s270 = scalar_lea.vmem %s6, %s269
      %p271 = scmp.lt.s32.totalorder %s22, 1
      %s272 = scalar_select %p271, %s22, 1
      %s273 = smul.addr %s272, 32
      %s274 = smul.addr %s273, 4
      %s275 = scalar_lea.vmem %s0, %s274
      %s276 = smul.u32 16, %s23
      %p277 = scmp.lt.s32.totalorder %s22, 1
      %s278 = scalar_select %p277, %s22, 1
      %p279 = scmp.lt.s32.totalorder %s276, 31
      %s280 = scalar_select %p279, %s276, 31
      %s281 = smul.addr %s278, 32
      %s282 = sadd.s32 %s280, %s281
      %s283 = smul.addr %s282, 8
      %s284 = scalar_lea.vmem %s4, %s283
      %s285 = smul.u32 16, %s23
      %p286 = scmp.lt.s32.totalorder %s22, 1
      %s287 = scalar_select %p286, %s22, 1
      %s288 = scalar_lea.vmem %s5, %s287
      %p289 = scmp.lt.s32.totalorder %s22, 1
      %s290 = scalar_select %p289, %s22, 1
      %s291 = scalar_lea.vmem %s6, %s290
      %v293 = vld [vmem:[%s275] sm:$0xf]
      %v294 = vld [vmem:[%s275 + $0x4] sm:$0xf]
      %v295 = vld [vmem:[%s275 + $0x8] sm:$0xf]
      %v296 = vld [vmem:[%s275 + $0xc] sm:$0xf]
      %v297 = vld [vmem:[%s275 + $0x10] sm:$0xf]
      %v298 = vld [vmem:[%s275 + $0x14] sm:$0xf]
      %v299 = vld [vmem:[%s275 + $0x18] sm:$0xf]
      %v300 = vld [vmem:[%s275 + $0x1c] sm:$0xf]
      %v301 = vld [vmem:[%s275 + $0x20] sm:$0xf]
      %v302 = vld [vmem:[%s275 + $0x24] sm:$0xf]
      %v303 = vld [vmem:[%s275 + $0x28] sm:$0xf]
      %v304 = vld [vmem:[%s275 + $0x2c] sm:$0xf]
      %v305 = vld [vmem:[%s275 + $0x30] sm:$0xf]
      %v306 = vld [vmem:[%s275 + $0x34] sm:$0xf]
      %v307 = vld [vmem:[%s275 + $0x38] sm:$0xf]
      %v308 = vld [vmem:[%s275 + $0x3c] sm:$0xf]
      %v309 = vld [vmem:[%s275 + $0x40] sm:$0xf]
      %v310 = vld [vmem:[%s275 + $0x44] sm:$0xf]
      %v311 = vld [vmem:[%s275 + $0x48] sm:$0xf]
      %v312 = vld [vmem:[%s275 + $0x4c] sm:$0xf]
      %v313 = vld [vmem:[%s275 + $0x50] sm:$0xf]
      %v314 = vld [vmem:[%s275 + $0x54] sm:$0xf]
      %v315 = vld [vmem:[%s275 + $0x58] sm:$0xf]
      %v316 = vld [vmem:[%s275 + $0x5c] sm:$0xf]
      %v317 = vld [vmem:[%s275 + $0x60] sm:$0xf]
      %v318 = vld [vmem:[%s275 + $0x64] sm:$0xf]
      %v319 = vld [vmem:[%s275 + $0x68] sm:$0xf]
      %v320 = vld [vmem:[%s275 + $0x6c] sm:$0xf]
      %v321 = vld [vmem:[%s275 + $0x70] sm:$0xf]
      %v322 = vld [vmem:[%s275 + $0x74] sm:$0xf]
      %v323 = vld [vmem:[%s275 + $0x78] sm:$0xf]
      %v324 = vld [vmem:[%s275 + $0x7c] sm:$0xf]
      %s325 = smul.u32 %s23, 128
      %s326 = sshra.s32 %s325, 3
      %s327 = sand.u32 %s325, 7
      %s328 = smul.addr %s326, 4
      %s329 = scalar_lea.vmem %s275, %s328
      %v330 = vld [vmem:[%s329] sm:$0xf]
      %v331 = vld [vmem:[%s329 + $0x4] sm:$0xf]
      %v332 = vld [vmem:[%s329 + $0x8] sm:$0xf]
      %v333 = vld [vmem:[%s329 + $0xc] sm:$0xf]
      %v334 = vld [vmem:[%s329 + $0x10] sm:$0xf]
      %v335 = vld [vmem:[%s329 + $0x14] sm:$0xf]
      %v336 = vld [vmem:[%s329 + $0x18] sm:$0xf]
      %v337 = vld [vmem:[%s329 + $0x1c] sm:$0xf]
      %v338 = vld [vmem:[%s329 + $0x20] sm:$0xf]
      %v339 = vld [vmem:[%s329 + $0x24] sm:$0xf]
      %v340 = vld [vmem:[%s329 + $0x28] sm:$0xf]
      %v341 = vld [vmem:[%s329 + $0x2c] sm:$0xf]
      %v342 = vld [vmem:[%s329 + $0x30] sm:$0xf]
      %v343 = vld [vmem:[%s329 + $0x34] sm:$0xf]
      %v344 = vld [vmem:[%s329 + $0x38] sm:$0xf]
      %v345 = vld [vmem:[%s329 + $0x3c] sm:$0xf]
      %v346 = vld [vmem:[%s1] sm:$0xff]
      %v347 = vld [vmem:[%s1 + $0x8] sm:$0xf]
      %v348 = vld [vmem:[%s1 + $0xc] sm:$0xff]
      %v349 = vld [vmem:[%s1 + $0x14] sm:$0xf]
      %v350 = vld [vmem:[%s1 + $0x18] sm:$0xff]
      %v351 = vld [vmem:[%s1 + $0x20] sm:$0xf]
      %v352 = vld [vmem:[%s1 + $0x24] sm:$0xff]
      %v353 = vld [vmem:[%s1 + $0x2c] sm:$0xf]
      %v354 = vld [vmem:[%s1 + $0x30] sm:$0xff]
      %v355 = vld [vmem:[%s1 + $0x38] sm:$0xf]
      %v356 = vld [vmem:[%s1 + $0x3c] sm:$0xff]
      %v357 = vld [vmem:[%s1 + $0x44] sm:$0xf]
      %v358 = vld [vmem:[%s1 + $0x48] sm:$0xff]
      %v359 = vld [vmem:[%s1 + $0x50] sm:$0xf]
      %v360 = vld [vmem:[%s1 + $0x54] sm:$0xff]
      %v361 = vld [vmem:[%s1 + $0x5c] sm:$0xf]
      %v362 = vld [vmem:[%s1 + $0x60] sm:$0xff]
      %v363 = vld [vmem:[%s1 + $0x68] sm:$0xf]
      %v364 = vld [vmem:[%s1 + $0x6c] sm:$0xff]
      %v365 = vld [vmem:[%s1 + $0x74] sm:$0xf]
      %v366 = vld [vmem:[%s1 + $0x78] sm:$0xff]
      %v367 = vld [vmem:[%s1 + $0x80] sm:$0xf]
      %v368 = vld [vmem:[%s1 + $0x84] sm:$0xff]
      %v369 = vld [vmem:[%s1 + $0x8c] sm:$0xf]
      %v370 = vld [vmem:[%s1 + $0x90] sm:$0xff]
      %v371 = vld [vmem:[%s1 + $0x98] sm:$0xf]
      %v372 = vld [vmem:[%s1 + $0x9c] sm:$0xff]
      %v373 = vld [vmem:[%s1 + $0xa4] sm:$0xf]
      %v374 = vld [vmem:[%s1 + $0xa8] sm:$0xff]
      %v375 = vld [vmem:[%s1 + $0xb0] sm:$0xf]
      %v376 = vld [vmem:[%s1 + $0xb4] sm:$0xff]
      %v377 = vld [vmem:[%s1 + $0xbc] sm:$0xf]
      %v394 = vunpack.c.l.b16 %v330
      %v395 = vunpack.c.l.b16 %v331
      %v396 = vunpack.c.l.b16 %v332
      %v397 = vunpack.c.l.b16 %v333
      %v398 = vunpack.c.l.b16 %v334
      %v399 = vunpack.c.l.b16 %v335
      %v400 = vunpack.c.l.b16 %v336
      %v401 = vunpack.c.l.b16 %v337
      %v402 = vunpack.c.l.b16 %v338
      %v403 = vunpack.c.l.b16 %v339
      %v404 = vunpack.c.l.b16 %v340
      %v405 = vunpack.c.l.b16 %v341
      %v406 = vunpack.c.l.b16 %v342
      %v407 = vunpack.c.l.b16 %v343
      %v408 = vunpack.c.l.b16 %v344
      %v409 = vunpack.c.l.b16 %v345
      %v410 = vpack.c.b16 %v395, %v394
      %v411 = vpack.c.b16 %v397, %v396
      %v412 = vpack.c.b16 %v399, %v398
      %v413 = vpack.c.b16 %v401, %v400
      %v414 = vpack.c.b16 %v403, %v402
      %v415 = vpack.c.b16 %v405, %v404
      %v416 = vpack.c.b16 %v407, %v406
      %v417 = vpack.c.b16 %v409, %v408
      %v442 = vunpack.c.l.b16 %v346
      %v443 = vunpack.c.l.b16 %v348
      %v444 = vunpack.c.l.b16 %v350
      %v445 = vunpack.c.l.b16 %v352
      %v446 = vunpack.c.l.b16 %v354
      %v447 = vunpack.c.l.b16 %v356
      %v448 = vunpack.c.l.b16 %v358
      %v449 = vunpack.c.l.b16 %v360
      %v450 = vunpack.c.l.b16 %v362
      %v451 = vunpack.c.l.b16 %v364
      %v452 = vunpack.c.l.b16 %v366
      %v453 = vunpack.c.l.b16 %v368
      %v454 = vunpack.c.l.b16 %v370
      %v455 = vunpack.c.l.b16 %v372
      %v456 = vunpack.c.l.b16 %v374
      %v457 = vunpack.c.l.b16 %v376
      %v458 = vpack.c.b16 %v443, %v442
      %v459 = vpack.c.b16 %v445, %v444
      %v460 = vpack.c.b16 %v447, %v446
      %v461 = vpack.c.b16 %v449, %v448
      %v462 = vpack.c.b16 %v451, %v450
      %v463 = vpack.c.b16 %v453, %v452
      %v464 = vpack.c.b16 %v455, %v454
      %v465 = vpack.c.b16 %v457, %v456
      %474 = vmatprep.subr.bf16.mxu0 0
      %475 = vmatpush1.bf16.msra.mxu0 %v458
      %476 = vmatprep.subr.bf16.mxu0 0
      %477 = vmatpush1.bf16.msra.mxu0 %v459
      %478 = vmatprep.subr.bf16.mxu0 0
      %479 = vmatpush1.bf16.msra.mxu0 %v460
      %480 = vmatprep.subr.bf16.mxu0 0
      %481 = vmatpush1.bf16.msra.mxu0 %v461
      %482 = vmatprep.subr.bf16.mxu0 0
      %483 = vmatpush1.bf16.msra.mxu0 %v462
      %484 = vmatprep.subr.bf16.mxu0 0
      %485 = vmatpush1.bf16.msra.mxu0 %v463
      %486 = vmatprep.subr.bf16.mxu0 0
      %487 = vmatpush1.bf16.msra.mxu0 %v464
      %488 = vmatprep.subr.bf16.mxu0 0
      %489 = vmatpush1.bf16.msra.mxu0 %v465
      %490 = vmatprep.subr.bf16.mxu0 0
      %491 = vmatpush1.bf16.msra.mxu0 0
      %492 = vmatprep.subr.bf16.mxu0 0
      %493 = vmatpush1.bf16.msra.mxu0 0
      %494 = vmatprep.subr.bf16.mxu0 0
      %495 = vmatpush1.bf16.msra.mxu0 0
      %496 = vmatprep.subr.bf16.mxu0 0
      %497 = vmatpush1.bf16.msra.mxu0 0
      %498 = vmatprep.subr.bf16.mxu0 0
      %499 = vmatpush1.bf16.msra.mxu0 0
      %500 = vmatprep.subr.bf16.mxu0 0
      %501 = vmatpush1.bf16.msra.mxu0 0
      %502 = vmatprep.subr.bf16.mxu0 0
      %503 = vmatpush1.bf16.msra.mxu0 0
      %504 = vmatprep.subr.bf16.mxu0 0
      %505 = vmatpush1.bf16.msra.mxu0 0
      %506 = vmatprep.mubr.bf16.mxu0 0
      %507 = vmatmul.mubr.bf16.gmra.mrb[0].mxu0 %v410
      %v508 = vpop.f32.mrb[0].mxu0
      %v509 = vadd.f32 0.0, %v508
      %v510 = vpop.f32.mrb[0].mxu0
      %v511 = vpop.f32.mrb[0].mxu0
      %v512 = vadd.f32 0.0, %v511
      %v513 = vpop.f32.mrb[0].mxu0
      %514 = vmatprep.mubr.bf16.mxu0 0
      %515 = vmatmul.mubr.bf16.gmra.mrb[0].mxu0 %v411
      %v516 = vpop.f32.mrb[0].mxu0
      %v517 = vadd.f32 0.0, %v516
      %v518 = vpop.f32.mrb[0].mxu0
      %v519 = vpop.f32.mrb[0].mxu0
      %v520 = vadd.f32 0.0, %v519
      %v521 = vpop.f32.mrb[0].mxu0
      %522 = vmatprep.mubr.bf16.mxu0 0
      %523 = vmatmul.mubr.bf16.gmra.mrb[0].mxu0 %v412
      %v524 = vpop.f32.mrb[0].mxu0
      %v525 = vadd.f32 0.0, %v524
      %v526 = vpop.f32.mrb[0].mxu0
      %v527 = vpop.f32.mrb[0].mxu0
      %v528 = vadd.f32 0.0, %v527
      %v529 = vpop.f32.mrb[0].mxu0
      %530 = vmatprep.mubr.bf16.mxu0 0
      %531 = vmatmul.mubr.bf16.gmra.mrb[0].mxu0 %v413
      %v532 = vpop.f32.mrb[0].mxu0
      %v533 = vadd.f32 0.0, %v532
      %v534 = vpop.f32.mrb[0].mxu0
      %v535 = vpop.f32.mrb[0].mxu0
      %v536 = vadd.f32 0.0, %v535
      %v537 = vpop.f32.mrb[0].mxu0
      %538 = vmatprep.mubr.bf16.mxu0 0
      %539 = vmatmul.mubr.bf16.gmra.mrb[0].mxu0 %v414
      %v540 = vpop.f32.mrb[0].mxu0
      %v541 = vadd.f32 0.0, %v540
      %v542 = vpop.f32.mrb[0].mxu0
      %v543 = vpop.f32.mrb[0].mxu0
      %v544 = vadd.f32 0.0, %v543
      %v545 = vpop.f32.mrb[0].mxu0
      %546 = vmatprep.mubr.bf16.mxu0 0
      %547 = vmatmul.mubr.bf16.gmra.mrb[0].mxu0 %v415
      %v548 = vpop.f32.mrb[0].mxu0
      %v549 = vadd.f32 0.0, %v548
      %v550 = vpop.f32.mrb[0].mxu0
      %v551 = vpop.f32.mrb[0].mxu0
      %v552 = vadd.f32 0.0, %v551
      %v553 = vpop.f32.mrb[0].mxu0
      %554 = vmatprep.mubr.bf16.mxu0 0
      %555 = vmatmul.mubr.bf16.gmra.mrb[0].mxu0 %v416
      %v556 = vpop.f32.mrb[0].mxu0
      %v557 = vadd.f32 0.0, %v556
      %v558 = vpop.f32.mrb[0].mxu0
      %v559 = vpop.f32.mrb[0].mxu0
      %v560 = vadd.f32 0.0, %v559
      %v561 = vpop.f32.mrb[0].mxu0
      %562 = vmatprep.mubr.bf16.mxu0 0
      %563 = vmatmul.mubr.bf16.gmra.mrb[0].mxu0 %v417
      %v564 = vpop.f32.mrb[0].mxu0
      %v565 = vadd.f32 0.0, %v564
      %v566 = vpop.f32.mrb[0].mxu0
      %v567 = vpop.f32.mrb[0].mxu0
      %v568 = vadd.f32 0.0, %v567
      %v569 = vpop.f32.mrb[0].mxu0
      %570 = vdwg.mxu0
      %v571 = vmul.f32 %v509, 0.17677669
      %v572 = vmul.f32 %v512, 0.17677669
      %v573 = vmul.f32 %v517, 0.17677669
      %v574 = vmul.f32 %v520, 0.17677669
      %v575 = vmul.f32 %v525, 0.17677669
      %v576 = vmul.f32 %v528, 0.17677669
      %v577 = vmul.f32 %v533, 0.17677669
      %v578 = vmul.f32 %v536, 0.17677669
      %v579 = vmul.f32 %v541, 0.17677669
      %v580 = vmul.f32 %v544, 0.17677669
      %v581 = vmul.f32 %v549, 0.17677669
      %v582 = vmul.f32 %v552, 0.17677669
      %v583 = vmul.f32 %v557, 0.17677669
      %v584 = vmul.f32 %v560, 0.17677669
      %v585 = vmul.f32 %v565, 0.17677669
      %v586 = vmul.f32 %v568, 0.17677669
      %v619 = vunpack.c.l.b16 %v293
      %v620 = vunpack.c.l.b16 %v294
      %v621 = vunpack.c.l.b16 %v295
      %v622 = vunpack.c.l.b16 %v296
      %v623 = vunpack.c.l.b16 %v297
      %v624 = vunpack.c.l.b16 %v298
      %v625 = vunpack.c.l.b16 %v299
      %v626 = vunpack.c.l.b16 %v300
      %v627 = vunpack.c.l.b16 %v301
      %v628 = vunpack.c.l.b16 %v302
      %v629 = vunpack.c.l.b16 %v303
      %v630 = vunpack.c.l.b16 %v304
      %v631 = vunpack.c.l.b16 %v305
      %v632 = vunpack.c.l.b16 %v306
      %v633 = vunpack.c.l.b16 %v307
      %v634 = vunpack.c.l.b16 %v308
      %v635 = vunpack.c.l.b16 %v309
      %v636 = vunpack.c.l.b16 %v310
      %v637 = vunpack.c.l.b16 %v311
      %v638 = vunpack.c.l.b16 %v312
      %v639 = vunpack.c.l.b16 %v313
      %v640 = vunpack.c.l.b16 %v314
      %v641 = vunpack.c.l.b16 %v315
      %v642 = vunpack.c.l.b16 %v316
      %v643 = vunpack.c.l.b16 %v317
      %v644 = vunpack.c.l.b16 %v318
      %v645 = vunpack.c.l.b16 %v319
      %v646 = vunpack.c.l.b16 %v320
      %v647 = vunpack.c.l.b16 %v321
      %v648 = vunpack.c.l.b16 %v322
      %v649 = vunpack.c.l.b16 %v323
      %v650 = vunpack.c.l.b16 %v324
      %v651 = vpack.c.b16 %v620, %v619
      %v652 = vpack.c.b16 %v622, %v621
      %v653 = vpack.c.b16 %v624, %v623
      %v654 = vpack.c.b16 %v626, %v625
      %v655 = vpack.c.b16 %v628, %v627
      %v656 = vpack.c.b16 %v630, %v629
      %v657 = vpack.c.b16 %v632, %v631
      %v658 = vpack.c.b16 %v634, %v633
      %v659 = vpack.c.b16 %v636, %v635
      %v660 = vpack.c.b16 %v638, %v637
      %v661 = vpack.c.b16 %v640, %v639
      %v662 = vpack.c.b16 %v642, %v641
      %v663 = vpack.c.b16 %v644, %v643
      %v664 = vpack.c.b16 %v646, %v645
      %v665 = vpack.c.b16 %v648, %v647
      %v666 = vpack.c.b16 %v650, %v649
      %v683 = vunpack.c.h.b16 %v346
      %v684 = vunpack.c.h.b16 %v348
      %v685 = vunpack.c.h.b16 %v350
      %v686 = vunpack.c.h.b16 %v352
      %v687 = vunpack.c.h.b16 %v354
      %v688 = vunpack.c.h.b16 %v356
      %v689 = vunpack.c.h.b16 %v358
      %v690 = vunpack.c.h.b16 %v360
      %v691 = vunpack.c.h.b16 %v362
      %v692 = vunpack.c.h.b16 %v364
      %v693 = vunpack.c.h.b16 %v366
      %v694 = vunpack.c.h.b16 %v368
      %v695 = vunpack.c.h.b16 %v370
      %v696 = vunpack.c.h.b16 %v372
      %v697 = vunpack.c.h.b16 %v374
      %v698 = vunpack.c.h.b16 %v376
      %v699 = vpack.c.b16 %v684, %v683
      %v700 = vpack.c.b16 %v686, %v685
      %v701 = vpack.c.b16 %v688, %v687
      %v702 = vpack.c.b16 %v690, %v689
      %v703 = vpack.c.b16 %v692, %v691
      %v704 = vpack.c.b16 %v694, %v693
      %v705 = vpack.c.b16 %v696, %v695
      %v706 = vpack.c.b16 %v698, %v697
      %715 = vmatprep.subr.bf16.mxu0 0
      %716 = vmatpush1.bf16.msra.mxu0 %v699
      %717 = vmatprep.subr.bf16.mxu0 0
      %718 = vmatpush1.bf16.msra.mxu0 %v700
      %719 = vmatprep.subr.bf16.mxu0 0
      %720 = vmatpush1.bf16.msra.mxu0 %v701
      %721 = vmatprep.subr.bf16.mxu0 0
      %722 = vmatpush1.bf16.msra.mxu0 %v702
      %723 = vmatprep.subr.bf16.mxu0 0
      %724 = vmatpush1.bf16.msra.mxu0 %v703
      %725 = vmatprep.subr.bf16.mxu0 0
      %726 = vmatpush1.bf16.msra.mxu0 %v704
      %727 = vmatprep.subr.bf16.mxu0 0
      %728 = vmatpush1.bf16.msra.mxu0 %v705
      %729 = vmatprep.subr.bf16.mxu0 0
      %730 = vmatpush1.bf16.msra.mxu0 %v706
      %731 = vmatprep.subr.bf16.mxu0 0
      %732 = vmatpush1.bf16.msra.mxu0 0
      %733 = vmatprep.subr.bf16.mxu0 0
      %734 = vmatpush1.bf16.msra.mxu0 0
      %735 = vmatprep.subr.bf16.mxu0 0
      %736 = vmatpush1.bf16.msra.mxu0 0
      %737 = vmatprep.subr.bf16.mxu0 0
      %738 = vmatpush1.bf16.msra.mxu0 0
      %739 = vmatprep.subr.bf16.mxu0 0
      %740 = vmatpush1.bf16.msra.mxu0 0
      %741 = vmatprep.subr.bf16.mxu0 0
      %742 = vmatpush1.bf16.msra.mxu0 0
      %743 = vmatprep.subr.bf16.mxu0 0
      %744 = vmatpush1.bf16.msra.mxu0 0
      %745 = vmatprep.subr.bf16.mxu0 0
      %746 = vmatpush1.bf16.msra.mxu0 0
      %747 = vmatprep.mubr.bf16.mxu0 0
      %748 = vmatmul.mubr.bf16.gmra.mrb[0].mxu0 %v651
      %v749 = vpop.f32.mrb[0].mxu0
      %v750 = vadd.f32 0.0, %v749
      %v751 = vpop.f32.mrb[0].mxu0
      %v752 = vpop.f32.mrb[0].mxu0
      %v753 = vadd.f32 0.0, %v752
      %v754 = vpop.f32.mrb[0].mxu0
      %755 = vmatprep.mubr.bf16.mxu0 0
      %756 = vmatmul.mubr.bf16.gmra.mrb[0].mxu0 %v652
      %v757 = vpop.f32.mrb[0].mxu0
      %v758 = vadd.f32 0.0, %v757
      %v759 = vpop.f32.mrb[0].mxu0
      %v760 = vpop.f32.mrb[0].mxu0
      %v761 = vadd.f32 0.0, %v760
      %v762 = vpop.f32.mrb[0].mxu0
      %763 = vmatprep.mubr.bf16.mxu0 0
      %764 = vmatmul.mubr.bf16.gmra.mrb[0].mxu0 %v653
      %v765 = vpop.f32.mrb[0].mxu0
      %v766 = vadd.f32 0.0, %v765
      %v767 = vpop.f32.mrb[0].mxu0
      %v768 = vpop.f32.mrb[0].mxu0
      %v769 = vadd.f32 0.0, %v768
      %v770 = vpop.f32.mrb[0].mxu0
      %771 = vmatprep.mubr.bf16.mxu0 0
      %772 = vmatmul.mubr.bf16.gmra.mrb[0].mxu0 %v654
      %v773 = vpop.f32.mrb[0].mxu0
      %v774 = vadd.f32 0.0, %v773
      %v775 = vpop.f32.mrb[0].mxu0
      %v776 = vpop.f32.mrb[0].mxu0
      %v777 = vadd.f32 0.0, %v776
      %v778 = vpop.f32.mrb[0].mxu0
      %779 = vmatprep.mubr.bf16.mxu0 0
      %780 = vmatmul.mubr.bf16.gmra.mrb[0].mxu0 %v655
      %v781 = vpop.f32.mrb[0].mxu0
      %v782 = vadd.f32 0.0, %v781
      %v783 = vpop.f32.mrb[0].mxu0
      %v784 = vpop.f32.mrb[0].mxu0
      %v785 = vadd.f32 0.0, %v784
      %v786 = vpop.f32.mrb[0].mxu0
      %787 = vmatprep.mubr.bf16.mxu0 0
      %788 = vmatmul.mubr.bf16.gmra.mrb[0].mxu0 %v656
      %v789 = vpop.f32.mrb[0].mxu0
      %v790 = vadd.f32 0.0, %v789
      %v791 = vpop.f32.mrb[0].mxu0
      %v792 = vpop.f32.mrb[0].mxu0
      %v793 = vadd.f32 0.0, %v792
      %v794 = vpop.f32.mrb[0].mxu0
      %795 = vmatprep.mubr.bf16.mxu0 0
      %796 = vmatmul.mubr.bf16.gmra.mrb[0].mxu0 %v657
      %v797 = vpop.f32.mrb[0].mxu0
      %v798 = vadd.f32 0.0, %v797
      %v799 = vpop.f32.mrb[0].mxu0
      %v800 = vpop.f32.mrb[0].mxu0
      %v801 = vadd.f32 0.0, %v800
      %v802 = vpop.f32.mrb[0].mxu0
      %803 = vmatprep.mubr.bf16.mxu0 0
      %804 = vmatmul.mubr.bf16.gmra.mrb[0].mxu0 %v658
      %v805 = vpop.f32.mrb[0].mxu0
      %v806 = vadd.f32 0.0, %v805
      %v807 = vpop.f32.mrb[0].mxu0
      %v808 = vpop.f32.mrb[0].mxu0
      %v809 = vadd.f32 0.0, %v808
      %v810 = vpop.f32.mrb[0].mxu0
      %811 = vmatprep.mubr.bf16.mxu0 0
      %812 = vmatmul.mubr.bf16.gmra.mrb[0].mxu0 %v659
      %v813 = vpop.f32.mrb[0].mxu0
      %v814 = vadd.f32 0.0, %v813
      %v815 = vpop.f32.mrb[0].mxu0
      %v816 = vpop.f32.mrb[0].mxu0
      %v817 = vadd.f32 0.0, %v816
      %v818 = vpop.f32.mrb[0].mxu0
      %819 = vmatprep.mubr.bf16.mxu0 0
      %820 = vmatmul.mubr.bf16.gmra.mrb[0].mxu0 %v660
      %v821 = vpop.f32.mrb[0].mxu0
      %v822 = vadd.f32 0.0, %v821
      %v823 = vpop.f32.mrb[0].mxu0
      %v824 = vpop.f32.mrb[0].mxu0
      %v825 = vadd.f32 0.0, %v824
      %v826 = vpop.f32.mrb[0].mxu0
      %827 = vmatprep.mubr.bf16.mxu0 0
      %828 = vmatmul.mubr.bf16.gmra.mrb[0].mxu0 %v661
      %v829 = vpop.f32.mrb[0].mxu0
      %v830 = vadd.f32 0.0, %v829
      %v831 = vpop.f32.mrb[0].mxu0
      %v832 = vpop.f32.mrb[0].mxu0
      %v833 = vadd.f32 0.0, %v832
      %v834 = vpop.f32.mrb[0].mxu0
      %835 = vmatprep.mubr.bf16.mxu0 0
      %836 = vmatmul.mubr.bf16.gmra.mrb[0].mxu0 %v662
      %v837 = vpop.f32.mrb[0].mxu0
      %v838 = vadd.f32 0.0, %v837
      %v839 = vpop.f32.mrb[0].mxu0
      %v840 = vpop.f32.mrb[0].mxu0
      %v841 = vadd.f32 0.0, %v840
      %v842 = vpop.f32.mrb[0].mxu0
      %843 = vmatprep.mubr.bf16.mxu0 0
      %844 = vmatmul.mubr.bf16.gmra.mrb[0].mxu0 %v663
      %v845 = vpop.f32.mrb[0].mxu0
      %v846 = vadd.f32 0.0, %v845
      %v847 = vpop.f32.mrb[0].mxu0
      %v848 = vpop.f32.mrb[0].mxu0
      %v849 = vadd.f32 0.0, %v848
      %v850 = vpop.f32.mrb[0].mxu0
      %851 = vmatprep.mubr.bf16.mxu0 0
      %852 = vmatmul.mubr.bf16.gmra.mrb[0].mxu0 %v664
      %v853 = vpop.f32.mrb[0].mxu0
      %v854 = vadd.f32 0.0, %v853
      %v855 = vpop.f32.mrb[0].mxu0
      %v856 = vpop.f32.mrb[0].mxu0
      %v857 = vadd.f32 0.0, %v856
      %v858 = vpop.f32.mrb[0].mxu0
      %859 = vmatprep.mubr.bf16.mxu0 0
      %860 = vmatmul.mubr.bf16.gmra.mrb[0].mxu0 %v665
      %v861 = vpop.f32.mrb[0].mxu0
      %v862 = vadd.f32 0.0, %v861
      %v863 = vpop.f32.mrb[0].mxu0
      %v864 = vpop.f32.mrb[0].mxu0
      %v865 = vadd.f32 0.0, %v864
      %v866 = vpop.f32.mrb[0].mxu0
      %867 = vmatprep.mubr.bf16.mxu0 0
      %868 = vmatmul.mubr.bf16.gmra.mrb[0].mxu0 %v666
      %v869 = vpop.f32.mrb[0].mxu0
      %v870 = vadd.f32 0.0, %v869
      %v871 = vpop.f32.mrb[0].mxu0
      %v872 = vpop.f32.mrb[0].mxu0
      %v873 = vadd.f32 0.0, %v872
      %v874 = vpop.f32.mrb[0].mxu0
      %875 = vdwg.mxu0
      %v892 = vunpack.c.l.b16 %v347
      %v893 = vunpack.c.l.b16 %v349
      %v894 = vunpack.c.l.b16 %v351
      %v895 = vunpack.c.l.b16 %v353
      %v896 = vunpack.c.l.b16 %v355
      %v897 = vunpack.c.l.b16 %v357
      %v898 = vunpack.c.l.b16 %v359
      %v899 = vunpack.c.l.b16 %v361
      %v900 = vunpack.c.l.b16 %v363
      %v901 = vunpack.c.l.b16 %v365
      %v902 = vunpack.c.l.b16 %v367
      %v903 = vunpack.c.l.b16 %v369
      %v904 = vunpack.c.l.b16 %v371
      %v905 = vunpack.c.l.b16 %v373
      %v906 = vunpack.c.l.b16 %v375
      %v907 = vunpack.c.l.b16 %v377
      %v908 = vpack.c.b16 %v893, %v892
      %v909 = vpack.c.b16 %v895, %v894
      %v910 = vpack.c.b16 %v897, %v896
      %v911 = vpack.c.b16 %v899, %v898
      %v912 = vpack.c.b16 %v901, %v900
      %v913 = vpack.c.b16 %v903, %v902
      %v914 = vpack.c.b16 %v905, %v904
      %v915 = vpack.c.b16 %v907, %v906
      %924 = vmatprep.subr.bf16.mxu0 0
      %925 = vmatpush1.bf16.msra.mxu0 %v908
      %926 = vmatprep.subr.bf16.mxu0 0
      %927 = vmatpush1.bf16.msra.mxu0 %v909
      %928 = vmatprep.subr.bf16.mxu0 0
      %929 = vmatpush1.bf16.msra.mxu0 %v910
      %930 = vmatprep.subr.bf16.mxu0 0
      %931 = vmatpush1.bf16.msra.mxu0 %v911
      %932 = vmatprep.subr.bf16.mxu0 0
      %933 = vmatpush1.bf16.msra.mxu0 %v912
      %934 = vmatprep.subr.bf16.mxu0 0
      %935 = vmatpush1.bf16.msra.mxu0 %v913
      %936 = vmatprep.subr.bf16.mxu0 0
      %937 = vmatpush1.bf16.msra.mxu0 %v914
      %938 = vmatprep.subr.bf16.mxu0 0
      %939 = vmatpush1.bf16.msra.mxu0 %v915
      %940 = vmatprep.subr.bf16.mxu0 0
      %941 = vmatpush1.bf16.msra.mxu0 0
      %942 = vmatprep.subr.bf16.mxu0 0
      %943 = vmatpush1.bf16.msra.mxu0 0
      %944 = vmatprep.subr.bf16.mxu0 0
      %945 = vmatpush1.bf16.msra.mxu0 0
      %946 = vmatprep.subr.bf16.mxu0 0
      %947 = vmatpush1.bf16.msra.mxu0 0
      %948 = vmatprep.subr.bf16.mxu0 0
      %949 = vmatpush1.bf16.msra.mxu0 0
      %950 = vmatprep.subr.bf16.mxu0 0
      %951 = vmatpush1.bf16.msra.mxu0 0
      %952 = vmatprep.subr.bf16.mxu0 0
      %953 = vmatpush1.bf16.msra.mxu0 0
      %954 = vmatprep.subr.bf16.mxu0 0
      %955 = vmatpush1.bf16.msra.mxu0 0
      %956 = vmatprep.mubr.bf16.mxu0 0
      %957 = vmatmul.mubr.bf16.gmra.mrb[0].mxu0 %v651
      %v958 = vpop.f32.mrb[0].mxu0
      %v959 = vadd.f32 0.0, %v958
      %v960 = vpop.f32.mrb[0].mxu0
      %v961 = vpop.f32.mrb[0].mxu0
      %v962 = vadd.f32 0.0, %v961
      %v963 = vpop.f32.mrb[0].mxu0
      %964 = vmatprep.mubr.bf16.mxu0 0
      %965 = vmatmul.mubr.bf16.gmra.mrb[0].mxu0 %v652
      %v966 = vpop.f32.mrb[0].mxu0
      %v967 = vadd.f32 0.0, %v966
      %v968 = vpop.f32.mrb[0].mxu0
      %v969 = vpop.f32.mrb[0].mxu0
      %v970 = vadd.f32 0.0, %v969
      %v971 = vpop.f32.mrb[0].mxu0
      %972 = vmatprep.mubr.bf16.mxu0 0
      %973 = vmatmul.mubr.bf16.gmra.mrb[0].mxu0 %v653
      %v974 = vpop.f32.mrb[0].mxu0
      %v975 = vadd.f32 0.0, %v974
      %v976 = vpop.f32.mrb[0].mxu0
      %v977 = vpop.f32.mrb[0].mxu0
      %v978 = vadd.f32 0.0, %v977
      %v979 = vpop.f32.mrb[0].mxu0
      %980 = vmatprep.mubr.bf16.mxu0 0
      %981 = vmatmul.mubr.bf16.gmra.mrb[0].mxu0 %v654
      %v982 = vpop.f32.mrb[0].mxu0
      %v983 = vadd.f32 0.0, %v982
      %v984 = vpop.f32.mrb[0].mxu0
      %v985 = vpop.f32.mrb[0].mxu0
      %v986 = vadd.f32 0.0, %v985
      %v987 = vpop.f32.mrb[0].mxu0
      %988 = vmatprep.mubr.bf16.mxu0 0
      %989 = vmatmul.mubr.bf16.gmra.mrb[0].mxu0 %v655
      %v990 = vpop.f32.mrb[0].mxu0
      %v991 = vadd.f32 0.0, %v990
      %v992 = vpop.f32.mrb[0].mxu0
      %v993 = vpop.f32.mrb[0].mxu0
      %v994 = vadd.f32 0.0, %v993
      %v995 = vpop.f32.mrb[0].mxu0
      %996 = vmatprep.mubr.bf16.mxu0 0
      %997 = vmatmul.mubr.bf16.gmra.mrb[0].mxu0 %v656
      %v998 = vpop.f32.mrb[0].mxu0
      %v999 = vadd.f32 0.0, %v998
      %v1000 = vpop.f32.mrb[0].mxu0
      %v1001 = vpop.f32.mrb[0].mxu0
      %v1002 = vadd.f32 0.0, %v1001
      %v1003 = vpop.f32.mrb[0].mxu0
      %1004 = vmatprep.mubr.bf16.mxu0 0
      %1005 = vmatmul.mubr.bf16.gmra.mrb[0].mxu0 %v657
      %v1006 = vpop.f32.mrb[0].mxu0
      %v1007 = vadd.f32 0.0, %v1006
      %v1008 = vpop.f32.mrb[0].mxu0
      %v1009 = vpop.f32.mrb[0].mxu0
      %v1010 = vadd.f32 0.0, %v1009
      %v1011 = vpop.f32.mrb[0].mxu0
      %1012 = vmatprep.mubr.bf16.mxu0 0
      %1013 = vmatmul.mubr.bf16.gmra.mrb[0].mxu0 %v658
      %v1014 = vpop.f32.mrb[0].mxu0
      %v1015 = vadd.f32 0.0, %v1014
      %v1016 = vpop.f32.mrb[0].mxu0
      %v1017 = vpop.f32.mrb[0].mxu0
      %v1018 = vadd.f32 0.0, %v1017
      %v1019 = vpop.f32.mrb[0].mxu0
      %1020 = vmatprep.mubr.bf16.mxu0 0
      %1021 = vmatmul.mubr.bf16.gmra.mrb[0].mxu0 %v659
      %v1022 = vpop.f32.mrb[0].mxu0
      %v1023 = vadd.f32 0.0, %v1022
      %v1024 = vpop.f32.mrb[0].mxu0
      %v1025 = vpop.f32.mrb[0].mxu0
      %v1026 = vadd.f32 0.0, %v1025
      %v1027 = vpop.f32.mrb[0].mxu0
      %1028 = vmatprep.mubr.bf16.mxu0 0
      %1029 = vmatmul.mubr.bf16.gmra.mrb[0].mxu0 %v660
      %v1030 = vpop.f32.mrb[0].mxu0
      %v1031 = vadd.f32 0.0, %v1030
      %v1032 = vpop.f32.mrb[0].mxu0
      %v1033 = vpop.f32.mrb[0].mxu0
      %v1034 = vadd.f32 0.0, %v1033
      %v1035 = vpop.f32.mrb[0].mxu0
      %1036 = vmatprep.mubr.bf16.mxu0 0
      %1037 = vmatmul.mubr.bf16.gmra.mrb[0].mxu0 %v661
      %v1038 = vpop.f32.mrb[0].mxu0
      %v1039 = vadd.f32 0.0, %v1038
      %v1040 = vpop.f32.mrb[0].mxu0
      %v1041 = vpop.f32.mrb[0].mxu0
      %v1042 = vadd.f32 0.0, %v1041
      %v1043 = vpop.f32.mrb[0].mxu0
      %1044 = vmatprep.mubr.bf16.mxu0 0
      %1045 = vmatmul.mubr.bf16.gmra.mrb[0].mxu0 %v662
      %v1046 = vpop.f32.mrb[0].mxu0
      %v1047 = vadd.f32 0.0, %v1046
      %v1048 = vpop.f32.mrb[0].mxu0
      %v1049 = vpop.f32.mrb[0].mxu0
      %v1050 = vadd.f32 0.0, %v1049
      %v1051 = vpop.f32.mrb[0].mxu0
      %1052 = vmatprep.mubr.bf16.mxu0 0
      %1053 = vmatmul.mubr.bf16.gmra.mrb[0].mxu0 %v663
      %v1054 = vpop.f32.mrb[0].mxu0
      %v1055 = vadd.f32 0.0, %v1054
      %v1056 = vpop.f32.mrb[0].mxu0
      %v1057 = vpop.f32.mrb[0].mxu0
      %v1058 = vadd.f32 0.0, %v1057
      %v1059 = vpop.f32.mrb[0].mxu0
      %1060 = vmatprep.mubr.bf16.mxu0 0
      %1061 = vmatmul.mubr.bf16.gmra.mrb[0].mxu0 %v664
      %v1062 = vpop.f32.mrb[0].mxu0
      %v1063 = vadd.f32 0.0, %v1062
      %v1064 = vpop.f32.mrb[0].mxu0
      %v1065 = vpop.f32.mrb[0].mxu0
      %v1066 = vadd.f32 0.0, %v1065
      %v1067 = vpop.f32.mrb[0].mxu0
      %1068 = vmatprep.mubr.bf16.mxu0 0
      %1069 = vmatmul.mubr.bf16.gmra.mrb[0].mxu0 %v665
      %v1070 = vpop.f32.mrb[0].mxu0
      %v1071 = vadd.f32 0.0, %v1070
      %v1072 = vpop.f32.mrb[0].mxu0
      %v1073 = vpop.f32.mrb[0].mxu0
      %v1074 = vadd.f32 0.0, %v1073
      %v1075 = vpop.f32.mrb[0].mxu0
      %1076 = vmatprep.mubr.bf16.mxu0 0
      %1077 = vmatmul.mubr.bf16.gmra.mrb[0].mxu0 %v666
      %v1078 = vpop.f32.mrb[0].mxu0
      %v1079 = vadd.f32 0.0, %v1078
      %v1080 = vpop.f32.mrb[0].mxu0
      %v1081 = vpop.f32.mrb[0].mxu0
      %v1082 = vadd.f32 0.0, %v1081
      %v1083 = vpop.f32.mrb[0].mxu0
      %1084 = vdwg.mxu0
      %vm1085 = vcmask 261120
      %v1087 = vsel %vm1085, %v571, 0
      %v1090 = vsel %vm1085, %v572, 0
      %v1093 = vsel %vm1085, %v573, 0
      %v1096 = vsel %vm1085, %v574, 0
      %v1099 = vsel %vm1085, %v575, 0
      %v1102 = vsel %vm1085, %v576, 0
      %v1105 = vsel %vm1085, %v577, 0
      %v1108 = vsel %vm1085, %v578, 0
      %v1111 = vsel %vm1085, %v579, 0
      %v1114 = vsel %vm1085, %v580, 0
      %v1117 = vsel %vm1085, %v581, 0
      %v1120 = vsel %vm1085, %v582, 0
      %v1123 = vsel %vm1085, %v583, 0
      %v1126 = vsel %vm1085, %v584, 0
      %v1129 = vsel %vm1085, %v585, 0
      %v1132 = vsel %vm1085, %v586, 0
      %v1135 = vsel %vm1085, %v750, 0
      %v1138 = vsel %vm1085, %v753, 0
      %v1141 = vsel %vm1085, %v758, 0
      %v1144 = vsel %vm1085, %v761, 0
      %v1147 = vsel %vm1085, %v766, 0
      %v1150 = vsel %vm1085, %v769, 0
      %v1153 = vsel %vm1085, %v774, 0
      %v1156 = vsel %vm1085, %v777, 0
      %v1159 = vsel %vm1085, %v782, 0
      %v1162 = vsel %vm1085, %v785, 0
      %v1165 = vsel %vm1085, %v790, 0
      %v1168 = vsel %vm1085, %v793, 0
      %v1171 = vsel %vm1085, %v798, 0
      %v1174 = vsel %vm1085, %v801, 0
      %v1177 = vsel %vm1085, %v806, 0
      %v1180 = vsel %vm1085, %v809, 0
      %v1183 = vsel %vm1085, %v814, 0
      %v1186 = vsel %vm1085, %v817, 0
      %v1189 = vsel %vm1085, %v822, 0
      %v1192 = vsel %vm1085, %v825, 0
      %v1195 = vsel %vm1085, %v830, 0
      %v1198 = vsel %vm1085, %v833, 0
      %v1201 = vsel %vm1085, %v838, 0
      %v1204 = vsel %vm1085, %v841, 0
      %v1207 = vsel %vm1085, %v846, 0
      %v1210 = vsel %vm1085, %v849, 0
      %v1213 = vsel %vm1085, %v854, 0
      %v1216 = vsel %vm1085, %v857, 0
      %v1219 = vsel %vm1085, %v862, 0
      %v1222 = vsel %vm1085, %v865, 0
      %v1225 = vsel %vm1085, %v870, 0
      %v1228 = vsel %vm1085, %v873, 0
      %1230 = vmatprep.subr.mxu0 0.0
      %1231 = vmatpush1.xpose.msra.mxu0 %v1135
      %1232 = vmatprep.subr.mxu0 0.0
      %1233 = vmatpush1.xpose.msra.mxu0 %v1138
      %1234 = vmatprep.subr.mxu0 0.0
      %1235 = vmatpush1.xpose.msra.mxu0 %v1141
      %1236 = vmatprep.subr.mxu0 0.0
      %1237 = vmatpush1.xpose.msra.mxu0 %v1144
      %1238 = vmatprep.subr.mxu0 0.0
      %1239 = vmatpush1.xpose.msra.mxu0 %v1147
      %1240 = vmatprep.subr.mxu0 0.0
      %1241 = vmatpush1.xpose.msra.mxu0 %v1150
      %1242 = vmatprep.subr.mxu0 0.0
      %1243 = vmatpush1.xpose.msra.mxu0 %v1153
      %1244 = vmatprep.subr.mxu0 0.0
      %1245 = vmatpush1.xpose.msra.mxu0 %v1156
      %1246 = vmatprep.subr.mxu0 0.0
      %1247 = vmatpush1.xpose.msra.mxu0 %v1159
      %1248 = vmatprep.subr.mxu0 0.0
      %1249 = vmatpush1.xpose.msra.mxu0 %v1162
      %1250 = vmatprep.subr.mxu0 0.0
      %1251 = vmatpush1.xpose.msra.mxu0 %v1165
      %1252 = vmatprep.subr.mxu0 0.0
      %1253 = vmatpush1.xpose.msra.mxu0 %v1168
      %1254 = vmatprep.subr.mxu0 0.0
      %1255 = vmatpush1.xpose.msra.mxu0 %v1171
      %1256 = vmatprep.subr.mxu0 0.0
      %1257 = vmatpush1.xpose.msra.mxu0 %v1174
      %1258 = vmatprep.subr.mxu0 0.0
      %1259 = vmatpush1.xpose.msra.mxu0 %v1177
      %1260 = vmatprep.subr.mxu0 0.0
      %1261 = vmatpush1.xpose.msra.mxu0 %v1180
      %1262 = vmatprep.subr.mxu0 0.0
      %1263 = vmatpush1.xpose.msra.mxu0 %v1183
      %1264 = vmatprep.subr.mxu0 0.0
      %1265 = vmatpush1.xpose.msra.mxu0 %v1186
      %1266 = vmatprep.subr.mxu0 0.0
      %1267 = vmatpush1.xpose.msra.mxu0 %v1189
      %1268 = vmatprep.subr.mxu0 0.0
      %1269 = vmatpush1.xpose.msra.mxu0 %v1192
      %1270 = vmatprep.subr.mxu0 0.0
      %1271 = vmatpush1.xpose.msra.mxu0 %v1195
      %1272 = vmatprep.subr.mxu0 0.0
      %1273 = vmatpush1.xpose.msra.mxu0 %v1198
      %1274 = vmatprep.subr.mxu0 0.0
      %1275 = vmatpush1.xpose.msra.mxu0 %v1201
      %1276 = vmatprep.subr.mxu0 0.0
      %1277 = vmatpush1.xpose.msra.mxu0 %v1204
      %1278 = vmatprep.subr.mxu0 0.0
      %1279 = vmatpush1.xpose.msra.mxu0 %v1207
      %1280 = vmatprep.subr.mxu0 0.0
      %1281 = vmatpush1.xpose.msra.mxu0 %v1210
      %1282 = vmatprep.subr.mxu0 0.0
      %1283 = vmatpush1.xpose.msra.mxu0 %v1213
      %1284 = vmatprep.subr.mxu0 0.0
      %1285 = vmatpush1.xpose.msra.mxu0 %v1216
      %1286 = vmatprep.subr.mxu0 0.0
      %1287 = vmatpush1.xpose.msra.mxu0 %v1219
      %1288 = vmatprep.subr.mxu0 0.0
      %1289 = vmatpush1.xpose.msra.mxu0 %v1222
      %1290 = vmatprep.subr.mxu0 0.0
      %1291 = vmatpush1.xpose.msra.mxu0 %v1225
      %1292 = vmatprep.subr.mxu0 0.0
      %1293 = vmatpush1.xpose.msra.mxu0 %v1228
      %1294 = vmatprep.mubr.f32.mxu0 0.0
      %1295 = vmatmul.mubr.f32.gmra.mrb[0].mxu0 %v1087
      %v1296 = vpop.f32.mrb[0].mxu0
      %v1297 = vadd.f32 0.0, %v1296
      %v1298 = vpop.f32.mrb[0].mxu0
      %v1299 = vadd.f32 0.0, %v1298
      %1300 = vmatprep.mubr.f32.mxu0 0.0
      %1301 = vmatmul.mubr.f32.gmra.mrb[0].mxu0 %v1090
      %v1302 = vpop.f32.mrb[0].mxu0
      %v1303 = vadd.f32 0.0, %v1302
      %v1304 = vpop.f32.mrb[0].mxu0
      %v1305 = vadd.f32 0.0, %v1304
      %1306 = vmatprep.mubr.f32.mxu0 0.0
      %1307 = vmatmul.mubr.f32.gmra.mrb[0].mxu0 %v1093
      %v1308 = vpop.f32.mrb[0].mxu0
      %v1309 = vadd.f32 0.0, %v1308
      %v1310 = vpop.f32.mrb[0].mxu0
      %v1311 = vadd.f32 0.0, %v1310
      %1312 = vmatprep.mubr.f32.mxu0 0.0
      %1313 = vmatmul.mubr.f32.gmra.mrb[0].mxu0 %v1096
      %v1314 = vpop.f32.mrb[0].mxu0
      %v1315 = vadd.f32 0.0, %v1314
      %v1316 = vpop.f32.mrb[0].mxu0
      %v1317 = vadd.f32 0.0, %v1316
      %1318 = vmatprep.mubr.f32.mxu0 0.0
      %1319 = vmatmul.mubr.f32.gmra.mrb[0].mxu0 %v1099
      %v1320 = vpop.f32.mrb[0].mxu0
      %v1321 = vadd.f32 0.0, %v1320
      %v1322 = vpop.f32.mrb[0].mxu0
      %v1323 = vadd.f32 0.0, %v1322
      %1324 = vmatprep.mubr.f32.mxu0 0.0
      %1325 = vmatmul.mubr.f32.gmra.mrb[0].mxu0 %v1102
      %v1326 = vpop.f32.mrb[0].mxu0
      %v1327 = vadd.f32 0.0, %v1326
      %v1328 = vpop.f32.mrb[0].mxu0
      %v1329 = vadd.f32 0.0, %v1328
      %1330 = vmatprep.mubr.f32.mxu0 0.0
      %1331 = vmatmul.mubr.f32.gmra.mrb[0].mxu0 %v1105
      %v1332 = vpop.f32.mrb[0].mxu0
      %v1333 = vadd.f32 0.0, %v1332
      %v1334 = vpop.f32.mrb[0].mxu0
      %v1335 = vadd.f32 0.0, %v1334
      %1336 = vmatprep.mubr.f32.mxu0 0.0
      %1337 = vmatmul.mubr.f32.gmra.mrb[0].mxu0 %v1108
      %v1338 = vpop.f32.mrb[0].mxu0
      %v1339 = vadd.f32 0.0, %v1338
      %v1340 = vpop.f32.mrb[0].mxu0
      %v1341 = vadd.f32 0.0, %v1340
      %1342 = vmatprep.mubr.f32.mxu0 0.0
      %1343 = vmatmul.mubr.f32.gmra.mrb[0].mxu0 %v1111
      %v1344 = vpop.f32.mrb[0].mxu0
      %v1345 = vadd.f32 0.0, %v1344
      %v1346 = vpop.f32.mrb[0].mxu0
      %v1347 = vadd.f32 0.0, %v1346
      %1348 = vmatprep.mubr.f32.mxu0 0.0
      %1349 = vmatmul.mubr.f32.gmra.mrb[0].mxu0 %v1114
      %v1350 = vpop.f32.mrb[0].mxu0
      %v1351 = vadd.f32 0.0, %v1350
      %v1352 = vpop.f32.mrb[0].mxu0
      %v1353 = vadd.f32 0.0, %v1352
      %1354 = vmatprep.mubr.f32.mxu0 0.0
      %1355 = vmatmul.mubr.f32.gmra.mrb[0].mxu0 %v1117
      %v1356 = vpop.f32.mrb[0].mxu0
      %v1357 = vadd.f32 0.0, %v1356
      %v1358 = vpop.f32.mrb[0].mxu0
      %v1359 = vadd.f32 0.0, %v1358
      %1360 = vmatprep.mubr.f32.mxu0 0.0
      %1361 = vmatmul.mubr.f32.gmra.mrb[0].mxu0 %v1120
      %v1362 = vpop.f32.mrb[0].mxu0
      %v1363 = vadd.f32 0.0, %v1362
      %v1364 = vpop.f32.mrb[0].mxu0
      %v1365 = vadd.f32 0.0, %v1364
      %1366 = vmatprep.mubr.f32.mxu0 0.0
      %1367 = vmatmul.mubr.f32.gmra.mrb[0].mxu0 %v1123
      %v1368 = vpop.f32.mrb[0].mxu0
      %v1369 = vadd.f32 0.0, %v1368
      %v1370 = vpop.f32.mrb[0].mxu0
      %v1371 = vadd.f32 0.0, %v1370
      %1372 = vmatprep.mubr.f32.mxu0 0.0
      %1373 = vmatmul.mubr.f32.gmra.mrb[0].mxu0 %v1126
      %v1374 = vpop.f32.mrb[0].mxu0
      %v1375 = vadd.f32 0.0, %v1374
      %v1376 = vpop.f32.mrb[0].mxu0
      %v1377 = vadd.f32 0.0, %v1376
      %1378 = vmatprep.mubr.f32.mxu0 0.0
      %1379 = vmatmul.mubr.f32.gmra.mrb[0].mxu0 %v1129
      %v1380 = vpop.f32.mrb[0].mxu0
      %v1381 = vadd.f32 0.0, %v1380
      %v1382 = vpop.f32.mrb[0].mxu0
      %v1383 = vadd.f32 0.0, %v1382
      %1384 = vmatprep.mubr.f32.mxu0 0.0
      %1385 = vmatmul.mubr.f32.gmra.mrb[0].mxu0 %v1132
      %v1386 = vpop.f32.mrb[0].mxu0
      %v1387 = vadd.f32 0.0, %v1386
      %v1388 = vpop.f32.mrb[0].mxu0
      %v1389 = vadd.f32 0.0, %v1388
      %1390 = vdwg.mxu0
      %v1391 = vmax.f32 %v1297, %v1299
      %1392 = vmax.xlane.f32.xlu0 %v1391
      %v1393 = vpop.xlane.xlu0 %1392
      %v1394 = vmax.f32 %v1303, %v1305
      %1395 = vmax.xlane.f32.xlu0 %v1394
      %v1396 = vpop.xlane.xlu0 %1395
      %v1397 = vmax.f32 %v1309, %v1311
      %1398 = vmax.xlane.f32.xlu0 %v1397
      %v1399 = vpop.xlane.xlu0 %1398
      %v1400 = vmax.f32 %v1315, %v1317
      %1401 = vmax.xlane.f32.xlu0 %v1400
      %v1402 = vpop.xlane.xlu0 %1401
      %v1403 = vmax.f32 %v1321, %v1323
      %1404 = vmax.xlane.f32.xlu0 %v1403
      %v1405 = vpop.xlane.xlu0 %1404
      %v1406 = vmax.f32 %v1327, %v1329
      %1407 = vmax.xlane.f32.xlu0 %v1406
      %v1408 = vpop.xlane.xlu0 %1407
      %v1409 = vmax.f32 %v1333, %v1335
      %1410 = vmax.xlane.f32.xlu0 %v1409
      %v1411 = vpop.xlane.xlu0 %1410
      %v1412 = vmax.f32 %v1339, %v1341
      %1413 = vmax.xlane.f32.xlu0 %v1412
      %v1414 = vpop.xlane.xlu0 %1413
      %v1415 = vmax.f32 %v1345, %v1347
      %1416 = vmax.xlane.f32.xlu0 %v1415
      %v1417 = vpop.xlane.xlu0 %1416
      %v1418 = vmax.f32 %v1351, %v1353
      %1419 = vmax.xlane.f32.xlu0 %v1418
      %v1420 = vpop.xlane.xlu0 %1419
      %v1421 = vmax.f32 %v1357, %v1359
      %1422 = vmax.xlane.f32.xlu0 %v1421
      %v1423 = vpop.xlane.xlu0 %1422
      %v1424 = vmax.f32 %v1363, %v1365
      %1425 = vmax.xlane.f32.xlu0 %v1424
      %v1426 = vpop.xlane.xlu0 %1425
      %v1427 = vmax.f32 %v1369, %v1371
      %1428 = vmax.xlane.f32.xlu0 %v1427
      %v1429 = vpop.xlane.xlu0 %1428
      %v1430 = vmax.f32 %v1375, %v1377
      %1431 = vmax.xlane.f32.xlu0 %v1430
      %v1432 = vpop.xlane.xlu0 %1431
      %v1433 = vmax.f32 %v1381, %v1383
      %1434 = vmax.xlane.f32.xlu0 %v1433
      %v1435 = vpop.xlane.xlu0 %1434
      %v1436 = vmax.f32 %v1387, %v1389
      %1437 = vmax.xlane.f32.xlu0 %v1436
      %v1438 = vpop.xlane.xlu0 %1437
      %v1439 = vsub.f32 %v1297, %v1393
      %v1440 = vsub.f32 %v1299, %v1393
      %v1441 = vsub.f32 %v1303, %v1396
      %v1442 = vsub.f32 %v1305, %v1396
      %v1443 = vsub.f32 %v1309, %v1399
      %v1444 = vsub.f32 %v1311, %v1399
      %v1445 = vsub.f32 %v1315, %v1402
      %v1446 = vsub.f32 %v1317, %v1402
      %v1447 = vsub.f32 %v1321, %v1405
      %v1448 = vsub.f32 %v1323, %v1405
      %v1449 = vsub.f32 %v1327, %v1408
      %v1450 = vsub.f32 %v1329, %v1408
      %v1451 = vsub.f32 %v1333, %v1411
      %v1452 = vsub.f32 %v1335, %v1411
      %v1453 = vsub.f32 %v1339, %v1414
      %v1454 = vsub.f32 %v1341, %v1414
      %v1455 = vsub.f32 %v1345, %v1417
      %v1456 = vsub.f32 %v1347, %v1417
      %v1457 = vsub.f32 %v1351, %v1420
      %v1458 = vsub.f32 %v1353, %v1420
      %v1459 = vsub.f32 %v1357, %v1423
      %v1460 = vsub.f32 %v1359, %v1423
      %v1461 = vsub.f32 %v1363, %v1426
      %v1462 = vsub.f32 %v1365, %v1426
      %v1463 = vsub.f32 %v1369, %v1429
      %v1464 = vsub.f32 %v1371, %v1429
      %v1465 = vsub.f32 %v1375, %v1432
      %v1466 = vsub.f32 %v1377, %v1432
      %v1467 = vsub.f32 %v1381, %v1435
      %v1468 = vsub.f32 %v1383, %v1435
      %v1469 = vsub.f32 %v1387, %v1438
      %v1470 = vsub.f32 %v1389, %v1438
      %v1471 = vmul.f32 %v1439, 1.442695
      %v1472 = vpow.pop %v1471
      %v1473 = vmul.f32 %v1440, 1.442695
      %v1474 = vpow.pop %v1473
      %v1475 = vmul.f32 %v1441, 1.442695
      %v1476 = vpow.pop %v1475
      %v1477 = vmul.f32 %v1442, 1.442695
      %v1478 = vpow.pop %v1477
      %v1479 = vmul.f32 %v1443, 1.442695
      %v1480 = vpow.pop %v1479
      %v1481 = vmul.f32 %v1444, 1.442695
      %v1482 = vpow.pop %v1481
      %v1483 = vmul.f32 %v1445, 1.442695
      %v1484 = vpow.pop %v1483
      %v1485 = vmul.f32 %v1446, 1.442695
      %v1486 = vpow.pop %v1485
      %v1487 = vmul.f32 %v1447, 1.442695
      %v1488 = vpow.pop %v1487
      %v1489 = vmul.f32 %v1448, 1.442695
      %v1490 = vpow.pop %v1489
      %v1491 = vmul.f32 %v1449, 1.442695
      %v1492 = vpow.pop %v1491
      %v1493 = vmul.f32 %v1450, 1.442695
      %v1494 = vpow.pop %v1493
      %v1495 = vmul.f32 %v1451, 1.442695
      %v1496 = vpow.pop %v1495
      %v1497 = vmul.f32 %v1452, 1.442695
      %v1498 = vpow.pop %v1497
      %v1499 = vmul.f32 %v1453, 1.442695
      %v1500 = vpow.pop %v1499
      %v1501 = vmul.f32 %v1454, 1.442695
      %v1502 = vpow.pop %v1501
      %v1503 = vmul.f32 %v1455, 1.442695
      %v1504 = vpow.pop %v1503
      %v1505 = vmul.f32 %v1456, 1.442695
      %v1506 = vpow.pop %v1505
      %v1507 = vmul.f32 %v1457, 1.442695
      %v1508 = vpow.pop %v1507
      %v1509 = vmul.f32 %v1458, 1.442695
      %v1510 = vpow.pop %v1509
      %v1511 = vmul.f32 %v1459, 1.442695
      %v1512 = vpow.pop %v1511
      %v1513 = vmul.f32 %v1460, 1.442695
      %v1514 = vpow.pop %v1513
      %v1515 = vmul.f32 %v1461, 1.442695
      %v1516 = vpow.pop %v1515
      %v1517 = vmul.f32 %v1462, 1.442695
      %v1518 = vpow.pop %v1517
      %v1519 = vmul.f32 %v1463, 1.442695
      %v1520 = vpow.pop %v1519
      %v1521 = vmul.f32 %v1464, 1.442695
      %v1522 = vpow.pop %v1521
      %v1523 = vmul.f32 %v1465, 1.442695
      %v1524 = vpow.pop %v1523
      %v1525 = vmul.f32 %v1466, 1.442695
      %v1526 = vpow.pop %v1525
      %v1527 = vmul.f32 %v1467, 1.442695
      %v1528 = vpow.pop %v1527
      %v1529 = vmul.f32 %v1468, 1.442695
      %v1530 = vpow.pop %v1529
      %v1531 = vmul.f32 %v1469, 1.442695
      %v1532 = vpow.pop %v1531
      %v1533 = vmul.f32 %v1470, 1.442695
      %v1534 = vpow.pop %v1533
      %v1535 = vadd.f32 %v1472, %v1474
      %1536 = vadd.xlane.f32.xlu0 %v1535
      %v1537 = vpop.xlane.xlu0 %1536
      %v1538 = vadd.f32 %v1476, %v1478
      %1539 = vadd.xlane.f32.xlu0 %v1538
      %v1540 = vpop.xlane.xlu0 %1539
      %v1541 = vadd.f32 %v1480, %v1482
      %1542 = vadd.xlane.f32.xlu0 %v1541
      %v1543 = vpop.xlane.xlu0 %1542
      %v1544 = vadd.f32 %v1484, %v1486
      %1545 = vadd.xlane.f32.xlu0 %v1544
      %v1546 = vpop.xlane.xlu0 %1545
      %v1547 = vadd.f32 %v1488, %v1490
      %1548 = vadd.xlane.f32.xlu0 %v1547
      %v1549 = vpop.xlane.xlu0 %1548
      %v1550 = vadd.f32 %v1492, %v1494
      %1551 = vadd.xlane.f32.xlu0 %v1550
      %v1552 = vpop.xlane.xlu0 %1551
      %v1553 = vadd.f32 %v1496, %v1498
      %1554 = vadd.xlane.f32.xlu0 %v1553
      %v1555 = vpop.xlane.xlu0 %1554
      %v1556 = vadd.f32 %v1500, %v1502
      %1557 = vadd.xlane.f32.xlu0 %v1556
      %v1558 = vpop.xlane.xlu0 %1557
      %v1559 = vadd.f32 %v1504, %v1506
      %1560 = vadd.xlane.f32.xlu0 %v1559
      %v1561 = vpop.xlane.xlu0 %1560
      %v1562 = vadd.f32 %v1508, %v1510
      %1563 = vadd.xlane.f32.xlu0 %v1562
      %v1564 = vpop.xlane.xlu0 %1563
      %v1565 = vadd.f32 %v1512, %v1514
      %1566 = vadd.xlane.f32.xlu0 %v1565
      %v1567 = vpop.xlane.xlu0 %1566
      %v1568 = vadd.f32 %v1516, %v1518
      %1569 = vadd.xlane.f32.xlu0 %v1568
      %v1570 = vpop.xlane.xlu0 %1569
      %v1571 = vadd.f32 %v1520, %v1522
      %1572 = vadd.xlane.f32.xlu0 %v1571
      %v1573 = vpop.xlane.xlu0 %1572
      %v1574 = vadd.f32 %v1524, %v1526
      %1575 = vadd.xlane.f32.xlu0 %v1574
      %v1576 = vpop.xlane.xlu0 %1575
      %v1577 = vadd.f32 %v1528, %v1530
      %1578 = vadd.xlane.f32.xlu0 %v1577
      %v1579 = vpop.xlane.xlu0 %1578
      %v1580 = vadd.f32 %v1532, %v1534
      %1581 = vadd.xlane.f32.xlu0 %v1580
      %v1582 = vpop.xlane.xlu0 %1581
      %v1583 = vrcp.pop %v1537
      %v1584 = vrcp.pop %v1540
      %v1585 = vrcp.pop %v1543
      %v1586 = vrcp.pop %v1546
      %v1587 = vrcp.pop %v1549
      %v1588 = vrcp.pop %v1552
      %v1589 = vrcp.pop %v1555
      %v1590 = vrcp.pop %v1558
      %v1591 = vrcp.pop %v1561
      %v1592 = vrcp.pop %v1564
      %v1593 = vrcp.pop %v1567
      %v1594 = vrcp.pop %v1570
      %v1595 = vrcp.pop %v1573
      %v1596 = vrcp.pop %v1576
      %v1597 = vrcp.pop %v1579
      %v1598 = vrcp.pop %v1582
      %v1599 = vmul.f32 %v1472, %v1583
      %v1600 = vmul.f32 %v1474, %v1583
      %v1601 = vmul.f32 %v1476, %v1584
      %v1602 = vmul.f32 %v1478, %v1584
      %v1603 = vmul.f32 %v1480, %v1585
      %v1604 = vmul.f32 %v1482, %v1585
      %v1605 = vmul.f32 %v1484, %v1586
      %v1606 = vmul.f32 %v1486, %v1586
      %v1607 = vmul.f32 %v1488, %v1587
      %v1608 = vmul.f32 %v1490, %v1587
      %v1609 = vmul.f32 %v1492, %v1588
      %v1610 = vmul.f32 %v1494, %v1588
      %v1611 = vmul.f32 %v1496, %v1589
      %v1612 = vmul.f32 %v1498, %v1589
      %v1613 = vmul.f32 %v1500, %v1590
      %v1614 = vmul.f32 %v1502, %v1590
      %v1615 = vmul.f32 %v1504, %v1591
      %v1616 = vmul.f32 %v1506, %v1591
      %v1617 = vmul.f32 %v1508, %v1592
      %v1618 = vmul.f32 %v1510, %v1592
      %v1619 = vmul.f32 %v1512, %v1593
      %v1620 = vmul.f32 %v1514, %v1593
      %v1621 = vmul.f32 %v1516, %v1594
      %v1622 = vmul.f32 %v1518, %v1594
      %v1623 = vmul.f32 %v1520, %v1595
      %v1624 = vmul.f32 %v1522, %v1595
      %v1625 = vmul.f32 %v1524, %v1596
      %v1626 = vmul.f32 %v1526, %v1596
      %v1627 = vmul.f32 %v1528, %v1597
      %v1628 = vmul.f32 %v1530, %v1597
      %v1629 = vmul.f32 %v1532, %v1598
      %v1630 = vmul.f32 %v1534, %v1598
      %1631 = vmatprep.subr.mxu0 0.0
      %1632 = vmatpush1.msra.mxu0 %v959
      %1633 = vmatprep.subr.mxu0 0.0
      %1634 = vmatpush1.msra.mxu0 %v962
      %1635 = vmatprep.subr.mxu0 0.0
      %1636 = vmatpush1.msra.mxu0 %v967
      %1637 = vmatprep.subr.mxu0 0.0
      %1638 = vmatpush1.msra.mxu0 %v970
      %1639 = vmatprep.subr.mxu0 0.0
      %1640 = vmatpush1.msra.mxu0 %v975
      %1641 = vmatprep.subr.mxu0 0.0
      %1642 = vmatpush1.msra.mxu0 %v978
      %1643 = vmatprep.subr.mxu0 0.0
      %1644 = vmatpush1.msra.mxu0 %v983
      %1645 = vmatprep.subr.mxu0 0.0
      %1646 = vmatpush1.msra.mxu0 %v986
      %1647 = vmatprep.subr.mxu0 0.0
      %1648 = vmatpush1.msra.mxu0 %v991
      %1649 = vmatprep.subr.mxu0 0.0
      %1650 = vmatpush1.msra.mxu0 %v994
      %1651 = vmatprep.subr.mxu0 0.0
      %1652 = vmatpush1.msra.mxu0 %v999
      %1653 = vmatprep.subr.mxu0 0.0
      %1654 = vmatpush1.msra.mxu0 %v1002
      %1655 = vmatprep.subr.mxu0 0.0
      %1656 = vmatpush1.msra.mxu0 %v1007
      %1657 = vmatprep.subr.mxu0 0.0
      %1658 = vmatpush1.msra.mxu0 %v1010
      %1659 = vmatprep.subr.mxu0 0.0
      %1660 = vmatpush1.msra.mxu0 %v1015
      %1661 = vmatprep.subr.mxu0 0.0
      %1662 = vmatpush1.msra.mxu0 %v1018
      %1663 = vmatprep.subr.mxu0 0.0
      %1664 = vmatpush1.msra.mxu0 %v1023
      %1665 = vmatprep.subr.mxu0 0.0
      %1666 = vmatpush1.msra.mxu0 %v1026
      %1667 = vmatprep.subr.mxu0 0.0
      %1668 = vmatpush1.msra.mxu0 %v1031
      %1669 = vmatprep.subr.mxu0 0.0
      %1670 = vmatpush1.msra.mxu0 %v1034
      %1671 = vmatprep.subr.mxu0 0.0
      %1672 = vmatpush1.msra.mxu0 %v1039
      %1673 = vmatprep.subr.mxu0 0.0
      %1674 = vmatpush1.msra.mxu0 %v1042
      %1675 = vmatprep.subr.mxu0 0.0
      %1676 = vmatpush1.msra.mxu0 %v1047
      %1677 = vmatprep.subr.mxu0 0.0
      %1678 = vmatpush1.msra.mxu0 %v1050
      %1679 = vmatprep.subr.mxu0 0.0
      %1680 = vmatpush1.msra.mxu0 %v1055
      %1681 = vmatprep.subr.mxu0 0.0
      %1682 = vmatpush1.msra.mxu0 %v1058
      %1683 = vmatprep.subr.mxu0 0.0
      %1684 = vmatpush1.msra.mxu0 %v1063
      %1685 = vmatprep.subr.mxu0 0.0
      %1686 = vmatpush1.msra.mxu0 %v1066
      %1687 = vmatprep.subr.mxu0 0.0
      %1688 = vmatpush1.msra.mxu0 %v1071
      %1689 = vmatprep.subr.mxu0 0.0
      %1690 = vmatpush1.msra.mxu0 %v1074
      %1691 = vmatprep.subr.mxu0 0.0
      %1692 = vmatpush1.msra.mxu0 %v1079
      %1693 = vmatprep.subr.mxu0 0.0
      %1694 = vmatpush1.msra.mxu0 %v1082
      %1695 = vmatprep.mubr.f32.mxu0 %v1600
      %1696 = vmatmul.mubr.f32.gmra.mrb[0].mxu0 %v1599
      %v1697 = vpop.f32.mrb[0].mxu0
      %v1698 = vadd.f32 0.0, %v1697
      %v1699 = vpop.f32.mrb[0].mxu0
      %1700 = vmatprep.mubr.f32.mxu0 %v1602
      %1701 = vmatmul.mubr.f32.gmra.mrb[0].mxu0 %v1601
      %v1702 = vpop.f32.mrb[0].mxu0
      %v1703 = vadd.f32 0.0, %v1702
      %v1704 = vpop.f32.mrb[0].mxu0
      %1705 = vmatprep.mubr.f32.mxu0 %v1604
      %1706 = vmatmul.mubr.f32.gmra.mrb[0].mxu0 %v1603
      %v1707 = vpop.f32.mrb[0].mxu0
      %v1708 = vadd.f32 0.0, %v1707
      %v1709 = vpop.f32.mrb[0].mxu0
      %1710 = vmatprep.mubr.f32.mxu0 %v1606
      %1711 = vmatmul.mubr.f32.gmra.mrb[0].mxu0 %v1605
      %v1712 = vpop.f32.mrb[0].mxu0
      %v1713 = vadd.f32 0.0, %v1712
      %v1714 = vpop.f32.mrb[0].mxu0
      %1715 = vmatprep.mubr.f32.mxu0 %v1608
      %1716 = vmatmul.mubr.f32.gmra.mrb[0].mxu0 %v1607
      %v1717 = vpop.f32.mrb[0].mxu0
      %v1718 = vadd.f32 0.0, %v1717
      %v1719 = vpop.f32.mrb[0].mxu0
      %1720 = vmatprep.mubr.f32.mxu0 %v1610
      %1721 = vmatmul.mubr.f32.gmra.mrb[0].mxu0 %v1609
      %v1722 = vpop.f32.mrb[0].mxu0
      %v1723 = vadd.f32 0.0, %v1722
      %v1724 = vpop.f32.mrb[0].mxu0
      %1725 = vmatprep.mubr.f32.mxu0 %v1612
      %1726 = vmatmul.mubr.f32.gmra.mrb[0].mxu0 %v1611
      %v1727 = vpop.f32.mrb[0].mxu0
      %v1728 = vadd.f32 0.0, %v1727
      %v1729 = vpop.f32.mrb[0].mxu0
      %1730 = vmatprep.mubr.f32.mxu0 %v1614
      %1731 = vmatmul.mubr.f32.gmra.mrb[0].mxu0 %v1613
      %v1732 = vpop.f32.mrb[0].mxu0
      %v1733 = vadd.f32 0.0, %v1732
      %v1734 = vpop.f32.mrb[0].mxu0
      %1735 = vmatprep.mubr.f32.mxu0 %v1616
      %1736 = vmatmul.mubr.f32.gmra.mrb[0].mxu0 %v1615
      %v1737 = vpop.f32.mrb[0].mxu0
      %v1738 = vadd.f32 0.0, %v1737
      %v1739 = vpop.f32.mrb[0].mxu0
      %1740 = vmatprep.mubr.f32.mxu0 %v1618
      %1741 = vmatmul.mubr.f32.gmra.mrb[0].mxu0 %v1617
      %v1742 = vpop.f32.mrb[0].mxu0
      %v1743 = vadd.f32 0.0, %v1742
      %v1744 = vpop.f32.mrb[0].mxu0
      %1745 = vmatprep.mubr.f32.mxu0 %v1620
      %1746 = vmatmul.mubr.f32.gmra.mrb[0].mxu0 %v1619
      %v1747 = vpop.f32.mrb[0].mxu0
      %v1748 = vadd.f32 0.0, %v1747
      %v1749 = vpop.f32.mrb[0].mxu0
      %1750 = vmatprep.mubr.f32.mxu0 %v1622
      %1751 = vmatmul.mubr.f32.gmra.mrb[0].mxu0 %v1621
      %v1752 = vpop.f32.mrb[0].mxu0
      %v1753 = vadd.f32 0.0, %v1752
      %v1754 = vpop.f32.mrb[0].mxu0
      %1755 = vmatprep.mubr.f32.mxu0 %v1624
      %1756 = vmatmul.mubr.f32.gmra.mrb[0].mxu0 %v1623
      %v1757 = vpop.f32.mrb[0].mxu0
      %v1758 = vadd.f32 0.0, %v1757
      %v1759 = vpop.f32.mrb[0].mxu0
      %1760 = vmatprep.mubr.f32.mxu0 %v1626
      %1761 = vmatmul.mubr.f32.gmra.mrb[0].mxu0 %v1625
      %v1762 = vpop.f32.mrb[0].mxu0
      %v1763 = vadd.f32 0.0, %v1762
      %v1764 = vpop.f32.mrb[0].mxu0
      %1765 = vmatprep.mubr.f32.mxu0 %v1628
      %1766 = vmatmul.mubr.f32.gmra.mrb[0].mxu0 %v1627
      %v1767 = vpop.f32.mrb[0].mxu0
      %v1768 = vadd.f32 0.0, %v1767
      %v1769 = vpop.f32.mrb[0].mxu0
      %1770 = vmatprep.mubr.f32.mxu0 %v1630
      %1771 = vmatmul.mubr.f32.gmra.mrb[0].mxu0 %v1629
      %v1772 = vpop.f32.mrb[0].mxu0
      %v1773 = vadd.f32 0.0, %v1772
      %v1774 = vpop.f32.mrb[0].mxu0
      %1775 = vdwg.mxu0
      %1776 = vrot.lane.b32.xlu0 %v571, 96
      %v1777 = vpop.permute.xlu0 %1776
      %1778 = vrot.lane.b32.xlu0 %v572, 96
      %v1779 = vpop.permute.xlu0 %1778
      %1780 = vrot.lane.b32.xlu0 %v573, 96
      %v1781 = vpop.permute.xlu0 %1780
      %1782 = vrot.lane.b32.xlu0 %v574, 96
      %v1783 = vpop.permute.xlu0 %1782
      %1784 = vrot.lane.b32.xlu0 %v575, 96
      %v1785 = vpop.permute.xlu0 %1784
      %1786 = vrot.lane.b32.xlu0 %v576, 96
      %v1787 = vpop.permute.xlu0 %1786
      %1788 = vrot.lane.b32.xlu0 %v577, 96
      %v1789 = vpop.permute.xlu0 %1788
      %1790 = vrot.lane.b32.xlu0 %v578, 96
      %v1791 = vpop.permute.xlu0 %1790
      %1792 = vrot.lane.b32.xlu0 %v579, 96
      %v1793 = vpop.permute.xlu0 %1792
      %1794 = vrot.lane.b32.xlu0 %v580, 96
      %v1795 = vpop.permute.xlu0 %1794
      %1796 = vrot.lane.b32.xlu0 %v581, 96
      %v1797 = vpop.permute.xlu0 %1796
      %1798 = vrot.lane.b32.xlu0 %v582, 96
      %v1799 = vpop.permute.xlu0 %1798
      %1800 = vrot.lane.b32.xlu0 %v583, 96
      %v1801 = vpop.permute.xlu0 %1800
      %1802 = vrot.lane.b32.xlu0 %v584, 96
      %v1803 = vpop.permute.xlu0 %1802
      %1804 = vrot.lane.b32.xlu0 %v585, 96
      %v1805 = vpop.permute.xlu0 %1804
      %1806 = vrot.lane.b32.xlu0 %v586, 96
      %v1807 = vpop.permute.xlu0 %1806
      %1808 = vrot.lane.b32.xlu0 %v750, 96
      %v1809 = vpop.permute.xlu0 %1808
      %1810 = vrot.lane.b32.xlu0 %v753, 96
      %v1811 = vpop.permute.xlu0 %1810
      %1812 = vrot.lane.b32.xlu0 %v758, 96
      %v1813 = vpop.permute.xlu0 %1812
      %1814 = vrot.lane.b32.xlu0 %v761, 96
      %v1815 = vpop.permute.xlu0 %1814
      %1816 = vrot.lane.b32.xlu0 %v766, 96
      %v1817 = vpop.permute.xlu0 %1816
      %1818 = vrot.lane.b32.xlu0 %v769, 96
      %v1819 = vpop.permute.xlu0 %1818
      %1820 = vrot.lane.b32.xlu0 %v774, 96
      %v1821 = vpop.permute.xlu0 %1820
      %1822 = vrot.lane.b32.xlu0 %v777, 96
      %v1823 = vpop.permute.xlu0 %1822
      %1824 = vrot.lane.b32.xlu0 %v782, 96
      %v1825 = vpop.permute.xlu0 %1824
      %1826 = vrot.lane.b32.xlu0 %v785, 96
      %v1827 = vpop.permute.xlu0 %1826
      %1828 = vrot.lane.b32.xlu0 %v790, 96
      %v1829 = vpop.permute.xlu0 %1828
      %1830 = vrot.lane.b32.xlu0 %v793, 96
      %v1831 = vpop.permute.xlu0 %1830
      %1832 = vrot.lane.b32.xlu0 %v798, 96
      %v1833 = vpop.permute.xlu0 %1832
      %1834 = vrot.lane.b32.xlu0 %v801, 96
      %v1835 = vpop.permute.xlu0 %1834
      %1836 = vrot.lane.b32.xlu0 %v806, 96
      %v1837 = vpop.permute.xlu0 %1836
      %1838 = vrot.lane.b32.xlu0 %v809, 96
      %v1839 = vpop.permute.xlu0 %1838
      %1840 = vrot.lane.b32.xlu0 %v814, 96
      %v1841 = vpop.permute.xlu0 %1840
      %1842 = vrot.lane.b32.xlu0 %v817, 96
      %v1843 = vpop.permute.xlu0 %1842
      %1844 = vrot.lane.b32.xlu0 %v822, 96
      %v1845 = vpop.permute.xlu0 %1844
      %1846 = vrot.lane.b32.xlu0 %v825, 96
      %v1847 = vpop.permute.xlu0 %1846
      %1848 = vrot.lane.b32.xlu0 %v830, 96
      %v1849 = vpop.permute.xlu0 %1848
      %1850 = vrot.lane.b32.xlu0 %v833, 96
      %v1851 = vpop.permute.xlu0 %1850
      %1852 = vrot.lane.b32.xlu0 %v838, 96
      %v1853 = vpop.permute.xlu0 %1852
      %1854 = vrot.lane.b32.xlu0 %v841, 96
      %v1855 = vpop.permute.xlu0 %1854
      %1856 = vrot.lane.b32.xlu0 %v846, 96
      %v1857 = vpop.permute.xlu0 %1856
      %1858 = vrot.lane.b32.xlu0 %v849, 96
      %v1859 = vpop.permute.xlu0 %1858
      %1860 = vrot.lane.b32.xlu0 %v854, 96
      %v1861 = vpop.permute.xlu0 %1860
      %1862 = vrot.lane.b32.xlu0 %v857, 96
      %v1863 = vpop.permute.xlu0 %1862
      %1864 = vrot.lane.b32.xlu0 %v862, 96
      %v1865 = vpop.permute.xlu0 %1864
      %1866 = vrot.lane.b32.xlu0 %v865, 96
      %v1867 = vpop.permute.xlu0 %1866
      %1868 = vrot.lane.b32.xlu0 %v870, 96
      %v1869 = vpop.permute.xlu0 %1868
      %1870 = vrot.lane.b32.xlu0 %v873, 96
      %v1871 = vpop.permute.xlu0 %1870
      %v1872 = vsel %vm1085, %v1777, 0
      %v1874 = vsel %vm1085, %v1779, 0
      %v1876 = vsel %vm1085, %v1781, 0
      %v1878 = vsel %vm1085, %v1783, 0
      %v1880 = vsel %vm1085, %v1785, 0
      %v1882 = vsel %vm1085, %v1787, 0
      %v1884 = vsel %vm1085, %v1789, 0
      %v1886 = vsel %vm1085, %v1791, 0
      %v1888 = vsel %vm1085, %v1793, 0
      %v1890 = vsel %vm1085, %v1795, 0
      %v1892 = vsel %vm1085, %v1797, 0
      %v1894 = vsel %vm1085, %v1799, 0
      %v1896 = vsel %vm1085, %v1801, 0
      %v1898 = vsel %vm1085, %v1803, 0
      %v1900 = vsel %vm1085, %v1805, 0
      %v1902 = vsel %vm1085, %v1807, 0
      %v1904 = vsel %vm1085, %v1809, 0
      %v1906 = vsel %vm1085, %v1811, 0
      %v1908 = vsel %vm1085, %v1813, 0
      %v1910 = vsel %vm1085, %v1815, 0
      %v1912 = vsel %vm1085, %v1817, 0
      %v1914 = vsel %vm1085, %v1819, 0
      %v1916 = vsel %vm1085, %v1821, 0
      %v1918 = vsel %vm1085, %v1823, 0
      %v1920 = vsel %vm1085, %v1825, 0
      %v1922 = vsel %vm1085, %v1827, 0
      %v1924 = vsel %vm1085, %v1829, 0
      %v1926 = vsel %vm1085, %v1831, 0
      %v1928 = vsel %vm1085, %v1833, 0
      %v1930 = vsel %vm1085, %v1835, 0
      %v1932 = vsel %vm1085, %v1837, 0
      %v1934 = vsel %vm1085, %v1839, 0
      %v1936 = vsel %vm1085, %v1841, 0
      %v1938 = vsel %vm1085, %v1843, 0
      %v1940 = vsel %vm1085, %v1845, 0
      %v1942 = vsel %vm1085, %v1847, 0
      %v1944 = vsel %vm1085, %v1849, 0
      %v1946 = vsel %vm1085, %v1851, 0
      %v1948 = vsel %vm1085, %v1853, 0
      %v1950 = vsel %vm1085, %v1855, 0
      %v1952 = vsel %vm1085, %v1857, 0
      %v1954 = vsel %vm1085, %v1859, 0
      %v1956 = vsel %vm1085, %v1861, 0
      %v1958 = vsel %vm1085, %v1863, 0
      %v1960 = vsel %vm1085, %v1865, 0
      %v1962 = vsel %vm1085, %v1867, 0
      %v1964 = vsel %vm1085, %v1869, 0
      %v1966 = vsel %vm1085, %v1871, 0
      %1968 = vmatprep.subr.mxu0 0.0
      %1969 = vmatpush1.xpose.msra.mxu0 %v1904
      %1970 = vmatprep.subr.mxu0 0.0
      %1971 = vmatpush1.xpose.msra.mxu0 %v1906
      %1972 = vmatprep.subr.mxu0 0.0
      %1973 = vmatpush1.xpose.msra.mxu0 %v1908
      %1974 = vmatprep.subr.mxu0 0.0
      %1975 = vmatpush1.xpose.msra.mxu0 %v1910
      %1976 = vmatprep.subr.mxu0 0.0
      %1977 = vmatpush1.xpose.msra.mxu0 %v1912
      %1978 = vmatprep.subr.mxu0 0.0
      %1979 = vmatpush1.xpose.msra.mxu0 %v1914
      %1980 = vmatprep.subr.mxu0 0.0
      %1981 = vmatpush1.xpose.msra.mxu0 %v1916
      %1982 = vmatprep.subr.mxu0 0.0
      %1983 = vmatpush1.xpose.msra.mxu0 %v1918
      %1984 = vmatprep.subr.mxu0 0.0
      %1985 = vmatpush1.xpose.msra.mxu0 %v1920
      %1986 = vmatprep.subr.mxu0 0.0
      %1987 = vmatpush1.xpose.msra.mxu0 %v1922
      %1988 = vmatprep.subr.mxu0 0.0
      %1989 = vmatpush1.xpose.msra.mxu0 %v1924
      %1990 = vmatprep.subr.mxu0 0.0
      %1991 = vmatpush1.xpose.msra.mxu0 %v1926
      %1992 = vmatprep.subr.mxu0 0.0
      %1993 = vmatpush1.xpose.msra.mxu0 %v1928
      %1994 = vmatprep.subr.mxu0 0.0
      %1995 = vmatpush1.xpose.msra.mxu0 %v1930
      %1996 = vmatprep.subr.mxu0 0.0
      %1997 = vmatpush1.xpose.msra.mxu0 %v1932
      %1998 = vmatprep.subr.mxu0 0.0
      %1999 = vmatpush1.xpose.msra.mxu0 %v1934
      %2000 = vmatprep.subr.mxu0 0.0
      %2001 = vmatpush1.xpose.msra.mxu0 %v1936
      %2002 = vmatprep.subr.mxu0 0.0
      %2003 = vmatpush1.xpose.msra.mxu0 %v1938
      %2004 = vmatprep.subr.mxu0 0.0
      %2005 = vmatpush1.xpose.msra.mxu0 %v1940
      %2006 = vmatprep.subr.mxu0 0.0
      %2007 = vmatpush1.xpose.msra.mxu0 %v1942
      %2008 = vmatprep.subr.mxu0 0.0
      %2009 = vmatpush1.xpose.msra.mxu0 %v1944
      %2010 = vmatprep.subr.mxu0 0.0
      %2011 = vmatpush1.xpose.msra.mxu0 %v1946
      %2012 = vmatprep.subr.mxu0 0.0
      %2013 = vmatpush1.xpose.msra.mxu0 %v1948
      %2014 = vmatprep.subr.mxu0 0.0
      %2015 = vmatpush1.xpose.msra.mxu0 %v1950
      %2016 = vmatprep.subr.mxu0 0.0
      %2017 = vmatpush1.xpose.msra.mxu0 %v1952
      %2018 = vmatprep.subr.mxu0 0.0
      %2019 = vmatpush1.xpose.msra.mxu0 %v1954
      %2020 = vmatprep.subr.mxu0 0.0
      %2021 = vmatpush1.xpose.msra.mxu0 %v1956
      %2022 = vmatprep.subr.mxu0 0.0
      %2023 = vmatpush1.xpose.msra.mxu0 %v1958
      %2024 = vmatprep.subr.mxu0 0.0
      %2025 = vmatpush1.xpose.msra.mxu0 %v1960
      %2026 = vmatprep.subr.mxu0 0.0
      %2027 = vmatpush1.xpose.msra.mxu0 %v1962
      %2028 = vmatprep.subr.mxu0 0.0
      %2029 = vmatpush1.xpose.msra.mxu0 %v1964
      %2030 = vmatprep.subr.mxu0 0.0
      %2031 = vmatpush1.xpose.msra.mxu0 %v1966
      %2032 = vmatprep.mubr.f32.mxu0 0.0
      %2033 = vmatmul.mubr.f32.gmra.mrb[0].mxu0 %v1872
      %v2034 = vpop.f32.mrb[0].mxu0
      %v2035 = vadd.f32 0.0, %v2034
      %v2036 = vpop.f32.mrb[0].mxu0
      %v2037 = vadd.f32 0.0, %v2036
      %2038 = vmatprep.mubr.f32.mxu0 0.0
      %2039 = vmatmul.mubr.f32.gmra.mrb[0].mxu0 %v1874
      %v2040 = vpop.f32.mrb[0].mxu0
      %v2041 = vadd.f32 0.0, %v2040
      %v2042 = vpop.f32.mrb[0].mxu0
      %v2043 = vadd.f32 0.0, %v2042
      %2044 = vmatprep.mubr.f32.mxu0 0.0
      %2045 = vmatmul.mubr.f32.gmra.mrb[0].mxu0 %v1876
      %v2046 = vpop.f32.mrb[0].mxu0
      %v2047 = vadd.f32 0.0, %v2046
      %v2048 = vpop.f32.mrb[0].mxu0
      %v2049 = vadd.f32 0.0, %v2048
      %2050 = vmatprep.mubr.f32.mxu0 0.0
      %2051 = vmatmul.mubr.f32.gmra.mrb[0].mxu0 %v1878
      %v2052 = vpop.f32.mrb[0].mxu0
      %v2053 = vadd.f32 0.0, %v2052
      %v2054 = vpop.f32.mrb[0].mxu0
      %v2055 = vadd.f32 0.0, %v2054
      %2056 = vmatprep.mubr.f32.mxu0 0.0
      %2057 = vmatmul.mubr.f32.gmra.mrb[0].mxu0 %v1880
      %v2058 = vpop.f32.mrb[0].mxu0
      %v2059 = vadd.f32 0.0, %v2058
      %v2060 = vpop.f32.mrb[0].mxu0
      %v2061 = vadd.f32 0.0, %v2060
      %2062 = vmatprep.mubr.f32.mxu0 0.0
      %2063 = vmatmul.mubr.f32.gmra.mrb[0].mxu0 %v1882
      %v2064 = vpop.f32.mrb[0].mxu0
      %v2065 = vadd.f32 0.0, %v2064
      %v2066 = vpop.f32.mrb[0].mxu0
      %v2067 = vadd.f32 0.0, %v2066
      %2068 = vmatprep.mubr.f32.mxu0 0.0
      %2069 = vmatmul.mubr.f32.gmra.mrb[0].mxu0 %v1884
      %v2070 = vpop.f32.mrb[0].mxu0
      %v2071 = vadd.f32 0.0, %v2070
      %v2072 = vpop.f32.mrb[0].mxu0
      %v2073 = vadd.f32 0.0, %v2072
      %2074 = vmatprep.mubr.f32.mxu0 0.0
      %2075 = vmatmul.mubr.f32.gmra.mrb[0].mxu0 %v1886
      %v2076 = vpop.f32.mrb[0].mxu0
      %v2077 = vadd.f32 0.0, %v2076
      %v2078 = vpop.f32.mrb[0].mxu0
      %v2079 = vadd.f32 0.0, %v2078
      %2080 = vmatprep.mubr.f32.mxu0 0.0
      %2081 = vmatmul.mubr.f32.gmra.mrb[0].mxu0 %v1888
      %v2082 = vpop.f32.mrb[0].mxu0
      %v2083 = vadd.f32 0.0, %v2082
      %v2084 = vpop.f32.mrb[0].mxu0
      %v2085 = vadd.f32 0.0, %v2084
      %2086 = vmatprep.mubr.f32.mxu0 0.0
      %2087 = vmatmul.mubr.f32.gmra.mrb[0].mxu0 %v1890
      %v2088 = vpop.f32.mrb[0].mxu0
      %v2089 = vadd.f32 0.0, %v2088
      %v2090 = vpop.f32.mrb[0].mxu0
      %v2091 = vadd.f32 0.0, %v2090
      %2092 = vmatprep.mubr.f32.mxu0 0.0
      %2093 = vmatmul.mubr.f32.gmra.mrb[0].mxu0 %v1892
      %v2094 = vpop.f32.mrb[0].mxu0
      %v2095 = vadd.f32 0.0, %v2094
      %v2096 = vpop.f32.mrb[0].mxu0
      %v2097 = vadd.f32 0.0, %v2096
      %2098 = vmatprep.mubr.f32.mxu0 0.0
      %2099 = vmatmul.mubr.f32.gmra.mrb[0].mxu0 %v1894
      %v2100 = vpop.f32.mrb[0].mxu0
      %v2101 = vadd.f32 0.0, %v2100
      %v2102 = vpop.f32.mrb[0].mxu0
      %v2103 = vadd.f32 0.0, %v2102
      %2104 = vmatprep.mubr.f32.mxu0 0.0
      %2105 = vmatmul.mubr.f32.gmra.mrb[0].mxu0 %v1896
      %v2106 = vpop.f32.mrb[0].mxu0
      %v2107 = vadd.f32 0.0, %v2106
      %v2108 = vpop.f32.mrb[0].mxu0
      %v2109 = vadd.f32 0.0, %v2108
      %2110 = vmatprep.mubr.f32.mxu0 0.0
      %2111 = vmatmul.mubr.f32.gmra.mrb[0].mxu0 %v1898
      %v2112 = vpop.f32.mrb[0].mxu0
      %v2113 = vadd.f32 0.0, %v2112
      %v2114 = vpop.f32.mrb[0].mxu0
      %v2115 = vadd.f32 0.0, %v2114
      %2116 = vmatprep.mubr.f32.mxu0 0.0
      %2117 = vmatmul.mubr.f32.gmra.mrb[0].mxu0 %v1900
      %v2118 = vpop.f32.mrb[0].mxu0
      %v2119 = vadd.f32 0.0, %v2118
      %v2120 = vpop.f32.mrb[0].mxu0
      %v2121 = vadd.f32 0.0, %v2120
      %2122 = vmatprep.mubr.f32.mxu0 0.0
      %2123 = vmatmul.mubr.f32.gmra.mrb[0].mxu0 %v1902
      %v2124 = vpop.f32.mrb[0].mxu0
      %v2125 = vadd.f32 0.0, %v2124
      %v2126 = vpop.f32.mrb[0].mxu0
      %v2127 = vadd.f32 0.0, %v2126
      %2128 = vdwg.mxu0
      %v2129 = vmax.f32 %v2035, %v2037
      %2130 = vmax.xlane.f32.xlu0 %v2129
      %v2131 = vpop.xlane.xlu0 %2130
      %v2132 = vmax.f32 %v2041, %v2043
      %2133 = vmax.xlane.f32.xlu0 %v2132
      %v2134 = vpop.xlane.xlu0 %2133
      %v2135 = vmax.f32 %v2047, %v2049
      %2136 = vmax.xlane.f32.xlu0 %v2135
      %v2137 = vpop.xlane.xlu0 %2136
      %v2138 = vmax.f32 %v2053, %v2055
      %2139 = vmax.xlane.f32.xlu0 %v2138
      %v2140 = vpop.xlane.xlu0 %2139
      %v2141 = vmax.f32 %v2059, %v2061
      %2142 = vmax.xlane.f32.xlu0 %v2141
      %v2143 = vpop.xlane.xlu0 %2142
      %v2144 = vmax.f32 %v2065, %v2067
      %2145 = vmax.xlane.f32.xlu0 %v2144
      %v2146 = vpop.xlane.xlu0 %2145
      %v2147 = vmax.f32 %v2071, %v2073
      %2148 = vmax.xlane.f32.xlu0 %v2147
      %v2149 = vpop.xlane.xlu0 %2148
      %v2150 = vmax.f32 %v2077, %v2079
      %2151 = vmax.xlane.f32.xlu0 %v2150
      %v2152 = vpop.xlane.xlu0 %2151
      %v2153 = vmax.f32 %v2083, %v2085
      %2154 = vmax.xlane.f32.xlu0 %v2153
      %v2155 = vpop.xlane.xlu0 %2154
      %v2156 = vmax.f32 %v2089, %v2091
      %2157 = vmax.xlane.f32.xlu0 %v2156
      %v2158 = vpop.xlane.xlu0 %2157
      %v2159 = vmax.f32 %v2095, %v2097
      %2160 = vmax.xlane.f32.xlu0 %v2159
      %v2161 = vpop.xlane.xlu0 %2160
      %v2162 = vmax.f32 %v2101, %v2103
      %2163 = vmax.xlane.f32.xlu0 %v2162
      %v2164 = vpop.xlane.xlu0 %2163
      %v2165 = vmax.f32 %v2107, %v2109
      %2166 = vmax.xlane.f32.xlu0 %v2165
      %v2167 = vpop.xlane.xlu0 %2166
      %v2168 = vmax.f32 %v2113, %v2115
      %2169 = vmax.xlane.f32.xlu0 %v2168
      %v2170 = vpop.xlane.xlu0 %2169
      %v2171 = vmax.f32 %v2119, %v2121
      %2172 = vmax.xlane.f32.xlu0 %v2171
      %v2173 = vpop.xlane.xlu0 %2172
      %v2174 = vmax.f32 %v2125, %v2127
      %2175 = vmax.xlane.f32.xlu0 %v2174
      %v2176 = vpop.xlane.xlu0 %2175
      %v2177 = vsub.f32 %v2035, %v2131
      %v2178 = vsub.f32 %v2037, %v2131
      %v2179 = vsub.f32 %v2041, %v2134
      %v2180 = vsub.f32 %v2043, %v2134
      %v2181 = vsub.f32 %v2047, %v2137
      %v2182 = vsub.f32 %v2049, %v2137
      %v2183 = vsub.f32 %v2053, %v2140
      %v2184 = vsub.f32 %v2055, %v2140
      %v2185 = vsub.f32 %v2059, %v2143
      %v2186 = vsub.f32 %v2061, %v2143
      %v2187 = vsub.f32 %v2065, %v2146
      %v2188 = vsub.f32 %v2067, %v2146
      %v2189 = vsub.f32 %v2071, %v2149
      %v2190 = vsub.f32 %v2073, %v2149
      %v2191 = vsub.f32 %v2077, %v2152
      %v2192 = vsub.f32 %v2079, %v2152
      %v2193 = vsub.f32 %v2083, %v2155
      %v2194 = vsub.f32 %v2085, %v2155
      %v2195 = vsub.f32 %v2089, %v2158
      %v2196 = vsub.f32 %v2091, %v2158
      %v2197 = vsub.f32 %v2095, %v2161
      %v2198 = vsub.f32 %v2097, %v2161
      %v2199 = vsub.f32 %v2101, %v2164
      %v2200 = vsub.f32 %v2103, %v2164
      %v2201 = vsub.f32 %v2107, %v2167
      %v2202 = vsub.f32 %v2109, %v2167
      %v2203 = vsub.f32 %v2113, %v2170
      %v2204 = vsub.f32 %v2115, %v2170
      %v2205 = vsub.f32 %v2119, %v2173
      %v2206 = vsub.f32 %v2121, %v2173
      %v2207 = vsub.f32 %v2125, %v2176
      %v2208 = vsub.f32 %v2127, %v2176
      %v2209 = vmul.f32 %v2177, 1.442695
      %v2210 = vpow.pop %v2209
      %v2211 = vmul.f32 %v2178, 1.442695
      %v2212 = vpow.pop %v2211
      %v2213 = vmul.f32 %v2179, 1.442695
      %v2214 = vpow.pop %v2213
      %v2215 = vmul.f32 %v2180, 1.442695
      %v2216 = vpow.pop %v2215
      %v2217 = vmul.f32 %v2181, 1.442695
      %v2218 = vpow.pop %v2217
      %v2219 = vmul.f32 %v2182, 1.442695
      %v2220 = vpow.pop %v2219
      %v2221 = vmul.f32 %v2183, 1.442695
      %v2222 = vpow.pop %v2221
      %v2223 = vmul.f32 %v2184, 1.442695
      %v2224 = vpow.pop %v2223
      %v2225 = vmul.f32 %v2185, 1.442695
      %v2226 = vpow.pop %v2225
      %v2227 = vmul.f32 %v2186, 1.442695
      %v2228 = vpow.pop %v2227
      %v2229 = vmul.f32 %v2187, 1.442695
      %v2230 = vpow.pop %v2229
      %v2231 = vmul.f32 %v2188, 1.442695
      %v2232 = vpow.pop %v2231
      %v2233 = vmul.f32 %v2189, 1.442695
      %v2234 = vpow.pop %v2233
      %v2235 = vmul.f32 %v2190, 1.442695
      %v2236 = vpow.pop %v2235
      %v2237 = vmul.f32 %v2191, 1.442695
      %v2238 = vpow.pop %v2237
      %v2239 = vmul.f32 %v2192, 1.442695
      %v2240 = vpow.pop %v2239
      %v2241 = vmul.f32 %v2193, 1.442695
      %v2242 = vpow.pop %v2241
      %v2243 = vmul.f32 %v2194, 1.442695
      %v2244 = vpow.pop %v2243
      %v2245 = vmul.f32 %v2195, 1.442695
      %v2246 = vpow.pop %v2245
      %v2247 = vmul.f32 %v2196, 1.442695
      %v2248 = vpow.pop %v2247
      %v2249 = vmul.f32 %v2197, 1.442695
      %v2250 = vpow.pop %v2249
      %v2251 = vmul.f32 %v2198, 1.442695
      %v2252 = vpow.pop %v2251
      %v2253 = vmul.f32 %v2199, 1.442695
      %v2254 = vpow.pop %v2253
      %v2255 = vmul.f32 %v2200, 1.442695
      %v2256 = vpow.pop %v2255
      %v2257 = vmul.f32 %v2201, 1.442695
      %v2258 = vpow.pop %v2257
      %v2259 = vmul.f32 %v2202, 1.442695
      %v2260 = vpow.pop %v2259
      %v2261 = vmul.f32 %v2203, 1.442695
      %v2262 = vpow.pop %v2261
      %v2263 = vmul.f32 %v2204, 1.442695
      %v2264 = vpow.pop %v2263
      %v2265 = vmul.f32 %v2205, 1.442695
      %v2266 = vpow.pop %v2265
      %v2267 = vmul.f32 %v2206, 1.442695
      %v2268 = vpow.pop %v2267
      %v2269 = vmul.f32 %v2207, 1.442695
      %v2270 = vpow.pop %v2269
      %v2271 = vmul.f32 %v2208, 1.442695
      %v2272 = vpow.pop %v2271
      %v2273 = vadd.f32 %v2210, %v2212
      %2274 = vadd.xlane.f32.xlu0 %v2273
      %v2275 = vpop.xlane.xlu0 %2274
      %v2276 = vadd.f32 %v2214, %v2216
      %2277 = vadd.xlane.f32.xlu0 %v2276
      %v2278 = vpop.xlane.xlu0 %2277
      %v2279 = vadd.f32 %v2218, %v2220
      %2280 = vadd.xlane.f32.xlu0 %v2279
      %v2281 = vpop.xlane.xlu0 %2280
      %v2282 = vadd.f32 %v2222, %v2224
      %2283 = vadd.xlane.f32.xlu0 %v2282
      %v2284 = vpop.xlane.xlu0 %2283
      %v2285 = vadd.f32 %v2226, %v2228
      %2286 = vadd.xlane.f32.xlu0 %v2285
      %v2287 = vpop.xlane.xlu0 %2286
      %v2288 = vadd.f32 %v2230, %v2232
      %2289 = vadd.xlane.f32.xlu0 %v2288
      %v2290 = vpop.xlane.xlu0 %2289
      %v2291 = vadd.f32 %v2234, %v2236
      %2292 = vadd.xlane.f32.xlu0 %v2291
      %v2293 = vpop.xlane.xlu0 %2292
      %v2294 = vadd.f32 %v2238, %v2240
      %2295 = vadd.xlane.f32.xlu0 %v2294
      %v2296 = vpop.xlane.xlu0 %2295
      %v2297 = vadd.f32 %v2242, %v2244
      %2298 = vadd.xlane.f32.xlu0 %v2297
      %v2299 = vpop.xlane.xlu0 %2298
      %v2300 = vadd.f32 %v2246, %v2248
      %2301 = vadd.xlane.f32.xlu0 %v2300
      %v2302 = vpop.xlane.xlu0 %2301
      %v2303 = vadd.f32 %v2250, %v2252
      %2304 = vadd.xlane.f32.xlu0 %v2303
      %v2305 = vpop.xlane.xlu0 %2304
      %v2306 = vadd.f32 %v2254, %v2256
      %2307 = vadd.xlane.f32.xlu0 %v2306
      %v2308 = vpop.xlane.xlu0 %2307
      %v2309 = vadd.f32 %v2258, %v2260
      %2310 = vadd.xlane.f32.xlu0 %v2309
      %v2311 = vpop.xlane.xlu0 %2310
      %v2312 = vadd.f32 %v2262, %v2264
      %2313 = vadd.xlane.f32.xlu0 %v2312
      %v2314 = vpop.xlane.xlu0 %2313
      %v2315 = vadd.f32 %v2266, %v2268
      %2316 = vadd.xlane.f32.xlu0 %v2315
      %v2317 = vpop.xlane.xlu0 %2316
      %v2318 = vadd.f32 %v2270, %v2272
      %2319 = vadd.xlane.f32.xlu0 %v2318
      %v2320 = vpop.xlane.xlu0 %2319
      %v2321 = vrcp.pop %v2275
      %v2322 = vrcp.pop %v2278
      %v2323 = vrcp.pop %v2281
      %v2324 = vrcp.pop %v2284
      %v2325 = vrcp.pop %v2287
      %v2326 = vrcp.pop %v2290
      %v2327 = vrcp.pop %v2293
      %v2328 = vrcp.pop %v2296
      %v2329 = vrcp.pop %v2299
      %v2330 = vrcp.pop %v2302
      %v2331 = vrcp.pop %v2305
      %v2332 = vrcp.pop %v2308
      %v2333 = vrcp.pop %v2311
      %v2334 = vrcp.pop %v2314
      %v2335 = vrcp.pop %v2317
      %v2336 = vrcp.pop %v2320
      %v2337 = vmul.f32 %v2210, %v2321
      %v2338 = vmul.f32 %v2212, %v2321
      %v2339 = vmul.f32 %v2214, %v2322
      %v2340 = vmul.f32 %v2216, %v2322
      %v2341 = vmul.f32 %v2218, %v2323
      %v2342 = vmul.f32 %v2220, %v2323
      %v2343 = vmul.f32 %v2222, %v2324
      %v2344 = vmul.f32 %v2224, %v2324
      %v2345 = vmul.f32 %v2226, %v2325
      %v2346 = vmul.f32 %v2228, %v2325
      %v2347 = vmul.f32 %v2230, %v2326
      %v2348 = vmul.f32 %v2232, %v2326
      %v2349 = vmul.f32 %v2234, %v2327
      %v2350 = vmul.f32 %v2236, %v2327
      %v2351 = vmul.f32 %v2238, %v2328
      %v2352 = vmul.f32 %v2240, %v2328
      %v2353 = vmul.f32 %v2242, %v2329
      %v2354 = vmul.f32 %v2244, %v2329
      %v2355 = vmul.f32 %v2246, %v2330
      %v2356 = vmul.f32 %v2248, %v2330
      %v2357 = vmul.f32 %v2250, %v2331
      %v2358 = vmul.f32 %v2252, %v2331
      %v2359 = vmul.f32 %v2254, %v2332
      %v2360 = vmul.f32 %v2256, %v2332
      %v2361 = vmul.f32 %v2258, %v2333
      %v2362 = vmul.f32 %v2260, %v2333
      %v2363 = vmul.f32 %v2262, %v2334
      %v2364 = vmul.f32 %v2264, %v2334
      %v2365 = vmul.f32 %v2266, %v2335
      %v2366 = vmul.f32 %v2268, %v2335
      %v2367 = vmul.f32 %v2270, %v2336
      %v2368 = vmul.f32 %v2272, %v2336
      %2401 = vrot.lane.b32.xlu0 %v959, 96
      %v2402 = vpop.permute.xlu0 %2401
      %2403 = vrot.lane.b32.xlu0 %v962, 96
      %v2404 = vpop.permute.xlu0 %2403
      %2405 = vrot.lane.b32.xlu0 %v967, 96
      %v2406 = vpop.permute.xlu0 %2405
      %2407 = vrot.lane.b32.xlu0 %v970, 96
      %v2408 = vpop.permute.xlu0 %2407
      %2409 = vrot.lane.b32.xlu0 %v975, 96
      %v2410 = vpop.permute.xlu0 %2409
      %2411 = vrot.lane.b32.xlu0 %v978, 96
      %v2412 = vpop.permute.xlu0 %2411
      %2413 = vrot.lane.b32.xlu0 %v983, 96
      %v2414 = vpop.permute.xlu0 %2413
      %2415 = vrot.lane.b32.xlu0 %v986, 96
      %v2416 = vpop.permute.xlu0 %2415
      %2417 = vrot.lane.b32.xlu0 %v991, 96
      %v2418 = vpop.permute.xlu0 %2417
      %2419 = vrot.lane.b32.xlu0 %v994, 96
      %v2420 = vpop.permute.xlu0 %2419
      %2421 = vrot.lane.b32.xlu0 %v999, 96
      %v2422 = vpop.permute.xlu0 %2421
      %2423 = vrot.lane.b32.xlu0 %v1002, 96
      %v2424 = vpop.permute.xlu0 %2423
      %2425 = vrot.lane.b32.xlu0 %v1007, 96
      %v2426 = vpop.permute.xlu0 %2425
      %2427 = vrot.lane.b32.xlu0 %v1010, 96
      %v2428 = vpop.permute.xlu0 %2427
      %2429 = vrot.lane.b32.xlu0 %v1015, 96
      %v2430 = vpop.permute.xlu0 %2429
      %2431 = vrot.lane.b32.xlu0 %v1018, 96
      %v2432 = vpop.permute.xlu0 %2431
      %2433 = vrot.lane.b32.xlu0 %v1023, 96
      %v2434 = vpop.permute.xlu0 %2433
      %2435 = vrot.lane.b32.xlu0 %v1026, 96
      %v2436 = vpop.permute.xlu0 %2435
      %2437 = vrot.lane.b32.xlu0 %v1031, 96
      %v2438 = vpop.permute.xlu0 %2437
      %2439 = vrot.lane.b32.xlu0 %v1034, 96
      %v2440 = vpop.permute.xlu0 %2439
      %2441 = vrot.lane.b32.xlu0 %v1039, 96
      %v2442 = vpop.permute.xlu0 %2441
      %2443 = vrot.lane.b32.xlu0 %v1042, 96
      %v2444 = vpop.permute.xlu0 %2443
      %2445 = vrot.lane.b32.xlu0 %v1047, 96
      %v2446 = vpop.permute.xlu0 %2445
      %2447 = vrot.lane.b32.xlu0 %v1050, 96
      %v2448 = vpop.permute.xlu0 %2447
      %2449 = vrot.lane.b32.xlu0 %v1055, 96
      %v2450 = vpop.permute.xlu0 %2449
      %2451 = vrot.lane.b32.xlu0 %v1058, 96
      %v2452 = vpop.permute.xlu0 %2451
      %2453 = vrot.lane.b32.xlu0 %v1063, 96
      %v2454 = vpop.permute.xlu0 %2453
      %2455 = vrot.lane.b32.xlu0 %v1066, 96
      %v2456 = vpop.permute.xlu0 %2455
      %2457 = vrot.lane.b32.xlu0 %v1071, 96
      %v2458 = vpop.permute.xlu0 %2457
      %2459 = vrot.lane.b32.xlu0 %v1074, 96
      %v2460 = vpop.permute.xlu0 %2459
      %2461 = vrot.lane.b32.xlu0 %v1079, 96
      %v2462 = vpop.permute.xlu0 %2461
      %2463 = vrot.lane.b32.xlu0 %v1082, 96
      %v2464 = vpop.permute.xlu0 %2463
      %2497 = vmatprep.subr.mxu0 0.0
      %2498 = vmatpush1.msra.mxu0 %v2402
      %2499 = vmatprep.subr.mxu0 0.0
      %2500 = vmatpush1.msra.mxu0 %v2404
      %2501 = vmatprep.subr.mxu0 0.0
      %2502 = vmatpush1.msra.mxu0 %v2406
      %2503 = vmatprep.subr.mxu0 0.0
      %2504 = vmatpush1.msra.mxu0 %v2408
      %2505 = vmatprep.subr.mxu0 0.0
      %2506 = vmatpush1.msra.mxu0 %v2410
      %2507 = vmatprep.subr.mxu0 0.0
      %2508 = vmatpush1.msra.mxu0 %v2412
      %2509 = vmatprep.subr.mxu0 0.0
      %2510 = vmatpush1.msra.mxu0 %v2414
      %2511 = vmatprep.subr.mxu0 0.0
      %2512 = vmatpush1.msra.mxu0 %v2416
      %2513 = vmatprep.subr.mxu0 0.0
      %2514 = vmatpush1.msra.mxu0 %v2418
      %2515 = vmatprep.subr.mxu0 0.0
      %2516 = vmatpush1.msra.mxu0 %v2420
      %2517 = vmatprep.subr.mxu0 0.0
      %2518 = vmatpush1.msra.mxu0 %v2422
      %2519 = vmatprep.subr.mxu0 0.0
      %2520 = vmatpush1.msra.mxu0 %v2424
      %2521 = vmatprep.subr.mxu0 0.0
      %2522 = vmatpush1.msra.mxu0 %v2426
      %2523 = vmatprep.subr.mxu0 0.0
      %2524 = vmatpush1.msra.mxu0 %v2428
      %2525 = vmatprep.subr.mxu0 0.0
      %2526 = vmatpush1.msra.mxu0 %v2430
      %2527 = vmatprep.subr.mxu0 0.0
      %2528 = vmatpush1.msra.mxu0 %v2432
      %2529 = vmatprep.subr.mxu0 0.0
      %2530 = vmatpush1.msra.mxu0 %v2434
      %2531 = vmatprep.subr.mxu0 0.0
      %2532 = vmatpush1.msra.mxu0 %v2436
      %2533 = vmatprep.subr.mxu0 0.0
      %2534 = vmatpush1.msra.mxu0 %v2438
      %2535 = vmatprep.subr.mxu0 0.0
      %2536 = vmatpush1.msra.mxu0 %v2440
      %2537 = vmatprep.subr.mxu0 0.0
      %2538 = vmatpush1.msra.mxu0 %v2442
      %2539 = vmatprep.subr.mxu0 0.0
      %2540 = vmatpush1.msra.mxu0 %v2444
      %2541 = vmatprep.subr.mxu0 0.0
      %2542 = vmatpush1.msra.mxu0 %v2446
      %2543 = vmatprep.subr.mxu0 0.0
      %2544 = vmatpush1.msra.mxu0 %v2448
      %2545 = vmatprep.subr.mxu0 0.0
      %2546 = vmatpush1.msra.mxu0 %v2450
      %2547 = vmatprep.subr.mxu0 0.0
      %2548 = vmatpush1.msra.mxu0 %v2452
      %2549 = vmatprep.subr.mxu0 0.0
      %2550 = vmatpush1.msra.mxu0 %v2454
      %2551 = vmatprep.subr.mxu0 0.0
      %2552 = vmatpush1.msra.mxu0 %v2456
      %2553 = vmatprep.subr.mxu0 0.0
      %2554 = vmatpush1.msra.mxu0 %v2458
      %2555 = vmatprep.subr.mxu0 0.0
      %2556 = vmatpush1.msra.mxu0 %v2460
      %2557 = vmatprep.subr.mxu0 0.0
      %2558 = vmatpush1.msra.mxu0 %v2462
      %2559 = vmatprep.subr.mxu0 0.0
      %2560 = vmatpush1.msra.mxu0 %v2464
      %2561 = vmatprep.mubr.f32.mxu0 %v2338
      %2562 = vmatmul.mubr.f32.gmra.mrb[0].mxu0 %v2337
      %v2563 = vpop.f32.mrb[0].mxu0
      %v2564 = vadd.f32 0.0, %v2563
      %v2565 = vpop.f32.mrb[0].mxu0
      %2566 = vmatprep.mubr.f32.mxu0 %v2340
      %2567 = vmatmul.mubr.f32.gmra.mrb[0].mxu0 %v2339
      %v2568 = vpop.f32.mrb[0].mxu0
      %v2569 = vadd.f32 0.0, %v2568
      %v2570 = vpop.f32.mrb[0].mxu0
      %2571 = vmatprep.mubr.f32.mxu0 %v2342
      %2572 = vmatmul.mubr.f32.gmra.mrb[0].mxu0 %v2341
      %v2573 = vpop.f32.mrb[0].mxu0
      %v2574 = vadd.f32 0.0, %v2573
      %v2575 = vpop.f32.mrb[0].mxu0
      %2576 = vmatprep.mubr.f32.mxu0 %v2344
      %2577 = vmatmul.mubr.f32.gmra.mrb[0].mxu0 %v2343
      %v2578 = vpop.f32.mrb[0].mxu0
      %v2579 = vadd.f32 0.0, %v2578
      %v2580 = vpop.f32.mrb[0].mxu0
      %2581 = vmatprep.mubr.f32.mxu0 %v2346
      %2582 = vmatmul.mubr.f32.gmra.mrb[0].mxu0 %v2345
      %v2583 = vpop.f32.mrb[0].mxu0
      %v2584 = vadd.f32 0.0, %v2583
      %v2585 = vpop.f32.mrb[0].mxu0
      %2586 = vmatprep.mubr.f32.mxu0 %v2348
      %2587 = vmatmul.mubr.f32.gmra.mrb[0].mxu0 %v2347
      %v2588 = vpop.f32.mrb[0].mxu0
      %v2589 = vadd.f32 0.0, %v2588
      %v2590 = vpop.f32.mrb[0].mxu0
      %2591 = vmatprep.mubr.f32.mxu0 %v2350
      %2592 = vmatmul.mubr.f32.gmra.mrb[0].mxu0 %v2349
      %v2593 = vpop.f32.mrb[0].mxu0
      %v2594 = vadd.f32 0.0, %v2593
      %v2595 = vpop.f32.mrb[0].mxu0
      %2596 = vmatprep.mubr.f32.mxu0 %v2352
      %2597 = vmatmul.mubr.f32.gmra.mrb[0].mxu0 %v2351
      %v2598 = vpop.f32.mrb[0].mxu0
      %v2599 = vadd.f32 0.0, %v2598
      %v2600 = vpop.f32.mrb[0].mxu0
      %2601 = vmatprep.mubr.f32.mxu0 %v2354
      %2602 = vmatmul.mubr.f32.gmra.mrb[0].mxu0 %v2353
      %v2603 = vpop.f32.mrb[0].mxu0
      %v2604 = vadd.f32 0.0, %v2603
      %v2605 = vpop.f32.mrb[0].mxu0
      %2606 = vmatprep.mubr.f32.mxu0 %v2356
      %2607 = vmatmul.mubr.f32.gmra.mrb[0].mxu0 %v2355
      %v2608 = vpop.f32.mrb[0].mxu0
      %v2609 = vadd.f32 0.0, %v2608
      %v2610 = vpop.f32.mrb[0].mxu0
      %2611 = vmatprep.mubr.f32.mxu0 %v2358
      %2612 = vmatmul.mubr.f32.gmra.mrb[0].mxu0 %v2357
      %v2613 = vpop.f32.mrb[0].mxu0
      %v2614 = vadd.f32 0.0, %v2613
      %v2615 = vpop.f32.mrb[0].mxu0
      %2616 = vmatprep.mubr.f32.mxu0 %v2360
      %2617 = vmatmul.mubr.f32.gmra.mrb[0].mxu0 %v2359
      %v2618 = vpop.f32.mrb[0].mxu0
      %v2619 = vadd.f32 0.0, %v2618
      %v2620 = vpop.f32.mrb[0].mxu0
      %2621 = vmatprep.mubr.f32.mxu0 %v2362
      %2622 = vmatmul.mubr.f32.gmra.mrb[0].mxu0 %v2361
      %v2623 = vpop.f32.mrb[0].mxu0
      %v2624 = vadd.f32 0.0, %v2623
      %v2625 = vpop.f32.mrb[0].mxu0
      %2626 = vmatprep.mubr.f32.mxu0 %v2364
      %2627 = vmatmul.mubr.f32.gmra.mrb[0].mxu0 %v2363
      %v2628 = vpop.f32.mrb[0].mxu0
      %v2629 = vadd.f32 0.0, %v2628
      %v2630 = vpop.f32.mrb[0].mxu0
      %2631 = vmatprep.mubr.f32.mxu0 %v2366
      %2632 = vmatmul.mubr.f32.gmra.mrb[0].mxu0 %v2365
      %v2633 = vpop.f32.mrb[0].mxu0
      %v2634 = vadd.f32 0.0, %v2633
      %v2635 = vpop.f32.mrb[0].mxu0
      %2636 = vmatprep.mubr.f32.mxu0 %v2368
      %2637 = vmatmul.mubr.f32.gmra.mrb[0].mxu0 %v2367
      %v2638 = vpop.f32.mrb[0].mxu0
      %v2639 = vadd.f32 0.0, %v2638
      %v2640 = vpop.f32.mrb[0].mxu0
      %2641 = vdwg.mxu0
      %2642 = vrot.lane.b32.xlu0 %v571, 64
      %v2643 = vpop.permute.xlu0 %2642
      %2644 = vrot.lane.b32.xlu0 %v572, 64
      %v2645 = vpop.permute.xlu0 %2644
      %2646 = vrot.lane.b32.xlu0 %v573, 64
      %v2647 = vpop.permute.xlu0 %2646
      %2648 = vrot.lane.b32.xlu0 %v574, 64
      %v2649 = vpop.permute.xlu0 %2648
      %2650 = vrot.lane.b32.xlu0 %v575, 64
      %v2651 = vpop.permute.xlu0 %2650
      %2652 = vrot.lane.b32.xlu0 %v576, 64
      %v2653 = vpop.permute.xlu0 %2652
      %2654 = vrot.lane.b32.xlu0 %v577, 64
      %v2655 = vpop.permute.xlu0 %2654
      %2656 = vrot.lane.b32.xlu0 %v578, 64
      %v2657 = vpop.permute.xlu0 %2656
      %2658 = vrot.lane.b32.xlu0 %v579, 64
      %v2659 = vpop.permute.xlu0 %2658
      %2660 = vrot.lane.b32.xlu0 %v580, 64
      %v2661 = vpop.permute.xlu0 %2660
      %2662 = vrot.lane.b32.xlu0 %v581, 64
      %v2663 = vpop.permute.xlu0 %2662
      %2664 = vrot.lane.b32.xlu0 %v582, 64
      %v2665 = vpop.permute.xlu0 %2664
      %2666 = vrot.lane.b32.xlu0 %v583, 64
      %v2667 = vpop.permute.xlu0 %2666
      %2668 = vrot.lane.b32.xlu0 %v584, 64
      %v2669 = vpop.permute.xlu0 %2668
      %2670 = vrot.lane.b32.xlu0 %v585, 64
      %v2671 = vpop.permute.xlu0 %2670
      %2672 = vrot.lane.b32.xlu0 %v586, 64
      %v2673 = vpop.permute.xlu0 %2672
      %2674 = vrot.lane.b32.xlu0 %v750, 64
      %v2675 = vpop.permute.xlu0 %2674
      %2676 = vrot.lane.b32.xlu0 %v753, 64
      %v2677 = vpop.permute.xlu0 %2676
      %2678 = vrot.lane.b32.xlu0 %v758, 64
      %v2679 = vpop.permute.xlu0 %2678
      %2680 = vrot.lane.b32.xlu0 %v761, 64
      %v2681 = vpop.permute.xlu0 %2680
      %2682 = vrot.lane.b32.xlu0 %v766, 64
      %v2683 = vpop.permute.xlu0 %2682
      %2684 = vrot.lane.b32.xlu0 %v769, 64
      %v2685 = vpop.permute.xlu0 %2684
      %2686 = vrot.lane.b32.xlu0 %v774, 64
      %v2687 = vpop.permute.xlu0 %2686
      %2688 = vrot.lane.b32.xlu0 %v777, 64
      %v2689 = vpop.permute.xlu0 %2688
      %2690 = vrot.lane.b32.xlu0 %v782, 64
      %v2691 = vpop.permute.xlu0 %2690
      %2692 = vrot.lane.b32.xlu0 %v785, 64
      %v2693 = vpop.permute.xlu0 %2692
      %2694 = vrot.lane.b32.xlu0 %v790, 64
      %v2695 = vpop.permute.xlu0 %2694
      %2696 = vrot.lane.b32.xlu0 %v793, 64
      %v2697 = vpop.permute.xlu0 %2696
      %2698 = vrot.lane.b32.xlu0 %v798, 64
      %v2699 = vpop.permute.xlu0 %2698
      %2700 = vrot.lane.b32.xlu0 %v801, 64
      %v2701 = vpop.permute.xlu0 %2700
      %2702 = vrot.lane.b32.xlu0 %v806, 64
      %v2703 = vpop.permute.xlu0 %2702
      %2704 = vrot.lane.b32.xlu0 %v809, 64
      %v2705 = vpop.permute.xlu0 %2704
      %2706 = vrot.lane.b32.xlu0 %v814, 64
      %v2707 = vpop.permute.xlu0 %2706
      %2708 = vrot.lane.b32.xlu0 %v817, 64
      %v2709 = vpop.permute.xlu0 %2708
      %2710 = vrot.lane.b32.xlu0 %v822, 64
      %v2711 = vpop.permute.xlu0 %2710
      %2712 = vrot.lane.b32.xlu0 %v825, 64
      %v2713 = vpop.permute.xlu0 %2712
      %2714 = vrot.lane.b32.xlu0 %v830, 64
      %v2715 = vpop.permute.xlu0 %2714
      %2716 = vrot.lane.b32.xlu0 %v833, 64
      %v2717 = vpop.permute.xlu0 %2716
      %2718 = vrot.lane.b32.xlu0 %v838, 64
      %v2719 = vpop.permute.xlu0 %2718
      %2720 = vrot.lane.b32.xlu0 %v841, 64
      %v2721 = vpop.permute.xlu0 %2720
      %2722 = vrot.lane.b32.xlu0 %v846, 64
      %v2723 = vpop.permute.xlu0 %2722
      %2724 = vrot.lane.b32.xlu0 %v849, 64
      %v2725 = vpop.permute.xlu0 %2724
      %2726 = vrot.lane.b32.xlu0 %v854, 64
      %v2727 = vpop.permute.xlu0 %2726
      %2728 = vrot.lane.b32.xlu0 %v857, 64
      %v2729 = vpop.permute.xlu0 %2728
      %2730 = vrot.lane.b32.xlu0 %v862, 64
      %v2731 = vpop.permute.xlu0 %2730
      %2732 = vrot.lane.b32.xlu0 %v865, 64
      %v2733 = vpop.permute.xlu0 %2732
      %2734 = vrot.lane.b32.xlu0 %v870, 64
      %v2735 = vpop.permute.xlu0 %2734
      %2736 = vrot.lane.b32.xlu0 %v873, 64
      %v2737 = vpop.permute.xlu0 %2736
      %v2738 = vsel %vm1085, %v2643, 0
      %v2740 = vsel %vm1085, %v2645, 0
      %v2742 = vsel %vm1085, %v2647, 0
      %v2744 = vsel %vm1085, %v2649, 0
      %v2746 = vsel %vm1085, %v2651, 0
      %v2748 = vsel %vm1085, %v2653, 0
      %v2750 = vsel %vm1085, %v2655, 0
      %v2752 = vsel %vm1085, %v2657, 0
      %v2754 = vsel %vm1085, %v2659, 0
      %v2756 = vsel %vm1085, %v2661, 0
      %v2758 = vsel %vm1085, %v2663, 0
      %v2760 = vsel %vm1085, %v2665, 0
      %v2762 = vsel %vm1085, %v2667, 0
      %v2764 = vsel %vm1085, %v2669, 0
      %v2766 = vsel %vm1085, %v2671, 0
      %v2768 = vsel %vm1085, %v2673, 0
      %v2770 = vsel %vm1085, %v2675, 0
      %v2772 = vsel %vm1085, %v2677, 0
      %v2774 = vsel %vm1085, %v2679, 0
      %v2776 = vsel %vm1085, %v2681, 0
      %v2778 = vsel %vm1085, %v2683, 0
      %v2780 = vsel %vm1085, %v2685, 0
      %v2782 = vsel %vm1085, %v2687, 0
      %v2784 = vsel %vm1085, %v2689, 0
      %v2786 = vsel %vm1085, %v2691, 0
      %v2788 = vsel %vm1085, %v2693, 0
      %v2790 = vsel %vm1085, %v2695, 0
      %v2792 = vsel %vm1085, %v2697, 0
      %v2794 = vsel %vm1085, %v2699, 0
      %v2796 = vsel %vm1085, %v2701, 0
      %v2798 = vsel %vm1085, %v2703, 0
      %v2800 = vsel %vm1085, %v2705, 0
      %v2802 = vsel %vm1085, %v2707, 0
      %v2804 = vsel %vm1085, %v2709, 0
      %v2806 = vsel %vm1085, %v2711, 0
      %v2808 = vsel %vm1085, %v2713, 0
      %v2810 = vsel %vm1085, %v2715, 0
      %v2812 = vsel %vm1085, %v2717, 0
      %v2814 = vsel %vm1085, %v2719, 0
      %v2816 = vsel %vm1085, %v2721, 0
      %v2818 = vsel %vm1085, %v2723, 0
      %v2820 = vsel %vm1085, %v2725, 0
      %v2822 = vsel %vm1085, %v2727, 0
      %v2824 = vsel %vm1085, %v2729, 0
      %v2826 = vsel %vm1085, %v2731, 0
      %v2828 = vsel %vm1085, %v2733, 0
      %v2830 = vsel %vm1085, %v2735, 0
      %v2832 = vsel %vm1085, %v2737, 0
      %2834 = vmatprep.subr.mxu0 0.0
      %2835 = vmatpush1.xpose.msra.mxu0 %v2770
      %2836 = vmatprep.subr.mxu0 0.0
      %2837 = vmatpush1.xpose.msra.mxu0 %v2772
      %2838 = vmatprep.subr.mxu0 0.0
      %2839 = vmatpush1.xpose.msra.mxu0 %v2774
      %2840 = vmatprep.subr.mxu0 0.0
      %2841 = vmatpush1.xpose.msra.mxu0 %v2776
      %2842 = vmatprep.subr.mxu0 0.0
      %2843 = vmatpush1.xpose.msra.mxu0 %v2778
      %2844 = vmatprep.subr.mxu0 0.0
      %2845 = vmatpush1.xpose.msra.mxu0 %v2780
      %2846 = vmatprep.subr.mxu0 0.0
      %2847 = vmatpush1.xpose.msra.mxu0 %v2782
      %2848 = vmatprep.subr.mxu0 0.0
      %2849 = vmatpush1.xpose.msra.mxu0 %v2784
      %2850 = vmatprep.subr.mxu0 0.0
      %2851 = vmatpush1.xpose.msra.mxu0 %v2786
      %2852 = vmatprep.subr.mxu0 0.0
      %2853 = vmatpush1.xpose.msra.mxu0 %v2788
      %2854 = vmatprep.subr.mxu0 0.0
      %2855 = vmatpush1.xpose.msra.mxu0 %v2790
      %2856 = vmatprep.subr.mxu0 0.0
      %2857 = vmatpush1.xpose.msra.mxu0 %v2792
      %2858 = vmatprep.subr.mxu0 0.0
      %2859 = vmatpush1.xpose.msra.mxu0 %v2794
      %2860 = vmatprep.subr.mxu0 0.0
      %2861 = vmatpush1.xpose.msra.mxu0 %v2796
      %2862 = vmatprep.subr.mxu0 0.0
      %2863 = vmatpush1.xpose.msra.mxu0 %v2798
      %2864 = vmatprep.subr.mxu0 0.0
      %2865 = vmatpush1.xpose.msra.mxu0 %v2800
      %2866 = vmatprep.subr.mxu0 0.0
      %2867 = vmatpush1.xpose.msra.mxu0 %v2802
      %2868 = vmatprep.subr.mxu0 0.0
      %2869 = vmatpush1.xpose.msra.mxu0 %v2804
      %2870 = vmatprep.subr.mxu0 0.0
      %2871 = vmatpush1.xpose.msra.mxu0 %v2806
      %2872 = vmatprep.subr.mxu0 0.0
      %2873 = vmatpush1.xpose.msra.mxu0 %v2808
      %2874 = vmatprep.subr.mxu0 0.0
      %2875 = vmatpush1.xpose.msra.mxu0 %v2810
      %2876 = vmatprep.subr.mxu0 0.0
      %2877 = vmatpush1.xpose.msra.mxu0 %v2812
      %2878 = vmatprep.subr.mxu0 0.0
      %2879 = vmatpush1.xpose.msra.mxu0 %v2814
      %2880 = vmatprep.subr.mxu0 0.0
      %2881 = vmatpush1.xpose.msra.mxu0 %v2816
      %2882 = vmatprep.subr.mxu0 0.0
      %2883 = vmatpush1.xpose.msra.mxu0 %v2818
      %2884 = vmatprep.subr.mxu0 0.0
      %2885 = vmatpush1.xpose.msra.mxu0 %v2820
      %2886 = vmatprep.subr.mxu0 0.0
      %2887 = vmatpush1.xpose.msra.mxu0 %v2822
      %2888 = vmatprep.subr.mxu0 0.0
      %2889 = vmatpush1.xpose.msra.mxu0 %v2824
      %2890 = vmatprep.subr.mxu0 0.0
      %2891 = vmatpush1.xpose.msra.mxu0 %v2826
      %2892 = vmatprep.subr.mxu0 0.0
      %2893 = vmatpush1.xpose.msra.mxu0 %v2828
      %2894 = vmatprep.subr.mxu0 0.0
      %2895 = vmatpush1.xpose.msra.mxu0 %v2830
      %2896 = vmatprep.subr.mxu0 0.0
      %2897 = vmatpush1.xpose.msra.mxu0 %v2832
      %2898 = vmatprep.mubr.f32.mxu0 0.0
      %2899 = vmatmul.mubr.f32.gmra.mrb[0].mxu0 %v2738
      %v2900 = vpop.f32.mrb[0].mxu0
      %v2901 = vadd.f32 0.0, %v2900
      %v2902 = vpop.f32.mrb[0].mxu0
      %v2903 = vadd.f32 0.0, %v2902
      %2904 = vmatprep.mubr.f32.mxu0 0.0
      %2905 = vmatmul.mubr.f32.gmra.mrb[0].mxu0 %v2740
      %v2906 = vpop.f32.mrb[0].mxu0
      %v2907 = vadd.f32 0.0, %v2906
      %v2908 = vpop.f32.mrb[0].mxu0
      %v2909 = vadd.f32 0.0, %v2908
      %2910 = vmatprep.mubr.f32.mxu0 0.0
      %2911 = vmatmul.mubr.f32.gmra.mrb[0].mxu0 %v2742
      %v2912 = vpop.f32.mrb[0].mxu0
      %v2913 = vadd.f32 0.0, %v2912
      %v2914 = vpop.f32.mrb[0].mxu0
      %v2915 = vadd.f32 0.0, %v2914
      %2916 = vmatprep.mubr.f32.mxu0 0.0
      %2917 = vmatmul.mubr.f32.gmra.mrb[0].mxu0 %v2744
      %v2918 = vpop.f32.mrb[0].mxu0
      %v2919 = vadd.f32 0.0, %v2918
      %v2920 = vpop.f32.mrb[0].mxu0
      %v2921 = vadd.f32 0.0, %v2920
      %2922 = vmatprep.mubr.f32.mxu0 0.0
      %2923 = vmatmul.mubr.f32.gmra.mrb[0].mxu0 %v2746
      %v2924 = vpop.f32.mrb[0].mxu0
      %v2925 = vadd.f32 0.0, %v2924
      %v2926 = vpop.f32.mrb[0].mxu0
      %v2927 = vadd.f32 0.0, %v2926
      %2928 = vmatprep.mubr.f32.mxu0 0.0
      %2929 = vmatmul.mubr.f32.gmra.mrb[0].mxu0 %v2748
      %v2930 = vpop.f32.mrb[0].mxu0
      %v2931 = vadd.f32 0.0, %v2930
      %v2932 = vpop.f32.mrb[0].mxu0
      %v2933 = vadd.f32 0.0, %v2932
      %2934 = vmatprep.mubr.f32.mxu0 0.0
      %2935 = vmatmul.mubr.f32.gmra.mrb[0].mxu0 %v2750
      %v2936 = vpop.f32.mrb[0].mxu0
      %v2937 = vadd.f32 0.0, %v2936
      %v2938 = vpop.f32.mrb[0].mxu0
      %v2939 = vadd.f32 0.0, %v2938
      %2940 = vmatprep.mubr.f32.mxu0 0.0
      %2941 = vmatmul.mubr.f32.gmra.mrb[0].mxu0 %v2752
      %v2942 = vpop.f32.mrb[0].mxu0
      %v2943 = vadd.f32 0.0, %v2942
      %v2944 = vpop.f32.mrb[0].mxu0
      %v2945 = vadd.f32 0.0, %v2944
      %2946 = vmatprep.mubr.f32.mxu0 0.0
      %2947 = vmatmul.mubr.f32.gmra.mrb[0].mxu0 %v2754
      %v2948 = vpop.f32.mrb[0].mxu0
      %v2949 = vadd.f32 0.0, %v2948
      %v2950 = vpop.f32.mrb[0].mxu0
      %v2951 = vadd.f32 0.0, %v2950
      %2952 = vmatprep.mubr.f32.mxu0 0.0
      %2953 = vmatmul.mubr.f32.gmra.mrb[0].mxu0 %v2756
      %v2954 = vpop.f32.mrb[0].mxu0
      %v2955 = vadd.f32 0.0, %v2954
      %v2956 = vpop.f32.mrb[0].mxu0
      %v2957 = vadd.f32 0.0, %v2956
      %2958 = vmatprep.mubr.f32.mxu0 0.0
      %2959 = vmatmul.mubr.f32.gmra.mrb[0].mxu0 %v2758
      %v2960 = vpop.f32.mrb[0].mxu0
      %v2961 = vadd.f32 0.0, %v2960
      %v2962 = vpop.f32.mrb[0].mxu0
      %v2963 = vadd.f32 0.0, %v2962
      %2964 = vmatprep.mubr.f32.mxu0 0.0
      %2965 = vmatmul.mubr.f32.gmra.mrb[0].mxu0 %v2760
      %v2966 = vpop.f32.mrb[0].mxu0
      %v2967 = vadd.f32 0.0, %v2966
      %v2968 = vpop.f32.mrb[0].mxu0
      %v2969 = vadd.f32 0.0, %v2968
      %2970 = vmatprep.mubr.f32.mxu0 0.0
      %2971 = vmatmul.mubr.f32.gmra.mrb[0].mxu0 %v2762
      %v2972 = vpop.f32.mrb[0].mxu0
      %v2973 = vadd.f32 0.0, %v2972
      %v2974 = vpop.f32.mrb[0].mxu0
      %v2975 = vadd.f32 0.0, %v2974
      %2976 = vmatprep.mubr.f32.mxu0 0.0
      %2977 = vmatmul.mubr.f32.gmra.mrb[0].mxu0 %v2764
      %v2978 = vpop.f32.mrb[0].mxu0
      %v2979 = vadd.f32 0.0, %v2978
      %v2980 = vpop.f32.mrb[0].mxu0
      %v2981 = vadd.f32 0.0, %v2980
      %2982 = vmatprep.mubr.f32.mxu0 0.0
      %2983 = vmatmul.mubr.f32.gmra.mrb[0].mxu0 %v2766
      %v2984 = vpop.f32.mrb[0].mxu0
      %v2985 = vadd.f32 0.0, %v2984
      %v2986 = vpop.f32.mrb[0].mxu0
      %v2987 = vadd.f32 0.0, %v2986
      %2988 = vmatprep.mubr.f32.mxu0 0.0
      %2989 = vmatmul.mubr.f32.gmra.mrb[0].mxu0 %v2768
      %v2990 = vpop.f32.mrb[0].mxu0
      %v2991 = vadd.f32 0.0, %v2990
      %v2992 = vpop.f32.mrb[0].mxu0
      %v2993 = vadd.f32 0.0, %v2992
      %2994 = vdwg.mxu0
      %v2995 = vmax.f32 %v2901, %v2903
      %2996 = vmax.xlane.f32.xlu0 %v2995
      %v2997 = vpop.xlane.xlu0 %2996
      %v2998 = vmax.f32 %v2907, %v2909
      %2999 = vmax.xlane.f32.xlu0 %v2998
      %v3000 = vpop.xlane.xlu0 %2999
      %v3001 = vmax.f32 %v2913, %v2915
      %3002 = vmax.xlane.f32.xlu0 %v3001
      %v3003 = vpop.xlane.xlu0 %3002
      %v3004 = vmax.f32 %v2919, %v2921
      %3005 = vmax.xlane.f32.xlu0 %v3004
      %v3006 = vpop.xlane.xlu0 %3005
      %v3007 = vmax.f32 %v2925, %v2927
      %3008 = vmax.xlane.f32.xlu0 %v3007
      %v3009 = vpop.xlane.xlu0 %3008
      %v3010 = vmax.f32 %v2931, %v2933
      %3011 = vmax.xlane.f32.xlu0 %v3010
      %v3012 = vpop.xlane.xlu0 %3011
      %v3013 = vmax.f32 %v2937, %v2939
      %3014 = vmax.xlane.f32.xlu0 %v3013
      %v3015 = vpop.xlane.xlu0 %3014
      %v3016 = vmax.f32 %v2943, %v2945
      %3017 = vmax.xlane.f32.xlu0 %v3016
      %v3018 = vpop.xlane.xlu0 %3017
      %v3019 = vmax.f32 %v2949, %v2951
      %3020 = vmax.xlane.f32.xlu0 %v3019
      %v3021 = vpop.xlane.xlu0 %3020
      %v3022 = vmax.f32 %v2955, %v2957
      %3023 = vmax.xlane.f32.xlu0 %v3022
      %v3024 = vpop.xlane.xlu0 %3023
      %v3025 = vmax.f32 %v2961, %v2963
      %3026 = vmax.xlane.f32.xlu0 %v3025
      %v3027 = vpop.xlane.xlu0 %3026
      %v3028 = vmax.f32 %v2967, %v2969
      %3029 = vmax.xlane.f32.xlu0 %v3028
      %v3030 = vpop.xlane.xlu0 %3029
      %v3031 = vmax.f32 %v2973, %v2975
      %3032 = vmax.xlane.f32.xlu0 %v3031
      %v3033 = vpop.xlane.xlu0 %3032
      %v3034 = vmax.f32 %v2979, %v2981
      %3035 = vmax.xlane.f32.xlu0 %v3034
      %v3036 = vpop.xlane.xlu0 %3035
      %v3037 = vmax.f32 %v2985, %v2987
      %3038 = vmax.xlane.f32.xlu0 %v3037
      %v3039 = vpop.xlane.xlu0 %3038
      %v3040 = vmax.f32 %v2991, %v2993
      %3041 = vmax.xlane.f32.xlu0 %v3040
      %v3042 = vpop.xlane.xlu0 %3041
      %v3043 = vsub.f32 %v2901, %v2997
      %v3044 = vsub.f32 %v2903, %v2997
      %v3045 = vsub.f32 %v2907, %v3000
      %v3046 = vsub.f32 %v2909, %v3000
      %v3047 = vsub.f32 %v2913, %v3003
      %v3048 = vsub.f32 %v2915, %v3003
      %v3049 = vsub.f32 %v2919, %v3006
      %v3050 = vsub.f32 %v2921, %v3006
      %v3051 = vsub.f32 %v2925, %v3009
      %v3052 = vsub.f32 %v2927, %v3009
      %v3053 = vsub.f32 %v2931, %v3012
      %v3054 = vsub.f32 %v2933, %v3012
      %v3055 = vsub.f32 %v2937, %v3015
      %v3056 = vsub.f32 %v2939, %v3015
      %v3057 = vsub.f32 %v2943, %v3018
      %v3058 = vsub.f32 %v2945, %v3018
      %v3059 = vsub.f32 %v2949, %v3021
      %v3060 = vsub.f32 %v2951, %v3021
      %v3061 = vsub.f32 %v2955, %v3024
      %v3062 = vsub.f32 %v2957, %v3024
      %v3063 = vsub.f32 %v2961, %v3027
      %v3064 = vsub.f32 %v2963, %v3027
      %v3065 = vsub.f32 %v2967, %v3030
      %v3066 = vsub.f32 %v2969, %v3030
      %v3067 = vsub.f32 %v2973, %v3033
      %v3068 = vsub.f32 %v2975, %v3033
      %v3069 = vsub.f32 %v2979, %v3036
      %v3070 = vsub.f32 %v2981, %v3036
      %v3071 = vsub.f32 %v2985, %v3039
      %v3072 = vsub.f32 %v2987, %v3039
      %v3073 = vsub.f32 %v2991, %v3042
      %v3074 = vsub.f32 %v2993, %v3042
      %v3075 = vmul.f32 %v3043, 1.442695
      %v3076 = vpow.pop %v3075
      %v3077 = vmul.f32 %v3044, 1.442695
      %v3078 = vpow.pop %v3077
      %v3079 = vmul.f32 %v3045, 1.442695
      %v3080 = vpow.pop %v3079
      %v3081 = vmul.f32 %v3046, 1.442695
      %v3082 = vpow.pop %v3081
      %v3083 = vmul.f32 %v3047, 1.442695
      %v3084 = vpow.pop %v3083
      %v3085 = vmul.f32 %v3048, 1.442695
      %v3086 = vpow.pop %v3085
      %v3087 = vmul.f32 %v3049, 1.442695
      %v3088 = vpow.pop %v3087
      %v3089 = vmul.f32 %v3050, 1.442695
      %v3090 = vpow.pop %v3089
      %v3091 = vmul.f32 %v3051, 1.442695
      %v3092 = vpow.pop %v3091
      %v3093 = vmul.f32 %v3052, 1.442695
      %v3094 = vpow.pop %v3093
      %v3095 = vmul.f32 %v3053, 1.442695
      %v3096 = vpow.pop %v3095
      %v3097 = vmul.f32 %v3054, 1.442695
      %v3098 = vpow.pop %v3097
      %v3099 = vmul.f32 %v3055, 1.442695
      %v3100 = vpow.pop %v3099
      %v3101 = vmul.f32 %v3056, 1.442695
      %v3102 = vpow.pop %v3101
      %v3103 = vmul.f32 %v3057, 1.442695
      %v3104 = vpow.pop %v3103
      %v3105 = vmul.f32 %v3058, 1.442695
      %v3106 = vpow.pop %v3105
      %v3107 = vmul.f32 %v3059, 1.442695
      %v3108 = vpow.pop %v3107
      %v3109 = vmul.f32 %v3060, 1.442695
      %v3110 = vpow.pop %v3109
      %v3111 = vmul.f32 %v3061, 1.442695
      %v3112 = vpow.pop %v3111
      %v3113 = vmul.f32 %v3062, 1.442695
      %v3114 = vpow.pop %v3113
      %v3115 = vmul.f32 %v3063, 1.442695
      %v3116 = vpow.pop %v3115
      %v3117 = vmul.f32 %v3064, 1.442695
      %v3118 = vpow.pop %v3117
      %v3119 = vmul.f32 %v3065, 1.442695
      %v3120 = vpow.pop %v3119
      %v3121 = vmul.f32 %v3066, 1.442695
      %v3122 = vpow.pop %v3121
      %v3123 = vmul.f32 %v3067, 1.442695
      %v3124 = vpow.pop %v3123
      %v3125 = vmul.f32 %v3068, 1.442695
      %v3126 = vpow.pop %v3125
      %v3127 = vmul.f32 %v3069, 1.442695
      %v3128 = vpow.pop %v3127
      %v3129 = vmul.f32 %v3070, 1.442695
      %v3130 = vpow.pop %v3129
      %v3131 = vmul.f32 %v3071, 1.442695
      %v3132 = vpow.pop %v3131
      %v3133 = vmul.f32 %v3072, 1.442695
      %v3134 = vpow.pop %v3133
      %v3135 = vmul.f32 %v3073, 1.442695
      %v3136 = vpow.pop %v3135
      %v3137 = vmul.f32 %v3074, 1.442695
      %v3138 = vpow.pop %v3137
      %v3139 = vadd.f32 %v3076, %v3078
      %3140 = vadd.xlane.f32.xlu0 %v3139
      %v3141 = vpop.xlane.xlu0 %3140
      %v3142 = vadd.f32 %v3080, %v3082
      %3143 = vadd.xlane.f32.xlu0 %v3142
      %v3144 = vpop.xlane.xlu0 %3143
      %v3145 = vadd.f32 %v3084, %v3086
      %3146 = vadd.xlane.f32.xlu0 %v3145
      %v3147 = vpop.xlane.xlu0 %3146
      %v3148 = vadd.f32 %v3088, %v3090
      %3149 = vadd.xlane.f32.xlu0 %v3148
      %v3150 = vpop.xlane.xlu0 %3149
      %v3151 = vadd.f32 %v3092, %v3094
      %3152 = vadd.xlane.f32.xlu0 %v3151
      %v3153 = vpop.xlane.xlu0 %3152
      %v3154 = vadd.f32 %v3096, %v3098
      %3155 = vadd.xlane.f32.xlu0 %v3154
      %v3156 = vpop.xlane.xlu0 %3155
      %v3157 = vadd.f32 %v3100, %v3102
      %3158 = vadd.xlane.f32.xlu0 %v3157
      %v3159 = vpop.xlane.xlu0 %3158
      %v3160 = vadd.f32 %v3104, %v3106
      %3161 = vadd.xlane.f32.xlu0 %v3160
      %v3162 = vpop.xlane.xlu0 %3161
      %v3163 = vadd.f32 %v3108, %v3110
      %3164 = vadd.xlane.f32.xlu0 %v3163
      %v3165 = vpop.xlane.xlu0 %3164
      %v3166 = vadd.f32 %v3112, %v3114
      %3167 = vadd.xlane.f32.xlu0 %v3166
      %v3168 = vpop.xlane.xlu0 %3167
      %v3169 = vadd.f32 %v3116, %v3118
      %3170 = vadd.xlane.f32.xlu0 %v3169
      %v3171 = vpop.xlane.xlu0 %3170
      %v3172 = vadd.f32 %v3120, %v3122
      %3173 = vadd.xlane.f32.xlu0 %v3172
      %v3174 = vpop.xlane.xlu0 %3173
      %v3175 = vadd.f32 %v3124, %v3126
      %3176 = vadd.xlane.f32.xlu0 %v3175
      %v3177 = vpop.xlane.xlu0 %3176
      %v3178 = vadd.f32 %v3128, %v3130
      %3179 = vadd.xlane.f32.xlu0 %v3178
      %v3180 = vpop.xlane.xlu0 %3179
      %v3181 = vadd.f32 %v3132, %v3134
      %3182 = vadd.xlane.f32.xlu0 %v3181
      %v3183 = vpop.xlane.xlu0 %3182
      %v3184 = vadd.f32 %v3136, %v3138
      %3185 = vadd.xlane.f32.xlu0 %v3184
      %v3186 = vpop.xlane.xlu0 %3185
      %v3187 = vrcp.pop %v3141
      %v3188 = vrcp.pop %v3144
      %v3189 = vrcp.pop %v3147
      %v3190 = vrcp.pop %v3150
      %v3191 = vrcp.pop %v3153
      %v3192 = vrcp.pop %v3156
      %v3193 = vrcp.pop %v3159
      %v3194 = vrcp.pop %v3162
      %v3195 = vrcp.pop %v3165
      %v3196 = vrcp.pop %v3168
      %v3197 = vrcp.pop %v3171
      %v3198 = vrcp.pop %v3174
      %v3199 = vrcp.pop %v3177
      %v3200 = vrcp.pop %v3180
      %v3201 = vrcp.pop %v3183
      %v3202 = vrcp.pop %v3186
      %v3203 = vmul.f32 %v3076, %v3187
      %v3204 = vmul.f32 %v3078, %v3187
      %v3205 = vmul.f32 %v3080, %v3188
      %v3206 = vmul.f32 %v3082, %v3188
      %v3207 = vmul.f32 %v3084, %v3189
      %v3208 = vmul.f32 %v3086, %v3189
      %v3209 = vmul.f32 %v3088, %v3190
      %v3210 = vmul.f32 %v3090, %v3190
      %v3211 = vmul.f32 %v3092, %v3191
      %v3212 = vmul.f32 %v3094, %v3191
      %v3213 = vmul.f32 %v3096, %v3192
      %v3214 = vmul.f32 %v3098, %v3192
      %v3215 = vmul.f32 %v3100, %v3193
      %v3216 = vmul.f32 %v3102, %v3193
      %v3217 = vmul.f32 %v3104, %v3194
      %v3218 = vmul.f32 %v3106, %v3194
      %v3219 = vmul.f32 %v3108, %v3195
      %v3220 = vmul.f32 %v3110, %v3195
      %v3221 = vmul.f32 %v3112, %v3196
      %v3222 = vmul.f32 %v3114, %v3196
      %v3223 = vmul.f32 %v3116, %v3197
      %v3224 = vmul.f32 %v3118, %v3197
      %v3225 = vmul.f32 %v3120, %v3198
      %v3226 = vmul.f32 %v3122, %v3198
      %v3227 = vmul.f32 %v3124, %v3199
      %v3228 = vmul.f32 %v3126, %v3199
      %v3229 = vmul.f32 %v3128, %v3200
      %v3230 = vmul.f32 %v3130, %v3200
      %v3231 = vmul.f32 %v3132, %v3201
      %v3232 = vmul.f32 %v3134, %v3201
      %v3233 = vmul.f32 %v3136, %v3202
      %v3234 = vmul.f32 %v3138, %v3202
      %3235 = vrot.lane.b32.xlu0 %v959, 64
      %v3236 = vpop.permute.xlu0 %3235
      %3237 = vrot.lane.b32.xlu0 %v962, 64
      %v3238 = vpop.permute.xlu0 %3237
      %3239 = vrot.lane.b32.xlu0 %v967, 64
      %v3240 = vpop.permute.xlu0 %3239
      %3241 = vrot.lane.b32.xlu0 %v970, 64
      %v3242 = vpop.permute.xlu0 %3241
      %3243 = vrot.lane.b32.xlu0 %v975, 64
      %v3244 = vpop.permute.xlu0 %3243
      %3245 = vrot.lane.b32.xlu0 %v978, 64
      %v3246 = vpop.permute.xlu0 %3245
      %3247 = vrot.lane.b32.xlu0 %v983, 64
      %v3248 = vpop.permute.xlu0 %3247
      %3249 = vrot.lane.b32.xlu0 %v986, 64
      %v3250 = vpop.permute.xlu0 %3249
      %3251 = vrot.lane.b32.xlu0 %v991, 64
      %v3252 = vpop.permute.xlu0 %3251
      %3253 = vrot.lane.b32.xlu0 %v994, 64
      %v3254 = vpop.permute.xlu0 %3253
      %3255 = vrot.lane.b32.xlu0 %v999, 64
      %v3256 = vpop.permute.xlu0 %3255
      %3257 = vrot.lane.b32.xlu0 %v1002, 64
      %v3258 = vpop.permute.xlu0 %3257
      %3259 = vrot.lane.b32.xlu0 %v1007, 64
      %v3260 = vpop.permute.xlu0 %3259
      %3261 = vrot.lane.b32.xlu0 %v1010, 64
      %v3262 = vpop.permute.xlu0 %3261
      %3263 = vrot.lane.b32.xlu0 %v1015, 64
      %v3264 = vpop.permute.xlu0 %3263
      %3265 = vrot.lane.b32.xlu0 %v1018, 64
      %v3266 = vpop.permute.xlu0 %3265
      %3267 = vrot.lane.b32.xlu0 %v1023, 64
      %v3268 = vpop.permute.xlu0 %3267
      %3269 = vrot.lane.b32.xlu0 %v1026, 64
      %v3270 = vpop.permute.xlu0 %3269
      %3271 = vrot.lane.b32.xlu0 %v1031, 64
      %v3272 = vpop.permute.xlu0 %3271
      %3273 = vrot.lane.b32.xlu0 %v1034, 64
      %v3274 = vpop.permute.xlu0 %3273
      %3275 = vrot.lane.b32.xlu0 %v1039, 64
      %v3276 = vpop.permute.xlu0 %3275
      %3277 = vrot.lane.b32.xlu0 %v1042, 64
      %v3278 = vpop.permute.xlu0 %3277
      %3279 = vrot.lane.b32.xlu0 %v1047, 64
      %v3280 = vpop.permute.xlu0 %3279
      %3281 = vrot.lane.b32.xlu0 %v1050, 64
      %v3282 = vpop.permute.xlu0 %3281
      %3283 = vrot.lane.b32.xlu0 %v1055, 64
      %v3284 = vpop.permute.xlu0 %3283
      %3285 = vrot.lane.b32.xlu0 %v1058, 64
      %v3286 = vpop.permute.xlu0 %3285
      %3287 = vrot.lane.b32.xlu0 %v1063, 64
      %v3288 = vpop.permute.xlu0 %3287
      %3289 = vrot.lane.b32.xlu0 %v1066, 64
      %v3290 = vpop.permute.xlu0 %3289
      %3291 = vrot.lane.b32.xlu0 %v1071, 64
      %v3292 = vpop.permute.xlu0 %3291
      %3293 = vrot.lane.b32.xlu0 %v1074, 64
      %v3294 = vpop.permute.xlu0 %3293
      %3295 = vrot.lane.b32.xlu0 %v1079, 64
      %v3296 = vpop.permute.xlu0 %3295
      %3297 = vrot.lane.b32.xlu0 %v1082, 64
      %v3298 = vpop.permute.xlu0 %3297
      %3331 = vmatprep.subr.mxu0 0.0
      %3332 = vmatpush1.msra.mxu0 %v3236
      %3333 = vmatprep.subr.mxu0 0.0
      %3334 = vmatpush1.msra.mxu0 %v3238
      %3335 = vmatprep.subr.mxu0 0.0
      %3336 = vmatpush1.msra.mxu0 %v3240
      %3337 = vmatprep.subr.mxu0 0.0
      %3338 = vmatpush1.msra.mxu0 %v3242
      %3339 = vmatprep.subr.mxu0 0.0
      %3340 = vmatpush1.msra.mxu0 %v3244
      %3341 = vmatprep.subr.mxu0 0.0
      %3342 = vmatpush1.msra.mxu0 %v3246
      %3343 = vmatprep.subr.mxu0 0.0
      %3344 = vmatpush1.msra.mxu0 %v3248
      %3345 = vmatprep.subr.mxu0 0.0
      %3346 = vmatpush1.msra.mxu0 %v3250
      %3347 = vmatprep.subr.mxu0 0.0
      %3348 = vmatpush1.msra.mxu0 %v3252
      %3349 = vmatprep.subr.mxu0 0.0
      %3350 = vmatpush1.msra.mxu0 %v3254
      %3351 = vmatprep.subr.mxu0 0.0
      %3352 = vmatpush1.msra.mxu0 %v3256
      %3353 = vmatprep.subr.mxu0 0.0
      %3354 = vmatpush1.msra.mxu0 %v3258
      %3355 = vmatprep.subr.mxu0 0.0
      %3356 = vmatpush1.msra.mxu0 %v3260
      %3357 = vmatprep.subr.mxu0 0.0
      %3358 = vmatpush1.msra.mxu0 %v3262
      %3359 = vmatprep.subr.mxu0 0.0
      %3360 = vmatpush1.msra.mxu0 %v3264
      %3361 = vmatprep.subr.mxu0 0.0
      %3362 = vmatpush1.msra.mxu0 %v3266
      %3363 = vmatprep.subr.mxu0 0.0
      %3364 = vmatpush1.msra.mxu0 %v3268
      %3365 = vmatprep.subr.mxu0 0.0
      %3366 = vmatpush1.msra.mxu0 %v3270
      %3367 = vmatprep.subr.mxu0 0.0
      %3368 = vmatpush1.msra.mxu0 %v3272
      %3369 = vmatprep.subr.mxu0 0.0
      %3370 = vmatpush1.msra.mxu0 %v3274
      %3371 = vmatprep.subr.mxu0 0.0
      %3372 = vmatpush1.msra.mxu0 %v3276
      %3373 = vmatprep.subr.mxu0 0.0
      %3374 = vmatpush1.msra.mxu0 %v3278
      %3375 = vmatprep.subr.mxu0 0.0
      %3376 = vmatpush1.msra.mxu0 %v3280
      %3377 = vmatprep.subr.mxu0 0.0
      %3378 = vmatpush1.msra.mxu0 %v3282
      %3379 = vmatprep.subr.mxu0 0.0
      %3380 = vmatpush1.msra.mxu0 %v3284
      %3381 = vmatprep.subr.mxu0 0.0
      %3382 = vmatpush1.msra.mxu0 %v3286
      %3383 = vmatprep.subr.mxu0 0.0
      %3384 = vmatpush1.msra.mxu0 %v3288
      %3385 = vmatprep.subr.mxu0 0.0
      %3386 = vmatpush1.msra.mxu0 %v3290
      %3387 = vmatprep.subr.mxu0 0.0
      %3388 = vmatpush1.msra.mxu0 %v3292
      %3389 = vmatprep.subr.mxu0 0.0
      %3390 = vmatpush1.msra.mxu0 %v3294
      %3391 = vmatprep.subr.mxu0 0.0
      %3392 = vmatpush1.msra.mxu0 %v3296
      %3393 = vmatprep.subr.mxu0 0.0
      %3394 = vmatpush1.msra.mxu0 %v3298
      %3395 = vmatprep.mubr.f32.mxu0 %v3204
      %3396 = vmatmul.mubr.f32.gmra.mrb[0].mxu0 %v3203
      %v3397 = vpop.f32.mrb[0].mxu0
      %v3398 = vadd.f32 0.0, %v3397
      %v3399 = vpop.f32.mrb[0].mxu0
      %3400 = vmatprep.mubr.f32.mxu0 %v3206
      %3401 = vmatmul.mubr.f32.gmra.mrb[0].mxu0 %v3205
      %v3402 = vpop.f32.mrb[0].mxu0
      %v3403 = vadd.f32 0.0, %v3402
      %v3404 = vpop.f32.mrb[0].mxu0
      %3405 = vmatprep.mubr.f32.mxu0 %v3208
      %3406 = vmatmul.mubr.f32.gmra.mrb[0].mxu0 %v3207
      %v3407 = vpop.f32.mrb[0].mxu0
      %v3408 = vadd.f32 0.0, %v3407
      %v3409 = vpop.f32.mrb[0].mxu0
      %3410 = vmatprep.mubr.f32.mxu0 %v3210
      %3411 = vmatmul.mubr.f32.gmra.mrb[0].mxu0 %v3209
      %v3412 = vpop.f32.mrb[0].mxu0
      %v3413 = vadd.f32 0.0, %v3412
      %v3414 = vpop.f32.mrb[0].mxu0
      %3415 = vmatprep.mubr.f32.mxu0 %v3212
      %3416 = vmatmul.mubr.f32.gmra.mrb[0].mxu0 %v3211
      %v3417 = vpop.f32.mrb[0].mxu0
      %v3418 = vadd.f32 0.0, %v3417
      %v3419 = vpop.f32.mrb[0].mxu0
      %3420 = vmatprep.mubr.f32.mxu0 %v3214
      %3421 = vmatmul.mubr.f32.gmra.mrb[0].mxu0 %v3213
      %v3422 = vpop.f32.mrb[0].mxu0
      %v3423 = vadd.f32 0.0, %v3422
      %v3424 = vpop.f32.mrb[0].mxu0
      %3425 = vmatprep.mubr.f32.mxu0 %v3216
      %3426 = vmatmul.mubr.f32.gmra.mrb[0].mxu0 %v3215
      %v3427 = vpop.f32.mrb[0].mxu0
      %v3428 = vadd.f32 0.0, %v3427
      %v3429 = vpop.f32.mrb[0].mxu0
      %3430 = vmatprep.mubr.f32.mxu0 %v3218
      %3431 = vmatmul.mubr.f32.gmra.mrb[0].mxu0 %v3217
      %v3432 = vpop.f32.mrb[0].mxu0
      %v3433 = vadd.f32 0.0, %v3432
      %v3434 = vpop.f32.mrb[0].mxu0
      %3435 = vmatprep.mubr.f32.mxu0 %v3220
      %3436 = vmatmul.mubr.f32.gmra.mrb[0].mxu0 %v3219
      %v3437 = vpop.f32.mrb[0].mxu0
      %v3438 = vadd.f32 0.0, %v3437
      %v3439 = vpop.f32.mrb[0].mxu0
      %3440 = vmatprep.mubr.f32.mxu0 %v3222
      %3441 = vmatmul.mubr.f32.gmra.mrb[0].mxu0 %v3221
      %v3442 = vpop.f32.mrb[0].mxu0
      %v3443 = vadd.f32 0.0, %v3442
      %v3444 = vpop.f32.mrb[0].mxu0
      %3445 = vmatprep.mubr.f32.mxu0 %v3224
      %3446 = vmatmul.mubr.f32.gmra.mrb[0].mxu0 %v3223
      %v3447 = vpop.f32.mrb[0].mxu0
      %v3448 = vadd.f32 0.0, %v3447
      %v3449 = vpop.f32.mrb[0].mxu0
      %3450 = vmatprep.mubr.f32.mxu0 %v3226
      %3451 = vmatmul.mubr.f32.gmra.mrb[0].mxu0 %v3225
      %v3452 = vpop.f32.mrb[0].mxu0
      %v3453 = vadd.f32 0.0, %v3452
      %v3454 = vpop.f32.mrb[0].mxu0
      %3455 = vmatprep.mubr.f32.mxu0 %v3228
      %3456 = vmatmul.mubr.f32.gmra.mrb[0].mxu0 %v3227
      %v3457 = vpop.f32.mrb[0].mxu0
      %v3458 = vadd.f32 0.0, %v3457
      %v3459 = vpop.f32.mrb[0].mxu0
      %3460 = vmatprep.mubr.f32.mxu0 %v3230
      %3461 = vmatmul.mubr.f32.gmra.mrb[0].mxu0 %v3229
      %v3462 = vpop.f32.mrb[0].mxu0
      %v3463 = vadd.f32 0.0, %v3462
      %v3464 = vpop.f32.mrb[0].mxu0
      %3465 = vmatprep.mubr.f32.mxu0 %v3232
      %3466 = vmatmul.mubr.f32.gmra.mrb[0].mxu0 %v3231
      %v3467 = vpop.f32.mrb[0].mxu0
      %v3468 = vadd.f32 0.0, %v3467
      %v3469 = vpop.f32.mrb[0].mxu0
      %3470 = vmatprep.mubr.f32.mxu0 %v3234
      %3471 = vmatmul.mubr.f32.gmra.mrb[0].mxu0 %v3233
      %v3472 = vpop.f32.mrb[0].mxu0
      %v3473 = vadd.f32 0.0, %v3472
      %v3474 = vpop.f32.mrb[0].mxu0
      %3475 = vdwg.mxu0
      %3476 = vrot.lane.b32.xlu0 %v571, 32
      %v3477 = vpop.permute.xlu0 %3476
      %3478 = vrot.lane.b32.xlu0 %v572, 32
      %v3479 = vpop.permute.xlu0 %3478
      %3480 = vrot.lane.b32.xlu0 %v573, 32
      %v3481 = vpop.permute.xlu0 %3480
      %3482 = vrot.lane.b32.xlu0 %v574, 32
      %v3483 = vpop.permute.xlu0 %3482
      %3484 = vrot.lane.b32.xlu0 %v575, 32
      %v3485 = vpop.permute.xlu0 %3484
      %3486 = vrot.lane.b32.xlu0 %v576, 32
      %v3487 = vpop.permute.xlu0 %3486
      %3488 = vrot.lane.b32.xlu0 %v577, 32
      %v3489 = vpop.permute.xlu0 %3488
      %3490 = vrot.lane.b32.xlu0 %v578, 32
      %v3491 = vpop.permute.xlu0 %3490
      %3492 = vrot.lane.b32.xlu0 %v579, 32
      %v3493 = vpop.permute.xlu0 %3492
      %3494 = vrot.lane.b32.xlu0 %v580, 32
      %v3495 = vpop.permute.xlu0 %3494
      %3496 = vrot.lane.b32.xlu0 %v581, 32
      %v3497 = vpop.permute.xlu0 %3496
      %3498 = vrot.lane.b32.xlu0 %v582, 32
      %v3499 = vpop.permute.xlu0 %3498
      %3500 = vrot.lane.b32.xlu0 %v583, 32
      %v3501 = vpop.permute.xlu0 %3500
      %3502 = vrot.lane.b32.xlu0 %v584, 32
      %v3503 = vpop.permute.xlu0 %3502
      %3504 = vrot.lane.b32.xlu0 %v585, 32
      %v3505 = vpop.permute.xlu0 %3504
      %3506 = vrot.lane.b32.xlu0 %v586, 32
      %v3507 = vpop.permute.xlu0 %3506
      %3508 = vrot.lane.b32.xlu0 %v750, 32
      %v3509 = vpop.permute.xlu0 %3508
      %3510 = vrot.lane.b32.xlu0 %v753, 32
      %v3511 = vpop.permute.xlu0 %3510
      %3512 = vrot.lane.b32.xlu0 %v758, 32
      %v3513 = vpop.permute.xlu0 %3512
      %3514 = vrot.lane.b32.xlu0 %v761, 32
      %v3515 = vpop.permute.xlu0 %3514
      %3516 = vrot.lane.b32.xlu0 %v766, 32
      %v3517 = vpop.permute.xlu0 %3516
      %3518 = vrot.lane.b32.xlu0 %v769, 32
      %v3519 = vpop.permute.xlu0 %3518
      %3520 = vrot.lane.b32.xlu0 %v774, 32
      %v3521 = vpop.permute.xlu0 %3520
      %3522 = vrot.lane.b32.xlu0 %v777, 32
      %v3523 = vpop.permute.xlu0 %3522
      %3524 = vrot.lane.b32.xlu0 %v782, 32
      %v3525 = vpop.permute.xlu0 %3524
      %3526 = vrot.lane.b32.xlu0 %v785, 32
      %v3527 = vpop.permute.xlu0 %3526
      %3528 = vrot.lane.b32.xlu0 %v790, 32
      %v3529 = vpop.permute.xlu0 %3528
      %3530 = vrot.lane.b32.xlu0 %v793, 32
      %v3531 = vpop.permute.xlu0 %3530
      %3532 = vrot.lane.b32.xlu0 %v798, 32
      %v3533 = vpop.permute.xlu0 %3532
      %3534 = vrot.lane.b32.xlu0 %v801, 32
      %v3535 = vpop.permute.xlu0 %3534
      %3536 = vrot.lane.b32.xlu0 %v806, 32
      %v3537 = vpop.permute.xlu0 %3536
      %3538 = vrot.lane.b32.xlu0 %v809, 32
      %v3539 = vpop.permute.xlu0 %3538
      %3540 = vrot.lane.b32.xlu0 %v814, 32
      %v3541 = vpop.permute.xlu0 %3540
      %3542 = vrot.lane.b32.xlu0 %v817, 32
      %v3543 = vpop.permute.xlu0 %3542
      %3544 = vrot.lane.b32.xlu0 %v822, 32
      %v3545 = vpop.permute.xlu0 %3544
      %3546 = vrot.lane.b32.xlu0 %v825, 32
      %v3547 = vpop.permute.xlu0 %3546
      %3548 = vrot.lane.b32.xlu0 %v830, 32
      %v3549 = vpop.permute.xlu0 %3548
      %3550 = vrot.lane.b32.xlu0 %v833, 32
      %v3551 = vpop.permute.xlu0 %3550
      %3552 = vrot.lane.b32.xlu0 %v838, 32
      %v3553 = vpop.permute.xlu0 %3552
      %3554 = vrot.lane.b32.xlu0 %v841, 32
      %v3555 = vpop.permute.xlu0 %3554
      %3556 = vrot.lane.b32.xlu0 %v846, 32
      %v3557 = vpop.permute.xlu0 %3556
      %3558 = vrot.lane.b32.xlu0 %v849, 32
      %v3559 = vpop.permute.xlu0 %3558
      %3560 = vrot.lane.b32.xlu0 %v854, 32
      %v3561 = vpop.permute.xlu0 %3560
      %3562 = vrot.lane.b32.xlu0 %v857, 32
      %v3563 = vpop.permute.xlu0 %3562
      %3564 = vrot.lane.b32.xlu0 %v862, 32
      %v3565 = vpop.permute.xlu0 %3564
      %3566 = vrot.lane.b32.xlu0 %v865, 32
      %v3567 = vpop.permute.xlu0 %3566
      %3568 = vrot.lane.b32.xlu0 %v870, 32
      %v3569 = vpop.permute.xlu0 %3568
      %3570 = vrot.lane.b32.xlu0 %v873, 32
      %v3571 = vpop.permute.xlu0 %3570
      %v3572 = vsel %vm1085, %v3477, 0
      %v3574 = vsel %vm1085, %v3479, 0
      %v3576 = vsel %vm1085, %v3481, 0
      %v3578 = vsel %vm1085, %v3483, 0
      %v3580 = vsel %vm1085, %v3485, 0
      %v3582 = vsel %vm1085, %v3487, 0
      %v3584 = vsel %vm1085, %v3489, 0
      %v3586 = vsel %vm1085, %v3491, 0
      %v3588 = vsel %vm1085, %v3493, 0
      %v3590 = vsel %vm1085, %v3495, 0
      %v3592 = vsel %vm1085, %v3497, 0
      %v3594 = vsel %vm1085, %v3499, 0
      %v3596 = vsel %vm1085, %v3501, 0
      %v3598 = vsel %vm1085, %v3503, 0
      %v3600 = vsel %vm1085, %v3505, 0
      %v3602 = vsel %vm1085, %v3507, 0
      %v3604 = vsel %vm1085, %v3509, 0
      %v3606 = vsel %vm1085, %v3511, 0
      %v3608 = vsel %vm1085, %v3513, 0
      %v3610 = vsel %vm1085, %v3515, 0
      %v3612 = vsel %vm1085, %v3517, 0
      %v3614 = vsel %vm1085, %v3519, 0
      %v3616 = vsel %vm1085, %v3521, 0
      %v3618 = vsel %vm1085, %v3523, 0
      %v3620 = vsel %vm1085, %v3525, 0
      %v3622 = vsel %vm1085, %v3527, 0
      %v3624 = vsel %vm1085, %v3529, 0
      %v3626 = vsel %vm1085, %v3531, 0
      %v3628 = vsel %vm1085, %v3533, 0
      %v3630 = vsel %vm1085, %v3535, 0
      %v3632 = vsel %vm1085, %v3537, 0
      %v3634 = vsel %vm1085, %v3539, 0
      %v3636 = vsel %vm1085, %v3541, 0
      %v3638 = vsel %vm1085, %v3543, 0
      %v3640 = vsel %vm1085, %v3545, 0
      %v3642 = vsel %vm1085, %v3547, 0
      %v3644 = vsel %vm1085, %v3549, 0
      %v3646 = vsel %vm1085, %v3551, 0
      %v3648 = vsel %vm1085, %v3553, 0
      %v3650 = vsel %vm1085, %v3555, 0
      %v3652 = vsel %vm1085, %v3557, 0
      %v3654 = vsel %vm1085, %v3559, 0
      %v3656 = vsel %vm1085, %v3561, 0
      %v3658 = vsel %vm1085, %v3563, 0
      %v3660 = vsel %vm1085, %v3565, 0
      %v3662 = vsel %vm1085, %v3567, 0
      %v3664 = vsel %vm1085, %v3569, 0
      %v3666 = vsel %vm1085, %v3571, 0
      %3668 = vmatprep.subr.mxu0 0.0
      %3669 = vmatpush1.xpose.msra.mxu0 %v3604
      %3670 = vmatprep.subr.mxu0 0.0
      %3671 = vmatpush1.xpose.msra.mxu0 %v3606
      %3672 = vmatprep.subr.mxu0 0.0
      %3673 = vmatpush1.xpose.msra.mxu0 %v3608
      %3674 = vmatprep.subr.mxu0 0.0
      %3675 = vmatpush1.xpose.msra.mxu0 %v3610
      %3676 = vmatprep.subr.mxu0 0.0
      %3677 = vmatpush1.xpose.msra.mxu0 %v3612
      %3678 = vmatprep.subr.mxu0 0.0
      %3679 = vmatpush1.xpose.msra.mxu0 %v3614
      %3680 = vmatprep.subr.mxu0 0.0
      %3681 = vmatpush1.xpose.msra.mxu0 %v3616
      %3682 = vmatprep.subr.mxu0 0.0
      %3683 = vmatpush1.xpose.msra.mxu0 %v3618
      %3684 = vmatprep.subr.mxu0 0.0
      %3685 = vmatpush1.xpose.msra.mxu0 %v3620
      %3686 = vmatprep.subr.mxu0 0.0
      %3687 = vmatpush1.xpose.msra.mxu0 %v3622
      %3688 = vmatprep.subr.mxu0 0.0
      %3689 = vmatpush1.xpose.msra.mxu0 %v3624
      %3690 = vmatprep.subr.mxu0 0.0
      %3691 = vmatpush1.xpose.msra.mxu0 %v3626
      %3692 = vmatprep.subr.mxu0 0.0
      %3693 = vmatpush1.xpose.msra.mxu0 %v3628
      %3694 = vmatprep.subr.mxu0 0.0
      %3695 = vmatpush1.xpose.msra.mxu0 %v3630
      %3696 = vmatprep.subr.mxu0 0.0
      %3697 = vmatpush1.xpose.msra.mxu0 %v3632
      %3698 = vmatprep.subr.mxu0 0.0
      %3699 = vmatpush1.xpose.msra.mxu0 %v3634
      %3700 = vmatprep.subr.mxu0 0.0
      %3701 = vmatpush1.xpose.msra.mxu0 %v3636
      %3702 = vmatprep.subr.mxu0 0.0
      %3703 = vmatpush1.xpose.msra.mxu0 %v3638
      %3704 = vmatprep.subr.mxu0 0.0
      %3705 = vmatpush1.xpose.msra.mxu0 %v3640
      %3706 = vmatprep.subr.mxu0 0.0
      %3707 = vmatpush1.xpose.msra.mxu0 %v3642
      %3708 = vmatprep.subr.mxu0 0.0
      %3709 = vmatpush1.xpose.msra.mxu0 %v3644
      %3710 = vmatprep.subr.mxu0 0.0
      %3711 = vmatpush1.xpose.msra.mxu0 %v3646
      %3712 = vmatprep.subr.mxu0 0.0
      %3713 = vmatpush1.xpose.msra.mxu0 %v3648
      %3714 = vmatprep.subr.mxu0 0.0
      %3715 = vmatpush1.xpose.msra.mxu0 %v3650
      %3716 = vmatprep.subr.mxu0 0.0
      %3717 = vmatpush1.xpose.msra.mxu0 %v3652
      %3718 = vmatprep.subr.mxu0 0.0
      %3719 = vmatpush1.xpose.msra.mxu0 %v3654
      %3720 = vmatprep.subr.mxu0 0.0
      %3721 = vmatpush1.xpose.msra.mxu0 %v3656
      %3722 = vmatprep.subr.mxu0 0.0
      %3723 = vmatpush1.xpose.msra.mxu0 %v3658
      %3724 = vmatprep.subr.mxu0 0.0
      %3725 = vmatpush1.xpose.msra.mxu0 %v3660
      %3726 = vmatprep.subr.mxu0 0.0
      %3727 = vmatpush1.xpose.msra.mxu0 %v3662
      %3728 = vmatprep.subr.mxu0 0.0
      %3729 = vmatpush1.xpose.msra.mxu0 %v3664
      %3730 = vmatprep.subr.mxu0 0.0
      %3731 = vmatpush1.xpose.msra.mxu0 %v3666
      %3732 = vmatprep.mubr.f32.mxu0 0.0
      %3733 = vmatmul.mubr.f32.gmra.mrb[0].mxu0 %v3572
      %v3734 = vpop.f32.mrb[0].mxu0
      %v3735 = vadd.f32 0.0, %v3734
      %v3736 = vpop.f32.mrb[0].mxu0
      %v3737 = vadd.f32 0.0, %v3736
      %3738 = vmatprep.mubr.f32.mxu0 0.0
      %3739 = vmatmul.mubr.f32.gmra.mrb[0].mxu0 %v3574
      %v3740 = vpop.f32.mrb[0].mxu0
      %v3741 = vadd.f32 0.0, %v3740
      %v3742 = vpop.f32.mrb[0].mxu0
      %v3743 = vadd.f32 0.0, %v3742
      %3744 = vmatprep.mubr.f32.mxu0 0.0
      %3745 = vmatmul.mubr.f32.gmra.mrb[0].mxu0 %v3576
      %v3746 = vpop.f32.mrb[0].mxu0
      %v3747 = vadd.f32 0.0, %v3746
      %v3748 = vpop.f32.mrb[0].mxu0
      %v3749 = vadd.f32 0.0, %v3748
      %3750 = vmatprep.mubr.f32.mxu0 0.0
      %3751 = vmatmul.mubr.f32.gmra.mrb[0].mxu0 %v3578
      %v3752 = vpop.f32.mrb[0].mxu0
      %v3753 = vadd.f32 0.0, %v3752
      %v3754 = vpop.f32.mrb[0].mxu0
      %v3755 = vadd.f32 0.0, %v3754
      %3756 = vmatprep.mubr.f32.mxu0 0.0
      %3757 = vmatmul.mubr.f32.gmra.mrb[0].mxu0 %v3580
      %v3758 = vpop.f32.mrb[0].mxu0
      %v3759 = vadd.f32 0.0, %v3758
      %v3760 = vpop.f32.mrb[0].mxu0
      %v3761 = vadd.f32 0.0, %v3760
      %3762 = vmatprep.mubr.f32.mxu0 0.0
      %3763 = vmatmul.mubr.f32.gmra.mrb[0].mxu0 %v3582
      %v3764 = vpop.f32.mrb[0].mxu0
      %v3765 = vadd.f32 0.0, %v3764
      %v3766 = vpop.f32.mrb[0].mxu0
      %v3767 = vadd.f32 0.0, %v3766
      %3768 = vmatprep.mubr.f32.mxu0 0.0
      %3769 = vmatmul.mubr.f32.gmra.mrb[0].mxu0 %v3584
      %v3770 = vpop.f32.mrb[0].mxu0
      %v3771 = vadd.f32 0.0, %v3770
      %v3772 = vpop.f32.mrb[0].mxu0
      %v3773 = vadd.f32 0.0, %v3772
      %3774 = vmatprep.mubr.f32.mxu0 0.0
      %3775 = vmatmul.mubr.f32.gmra.mrb[0].mxu0 %v3586
      %v3776 = vpop.f32.mrb[0].mxu0
      %v3777 = vadd.f32 0.0, %v3776
      %v3778 = vpop.f32.mrb[0].mxu0
      %v3779 = vadd.f32 0.0, %v3778
      %3780 = vmatprep.mubr.f32.mxu0 0.0
      %3781 = vmatmul.mubr.f32.gmra.mrb[0].mxu0 %v3588
      %v3782 = vpop.f32.mrb[0].mxu0
      %v3783 = vadd.f32 0.0, %v3782
      %v3784 = vpop.f32.mrb[0].mxu0
      %v3785 = vadd.f32 0.0, %v3784
      %3786 = vmatprep.mubr.f32.mxu0 0.0
      %3787 = vmatmul.mubr.f32.gmra.mrb[0].mxu0 %v3590
      %v3788 = vpop.f32.mrb[0].mxu0
      %v3789 = vadd.f32 0.0, %v3788
      %v3790 = vpop.f32.mrb[0].mxu0
      %v3791 = vadd.f32 0.0, %v3790
      %3792 = vmatprep.mubr.f32.mxu0 0.0
      %3793 = vmatmul.mubr.f32.gmra.mrb[0].mxu0 %v3592
      %v3794 = vpop.f32.mrb[0].mxu0
      %v3795 = vadd.f32 0.0, %v3794
      %v3796 = vpop.f32.mrb[0].mxu0
      %v3797 = vadd.f32 0.0, %v3796
      %3798 = vmatprep.mubr.f32.mxu0 0.0
      %3799 = vmatmul.mubr.f32.gmra.mrb[0].mxu0 %v3594
      %v3800 = vpop.f32.mrb[0].mxu0
      %v3801 = vadd.f32 0.0, %v3800
      %v3802 = vpop.f32.mrb[0].mxu0
      %v3803 = vadd.f32 0.0, %v3802
      %3804 = vmatprep.mubr.f32.mxu0 0.0
      %3805 = vmatmul.mubr.f32.gmra.mrb[0].mxu0 %v3596
      %v3806 = vpop.f32.mrb[0].mxu0
      %v3807 = vadd.f32 0.0, %v3806
      %v3808 = vpop.f32.mrb[0].mxu0
      %v3809 = vadd.f32 0.0, %v3808
      %3810 = vmatprep.mubr.f32.mxu0 0.0
      %3811 = vmatmul.mubr.f32.gmra.mrb[0].mxu0 %v3598
      %v3812 = vpop.f32.mrb[0].mxu0
      %v3813 = vadd.f32 0.0, %v3812
      %v3814 = vpop.f32.mrb[0].mxu0
      %v3815 = vadd.f32 0.0, %v3814
      %3816 = vmatprep.mubr.f32.mxu0 0.0
      %3817 = vmatmul.mubr.f32.gmra.mrb[0].mxu0 %v3600
      %v3818 = vpop.f32.mrb[0].mxu0
      %v3819 = vadd.f32 0.0, %v3818
      %v3820 = vpop.f32.mrb[0].mxu0
      %v3821 = vadd.f32 0.0, %v3820
      %3822 = vmatprep.mubr.f32.mxu0 0.0
      %3823 = vmatmul.mubr.f32.gmra.mrb[0].mxu0 %v3602
      %v3824 = vpop.f32.mrb[0].mxu0
      %v3825 = vadd.f32 0.0, %v3824
      %v3826 = vpop.f32.mrb[0].mxu0
      %v3827 = vadd.f32 0.0, %v3826
      %3828 = vdwg.mxu0
      %v3829 = vmax.f32 %v3735, %v3737
      %3830 = vmax.xlane.f32.xlu0 %v3829
      %v3831 = vpop.xlane.xlu0 %3830
      %v3832 = vmax.f32 %v3741, %v3743
      %3833 = vmax.xlane.f32.xlu0 %v3832
      %v3834 = vpop.xlane.xlu0 %3833
      %v3835 = vmax.f32 %v3747, %v3749
      %3836 = vmax.xlane.f32.xlu0 %v3835
      %v3837 = vpop.xlane.xlu0 %3836
      %v3838 = vmax.f32 %v3753, %v3755
      %3839 = vmax.xlane.f32.xlu0 %v3838
      %v3840 = vpop.xlane.xlu0 %3839
      %v3841 = vmax.f32 %v3759, %v3761
      %3842 = vmax.xlane.f32.xlu0 %v3841
      %v3843 = vpop.xlane.xlu0 %3842
      %v3844 = vmax.f32 %v3765, %v3767
      %3845 = vmax.xlane.f32.xlu0 %v3844
      %v3846 = vpop.xlane.xlu0 %3845
      %v3847 = vmax.f32 %v3771, %v3773
      %3848 = vmax.xlane.f32.xlu0 %v3847
      %v3849 = vpop.xlane.xlu0 %3848
      %v3850 = vmax.f32 %v3777, %v3779
      %3851 = vmax.xlane.f32.xlu0 %v3850
      %v3852 = vpop.xlane.xlu0 %3851
      %v3853 = vmax.f32 %v3783, %v3785
      %3854 = vmax.xlane.f32.xlu0 %v3853
      %v3855 = vpop.xlane.xlu0 %3854
      %v3856 = vmax.f32 %v3789, %v3791
      %3857 = vmax.xlane.f32.xlu0 %v3856
      %v3858 = vpop.xlane.xlu0 %3857
      %v3859 = vmax.f32 %v3795, %v3797
      %3860 = vmax.xlane.f32.xlu0 %v3859
      %v3861 = vpop.xlane.xlu0 %3860
      %v3862 = vmax.f32 %v3801, %v3803
      %3863 = vmax.xlane.f32.xlu0 %v3862
      %v3864 = vpop.xlane.xlu0 %3863
      %v3865 = vmax.f32 %v3807, %v3809
      %3866 = vmax.xlane.f32.xlu0 %v3865
      %v3867 = vpop.xlane.xlu0 %3866
      %v3868 = vmax.f32 %v3813, %v3815
      %3869 = vmax.xlane.f32.xlu0 %v3868
      %v3870 = vpop.xlane.xlu0 %3869
      %v3871 = vmax.f32 %v3819, %v3821
      %3872 = vmax.xlane.f32.xlu0 %v3871
      %v3873 = vpop.xlane.xlu0 %3872
      %v3874 = vmax.f32 %v3825, %v3827
      %3875 = vmax.xlane.f32.xlu0 %v3874
      %v3876 = vpop.xlane.xlu0 %3875
      %v3877 = vsub.f32 %v3735, %v3831
      %v3878 = vsub.f32 %v3737, %v3831
      %v3879 = vsub.f32 %v3741, %v3834
      %v3880 = vsub.f32 %v3743, %v3834
      %v3881 = vsub.f32 %v3747, %v3837
      %v3882 = vsub.f32 %v3749, %v3837
      %v3883 = vsub.f32 %v3753, %v3840
      %v3884 = vsub.f32 %v3755, %v3840
      %v3885 = vsub.f32 %v3759, %v3843
      %v3886 = vsub.f32 %v3761, %v3843
      %v3887 = vsub.f32 %v3765, %v3846
      %v3888 = vsub.f32 %v3767, %v3846
      %v3889 = vsub.f32 %v3771, %v3849
      %v3890 = vsub.f32 %v3773, %v3849
      %v3891 = vsub.f32 %v3777, %v3852
      %v3892 = vsub.f32 %v3779, %v3852
      %v3893 = vsub.f32 %v3783, %v3855
      %v3894 = vsub.f32 %v3785, %v3855
      %v3895 = vsub.f32 %v3789, %v3858
      %v3896 = vsub.f32 %v3791, %v3858
      %v3897 = vsub.f32 %v3795, %v3861
      %v3898 = vsub.f32 %v3797, %v3861
      %v3899 = vsub.f32 %v3801, %v3864
      %v3900 = vsub.f32 %v3803, %v3864
      %v3901 = vsub.f32 %v3807, %v3867
      %v3902 = vsub.f32 %v3809, %v3867
      %v3903 = vsub.f32 %v3813, %v3870
      %v3904 = vsub.f32 %v3815, %v3870
      %v3905 = vsub.f32 %v3819, %v3873
      %v3906 = vsub.f32 %v3821, %v3873
      %v3907 = vsub.f32 %v3825, %v3876
      %v3908 = vsub.f32 %v3827, %v3876
      %v3909 = vmul.f32 %v3877, 1.442695
      %v3910 = vpow.pop %v3909
      %v3911 = vmul.f32 %v3878, 1.442695
      %v3912 = vpow.pop %v3911
      %v3913 = vmul.f32 %v3879, 1.442695
      %v3914 = vpow.pop %v3913
      %v3915 = vmul.f32 %v3880, 1.442695
      %v3916 = vpow.pop %v3915
      %v3917 = vmul.f32 %v3881, 1.442695
      %v3918 = vpow.pop %v3917
      %v3919 = vmul.f32 %v3882, 1.442695
      %v3920 = vpow.pop %v3919
      %v3921 = vmul.f32 %v3883, 1.442695
      %v3922 = vpow.pop %v3921
      %v3923 = vmul.f32 %v3884, 1.442695
      %v3924 = vpow.pop %v3923
      %v3925 = vmul.f32 %v3885, 1.442695
      %v3926 = vpow.pop %v3925
      %v3927 = vmul.f32 %v3886, 1.442695
      %v3928 = vpow.pop %v3927
      %v3929 = vmul.f32 %v3887, 1.442695
      %v3930 = vpow.pop %v3929
      %v3931 = vmul.f32 %v3888, 1.442695
      %v3932 = vpow.pop %v3931
      %v3933 = vmul.f32 %v3889, 1.442695
      %v3934 = vpow.pop %v3933
      %v3935 = vmul.f32 %v3890, 1.442695
      %v3936 = vpow.pop %v3935
      %v3937 = vmul.f32 %v3891, 1.442695
      %v3938 = vpow.pop %v3937
      %v3939 = vmul.f32 %v3892, 1.442695
      %v3940 = vpow.pop %v3939
      %v3941 = vmul.f32 %v3893, 1.442695
      %v3942 = vpow.pop %v3941
      %v3943 = vmul.f32 %v3894, 1.442695
      %v3944 = vpow.pop %v3943
      %v3945 = vmul.f32 %v3895, 1.442695
      %v3946 = vpow.pop %v3945
      %v3947 = vmul.f32 %v3896, 1.442695
      %v3948 = vpow.pop %v3947
      %v3949 = vmul.f32 %v3897, 1.442695
      %v3950 = vpow.pop %v3949
      %v3951 = vmul.f32 %v3898, 1.442695
      %v3952 = vpow.pop %v3951
      %v3953 = vmul.f32 %v3899, 1.442695
      %v3954 = vpow.pop %v3953
      %v3955 = vmul.f32 %v3900, 1.442695
      %v3956 = vpow.pop %v3955
      %v3957 = vmul.f32 %v3901, 1.442695
      %v3958 = vpow.pop %v3957
      %v3959 = vmul.f32 %v3902, 1.442695
      %v3960 = vpow.pop %v3959
      %v3961 = vmul.f32 %v3903, 1.442695
      %v3962 = vpow.pop %v3961
      %v3963 = vmul.f32 %v3904, 1.442695
      %v3964 = vpow.pop %v3963
      %v3965 = vmul.f32 %v3905, 1.442695
      %v3966 = vpow.pop %v3965
      %v3967 = vmul.f32 %v3906, 1.442695
      %v3968 = vpow.pop %v3967
      %v3969 = vmul.f32 %v3907, 1.442695
      %v3970 = vpow.pop %v3969
      %v3971 = vmul.f32 %v3908, 1.442695
      %v3972 = vpow.pop %v3971
      %v3973 = vadd.f32 %v3910, %v3912
      %3974 = vadd.xlane.f32.xlu0 %v3973
      %v3975 = vpop.xlane.xlu0 %3974
      %v3976 = vadd.f32 %v3914, %v3916
      %3977 = vadd.xlane.f32.xlu0 %v3976
      %v3978 = vpop.xlane.xlu0 %3977
      %v3979 = vadd.f32 %v3918, %v3920
      %3980 = vadd.xlane.f32.xlu0 %v3979
      %v3981 = vpop.xlane.xlu0 %3980
      %v3982 = vadd.f32 %v3922, %v3924
      %3983 = vadd.xlane.f32.xlu0 %v3982
      %v3984 = vpop.xlane.xlu0 %3983
      %v3985 = vadd.f32 %v3926, %v3928
      %3986 = vadd.xlane.f32.xlu0 %v3985
      %v3987 = vpop.xlane.xlu0 %3986
      %v3988 = vadd.f32 %v3930, %v3932
      %3989 = vadd.xlane.f32.xlu0 %v3988
      %v3990 = vpop.xlane.xlu0 %3989
      %v3991 = vadd.f32 %v3934, %v3936
      %3992 = vadd.xlane.f32.xlu0 %v3991
      %v3993 = vpop.xlane.xlu0 %3992
      %v3994 = vadd.f32 %v3938, %v3940
      %3995 = vadd.xlane.f32.xlu0 %v3994
      %v3996 = vpop.xlane.xlu0 %3995
      %v3997 = vadd.f32 %v3942, %v3944
      %3998 = vadd.xlane.f32.xlu0 %v3997
      %v3999 = vpop.xlane.xlu0 %3998
      %v4000 = vadd.f32 %v3946, %v3948
      %4001 = vadd.xlane.f32.xlu0 %v4000
      %v4002 = vpop.xlane.xlu0 %4001
      %v4003 = vadd.f32 %v3950, %v3952
      %4004 = vadd.xlane.f32.xlu0 %v4003
      %v4005 = vpop.xlane.xlu0 %4004
      %v4006 = vadd.f32 %v3954, %v3956
      %4007 = vadd.xlane.f32.xlu0 %v4006
      %v4008 = vpop.xlane.xlu0 %4007
      %v4009 = vadd.f32 %v3958, %v3960
      %4010 = vadd.xlane.f32.xlu0 %v4009
      %v4011 = vpop.xlane.xlu0 %4010
      %v4012 = vadd.f32 %v3962, %v3964
      %4013 = vadd.xlane.f32.xlu0 %v4012
      %v4014 = vpop.xlane.xlu0 %4013
      %v4015 = vadd.f32 %v3966, %v3968
      %4016 = vadd.xlane.f32.xlu0 %v4015
      %v4017 = vpop.xlane.xlu0 %4016
      %v4018 = vadd.f32 %v3970, %v3972
      %4019 = vadd.xlane.f32.xlu0 %v4018
      %v4020 = vpop.xlane.xlu0 %4019
      %v4021 = vrcp.pop %v3975
      %v4022 = vrcp.pop %v3978
      %v4023 = vrcp.pop %v3981
      %v4024 = vrcp.pop %v3984
      %v4025 = vrcp.pop %v3987
      %v4026 = vrcp.pop %v3990
      %v4027 = vrcp.pop %v3993
      %v4028 = vrcp.pop %v3996
      %v4029 = vrcp.pop %v3999
      %v4030 = vrcp.pop %v4002
      %v4031 = vrcp.pop %v4005
      %v4032 = vrcp.pop %v4008
      %v4033 = vrcp.pop %v4011
      %v4034 = vrcp.pop %v4014
      %v4035 = vrcp.pop %v4017
      %v4036 = vrcp.pop %v4020
      %v4037 = vmul.f32 %v3910, %v4021
      %v4038 = vmul.f32 %v3912, %v4021
      %v4039 = vmul.f32 %v3914, %v4022
      %v4040 = vmul.f32 %v3916, %v4022
      %v4041 = vmul.f32 %v3918, %v4023
      %v4042 = vmul.f32 %v3920, %v4023
      %v4043 = vmul.f32 %v3922, %v4024
      %v4044 = vmul.f32 %v3924, %v4024
      %v4045 = vmul.f32 %v3926, %v4025
      %v4046 = vmul.f32 %v3928, %v4025
      %v4047 = vmul.f32 %v3930, %v4026
      %v4048 = vmul.f32 %v3932, %v4026
      %v4049 = vmul.f32 %v3934, %v4027
      %v4050 = vmul.f32 %v3936, %v4027
      %v4051 = vmul.f32 %v3938, %v4028
      %v4052 = vmul.f32 %v3940, %v4028
      %v4053 = vmul.f32 %v3942, %v4029
      %v4054 = vmul.f32 %v3944, %v4029
      %v4055 = vmul.f32 %v3946, %v4030
      %v4056 = vmul.f32 %v3948, %v4030
      %v4057 = vmul.f32 %v3950, %v4031
      %v4058 = vmul.f32 %v3952, %v4031
      %v4059 = vmul.f32 %v3954, %v4032
      %v4060 = vmul.f32 %v3956, %v4032
      %v4061 = vmul.f32 %v3958, %v4033
      %v4062 = vmul.f32 %v3960, %v4033
      %v4063 = vmul.f32 %v3962, %v4034
      %v4064 = vmul.f32 %v3964, %v4034
      %v4065 = vmul.f32 %v3966, %v4035
      %v4066 = vmul.f32 %v3968, %v4035
      %v4067 = vmul.f32 %v3970, %v4036
      %v4068 = vmul.f32 %v3972, %v4036
      %4069 = vrot.lane.b32.xlu0 %v959, 32
      %v4070 = vpop.permute.xlu0 %4069
      %4071 = vrot.lane.b32.xlu0 %v962, 32
      %v4072 = vpop.permute.xlu0 %4071
      %4073 = vrot.lane.b32.xlu0 %v967, 32
      %v4074 = vpop.permute.xlu0 %4073
      %4075 = vrot.lane.b32.xlu0 %v970, 32
      %v4076 = vpop.permute.xlu0 %4075
      %4077 = vrot.lane.b32.xlu0 %v975, 32
      %v4078 = vpop.permute.xlu0 %4077
      %4079 = vrot.lane.b32.xlu0 %v978, 32
      %v4080 = vpop.permute.xlu0 %4079
      %4081 = vrot.lane.b32.xlu0 %v983, 32
      %v4082 = vpop.permute.xlu0 %4081
      %4083 = vrot.lane.b32.xlu0 %v986, 32
      %v4084 = vpop.permute.xlu0 %4083
      %4085 = vrot.lane.b32.xlu0 %v991, 32
      %v4086 = vpop.permute.xlu0 %4085
      %4087 = vrot.lane.b32.xlu0 %v994, 32
      %v4088 = vpop.permute.xlu0 %4087
      %4089 = vrot.lane.b32.xlu0 %v999, 32
      %v4090 = vpop.permute.xlu0 %4089
      %4091 = vrot.lane.b32.xlu0 %v1002, 32
      %v4092 = vpop.permute.xlu0 %4091
      %4093 = vrot.lane.b32.xlu0 %v1007, 32
      %v4094 = vpop.permute.xlu0 %4093
      %4095 = vrot.lane.b32.xlu0 %v1010, 32
      %v4096 = vpop.permute.xlu0 %4095
      %4097 = vrot.lane.b32.xlu0 %v1015, 32
      %v4098 = vpop.permute.xlu0 %4097
      %4099 = vrot.lane.b32.xlu0 %v1018, 32
      %v4100 = vpop.permute.xlu0 %4099
      %4101 = vrot.lane.b32.xlu0 %v1023, 32
      %v4102 = vpop.permute.xlu0 %4101
      %4103 = vrot.lane.b32.xlu0 %v1026, 32
      %v4104 = vpop.permute.xlu0 %4103
      %4105 = vrot.lane.b32.xlu0 %v1031, 32
      %v4106 = vpop.permute.xlu0 %4105
      %4107 = vrot.lane.b32.xlu0 %v1034, 32
      %v4108 = vpop.permute.xlu0 %4107
      %4109 = vrot.lane.b32.xlu0 %v1039, 32
      %v4110 = vpop.permute.xlu0 %4109
      %4111 = vrot.lane.b32.xlu0 %v1042, 32
      %v4112 = vpop.permute.xlu0 %4111
      %4113 = vrot.lane.b32.xlu0 %v1047, 32
      %v4114 = vpop.permute.xlu0 %4113
      %4115 = vrot.lane.b32.xlu0 %v1050, 32
      %v4116 = vpop.permute.xlu0 %4115
      %4117 = vrot.lane.b32.xlu0 %v1055, 32
      %v4118 = vpop.permute.xlu0 %4117
      %4119 = vrot.lane.b32.xlu0 %v1058, 32
      %v4120 = vpop.permute.xlu0 %4119
      %4121 = vrot.lane.b32.xlu0 %v1063, 32
      %v4122 = vpop.permute.xlu0 %4121
      %4123 = vrot.lane.b32.xlu0 %v1066, 32
      %v4124 = vpop.permute.xlu0 %4123
      %4125 = vrot.lane.b32.xlu0 %v1071, 32
      %v4126 = vpop.permute.xlu0 %4125
      %4127 = vrot.lane.b32.xlu0 %v1074, 32
      %v4128 = vpop.permute.xlu0 %4127
      %4129 = vrot.lane.b32.xlu0 %v1079, 32
      %v4130 = vpop.permute.xlu0 %4129
      %4131 = vrot.lane.b32.xlu0 %v1082, 32
      %v4132 = vpop.permute.xlu0 %4131
      %4165 = vmatprep.subr.mxu0 0.0
      %4166 = vmatpush1.msra.mxu0 %v4070
      %4167 = vmatprep.subr.mxu0 0.0
      %4168 = vmatpush1.msra.mxu0 %v4072
      %4169 = vmatprep.subr.mxu0 0.0
      %4170 = vmatpush1.msra.mxu0 %v4074
      %4171 = vmatprep.subr.mxu0 0.0
      %4172 = vmatpush1.msra.mxu0 %v4076
      %4173 = vmatprep.subr.mxu0 0.0
      %4174 = vmatpush1.msra.mxu0 %v4078
      %4175 = vmatprep.subr.mxu0 0.0
      %4176 = vmatpush1.msra.mxu0 %v4080
      %4177 = vmatprep.subr.mxu0 0.0
      %4178 = vmatpush1.msra.mxu0 %v4082
      %4179 = vmatprep.subr.mxu0 0.0
      %4180 = vmatpush1.msra.mxu0 %v4084
      %4181 = vmatprep.subr.mxu0 0.0
      %4182 = vmatpush1.msra.mxu0 %v4086
      %4183 = vmatprep.subr.mxu0 0.0
      %4184 = vmatpush1.msra.mxu0 %v4088
      %4185 = vmatprep.subr.mxu0 0.0
      %4186 = vmatpush1.msra.mxu0 %v4090
      %4187 = vmatprep.subr.mxu0 0.0
      %4188 = vmatpush1.msra.mxu0 %v4092
      %4189 = vmatprep.subr.mxu0 0.0
      %4190 = vmatpush1.msra.mxu0 %v4094
      %4191 = vmatprep.subr.mxu0 0.0
      %4192 = vmatpush1.msra.mxu0 %v4096
      %4193 = vmatprep.subr.mxu0 0.0
      %4194 = vmatpush1.msra.mxu0 %v4098
      %4195 = vmatprep.subr.mxu0 0.0
      %4196 = vmatpush1.msra.mxu0 %v4100
      %4197 = vmatprep.subr.mxu0 0.0
      %4198 = vmatpush1.msra.mxu0 %v4102
      %4199 = vmatprep.subr.mxu0 0.0
      %4200 = vmatpush1.msra.mxu0 %v4104
      %4201 = vmatprep.subr.mxu0 0.0
      %4202 = vmatpush1.msra.mxu0 %v4106
      %4203 = vmatprep.subr.mxu0 0.0
      %4204 = vmatpush1.msra.mxu0 %v4108
      %4205 = vmatprep.subr.mxu0 0.0
      %4206 = vmatpush1.msra.mxu0 %v4110
      %4207 = vmatprep.subr.mxu0 0.0
      %4208 = vmatpush1.msra.mxu0 %v4112
      %4209 = vmatprep.subr.mxu0 0.0
      %4210 = vmatpush1.msra.mxu0 %v4114
      %4211 = vmatprep.subr.mxu0 0.0
      %4212 = vmatpush1.msra.mxu0 %v4116
      %4213 = vmatprep.subr.mxu0 0.0
      %4214 = vmatpush1.msra.mxu0 %v4118
      %4215 = vmatprep.subr.mxu0 0.0
      %4216 = vmatpush1.msra.mxu0 %v4120
      %4217 = vmatprep.subr.mxu0 0.0
      %4218 = vmatpush1.msra.mxu0 %v4122
      %4219 = vmatprep.subr.mxu0 0.0
      %4220 = vmatpush1.msra.mxu0 %v4124
      %4221 = vmatprep.subr.mxu0 0.0
      %4222 = vmatpush1.msra.mxu0 %v4126
      %4223 = vmatprep.subr.mxu0 0.0
      %4224 = vmatpush1.msra.mxu0 %v4128
      %4225 = vmatprep.subr.mxu0 0.0
      %4226 = vmatpush1.msra.mxu0 %v4130
      %4227 = vmatprep.subr.mxu0 0.0
      %4228 = vmatpush1.msra.mxu0 %v4132
      %4229 = vmatprep.mubr.f32.mxu0 %v4038
      %4230 = vmatmul.mubr.f32.gmra.mrb[0].mxu0 %v4037
      %v4231 = vpop.f32.mrb[0].mxu0
      %v4232 = vadd.f32 0.0, %v4231
      %v4233 = vpop.f32.mrb[0].mxu0
      %4234 = vmatprep.mubr.f32.mxu0 %v4040
      %4235 = vmatmul.mubr.f32.gmra.mrb[0].mxu0 %v4039
      %v4236 = vpop.f32.mrb[0].mxu0
      %v4237 = vadd.f32 0.0, %v4236
      %v4238 = vpop.f32.mrb[0].mxu0
      %4239 = vmatprep.mubr.f32.mxu0 %v4042
      %4240 = vmatmul.mubr.f32.gmra.mrb[0].mxu0 %v4041
      %v4241 = vpop.f32.mrb[0].mxu0
      %v4242 = vadd.f32 0.0, %v4241
      %v4243 = vpop.f32.mrb[0].mxu0
      %4244 = vmatprep.mubr.f32.mxu0 %v4044
      %4245 = vmatmul.mubr.f32.gmra.mrb[0].mxu0 %v4043
      %v4246 = vpop.f32.mrb[0].mxu0
      %v4247 = vadd.f32 0.0, %v4246
      %v4248 = vpop.f32.mrb[0].mxu0
      %4249 = vmatprep.mubr.f32.mxu0 %v4046
      %4250 = vmatmul.mubr.f32.gmra.mrb[0].mxu0 %v4045
      %v4251 = vpop.f32.mrb[0].mxu0
      %v4252 = vadd.f32 0.0, %v4251
      %v4253 = vpop.f32.mrb[0].mxu0
      %4254 = vmatprep.mubr.f32.mxu0 %v4048
      %4255 = vmatmul.mubr.f32.gmra.mrb[0].mxu0 %v4047
      %v4256 = vpop.f32.mrb[0].mxu0
      %v4257 = vadd.f32 0.0, %v4256
      %v4258 = vpop.f32.mrb[0].mxu0
      %4259 = vmatprep.mubr.f32.mxu0 %v4050
      %4260 = vmatmul.mubr.f32.gmra.mrb[0].mxu0 %v4049
      %v4261 = vpop.f32.mrb[0].mxu0
      %v4262 = vadd.f32 0.0, %v4261
      %v4263 = vpop.f32.mrb[0].mxu0
      %4264 = vmatprep.mubr.f32.mxu0 %v4052
      %4265 = vmatmul.mubr.f32.gmra.mrb[0].mxu0 %v4051
      %v4266 = vpop.f32.mrb[0].mxu0
      %v4267 = vadd.f32 0.0, %v4266
      %v4268 = vpop.f32.mrb[0].mxu0
      %4269 = vmatprep.mubr.f32.mxu0 %v4054
      %4270 = vmatmul.mubr.f32.gmra.mrb[0].mxu0 %v4053
      %v4271 = vpop.f32.mrb[0].mxu0
      %v4272 = vadd.f32 0.0, %v4271
      %v4273 = vpop.f32.mrb[0].mxu0
      %4274 = vmatprep.mubr.f32.mxu0 %v4056
      %4275 = vmatmul.mubr.f32.gmra.mrb[0].mxu0 %v4055
      %v4276 = vpop.f32.mrb[0].mxu0
      %v4277 = vadd.f32 0.0, %v4276
      %v4278 = vpop.f32.mrb[0].mxu0
      %4279 = vmatprep.mubr.f32.mxu0 %v4058
      %4280 = vmatmul.mubr.f32.gmra.mrb[0].mxu0 %v4057
      %v4281 = vpop.f32.mrb[0].mxu0
      %v4282 = vadd.f32 0.0, %v4281
      %v4283 = vpop.f32.mrb[0].mxu0
      %4284 = vmatprep.mubr.f32.mxu0 %v4060
      %4285 = vmatmul.mubr.f32.gmra.mrb[0].mxu0 %v4059
      %v4286 = vpop.f32.mrb[0].mxu0
      %v4287 = vadd.f32 0.0, %v4286
      %v4288 = vpop.f32.mrb[0].mxu0
      %4289 = vmatprep.mubr.f32.mxu0 %v4062
      %4290 = vmatmul.mubr.f32.gmra.mrb[0].mxu0 %v4061
      %v4291 = vpop.f32.mrb[0].mxu0
      %v4292 = vadd.f32 0.0, %v4291
      %v4293 = vpop.f32.mrb[0].mxu0
      %4294 = vmatprep.mubr.f32.mxu0 %v4064
      %4295 = vmatmul.mubr.f32.gmra.mrb[0].mxu0 %v4063
      %v4296 = vpop.f32.mrb[0].mxu0
      %v4297 = vadd.f32 0.0, %v4296
      %v4298 = vpop.f32.mrb[0].mxu0
      %4299 = vmatprep.mubr.f32.mxu0 %v4066
      %4300 = vmatmul.mubr.f32.gmra.mrb[0].mxu0 %v4065
      %v4301 = vpop.f32.mrb[0].mxu0
      %v4302 = vadd.f32 0.0, %v4301
      %v4303 = vpop.f32.mrb[0].mxu0
      %4304 = vmatprep.mubr.f32.mxu0 %v4068
      %4305 = vmatmul.mubr.f32.gmra.mrb[0].mxu0 %v4067
      %v4306 = vpop.f32.mrb[0].mxu0
      %v4307 = vadd.f32 0.0, %v4306
      %v4308 = vpop.f32.mrb[0].mxu0
      %4309 = vdwg.mxu0
      %4326 = vrot.lane.b32.xlu0 %v2564, 32
      %v4327 = vpop.permute.xlu0 %4326
      %4328 = vrot.lane.b32.xlu0 %v2569, 32
      %v4329 = vpop.permute.xlu0 %4328
      %4330 = vrot.lane.b32.xlu0 %v2574, 32
      %v4331 = vpop.permute.xlu0 %4330
      %4332 = vrot.lane.b32.xlu0 %v2579, 32
      %v4333 = vpop.permute.xlu0 %4332
      %4334 = vrot.lane.b32.xlu0 %v2584, 32
      %v4335 = vpop.permute.xlu0 %4334
      %4336 = vrot.lane.b32.xlu0 %v2589, 32
      %v4337 = vpop.permute.xlu0 %4336
      %4338 = vrot.lane.b32.xlu0 %v2594, 32
      %v4339 = vpop.permute.xlu0 %4338
      %4340 = vrot.lane.b32.xlu0 %v2599, 32
      %v4341 = vpop.permute.xlu0 %4340
      %4342 = vrot.lane.b32.xlu0 %v2604, 32
      %v4343 = vpop.permute.xlu0 %4342
      %4344 = vrot.lane.b32.xlu0 %v2609, 32
      %v4345 = vpop.permute.xlu0 %4344
      %4346 = vrot.lane.b32.xlu0 %v2614, 32
      %v4347 = vpop.permute.xlu0 %4346
      %4348 = vrot.lane.b32.xlu0 %v2619, 32
      %v4349 = vpop.permute.xlu0 %4348
      %4350 = vrot.lane.b32.xlu0 %v2624, 32
      %v4351 = vpop.permute.xlu0 %4350
      %4352 = vrot.lane.b32.xlu0 %v2629, 32
      %v4353 = vpop.permute.xlu0 %4352
      %4354 = vrot.lane.b32.xlu0 %v2634, 32
      %v4355 = vpop.permute.xlu0 %4354
      %4356 = vrot.lane.b32.xlu0 %v2639, 32
      %v4357 = vpop.permute.xlu0 %4356
      %4390 = vrot.lane.b32.xlu0 %v3398, 64
      %v4391 = vpop.permute.xlu0 %4390
      %4392 = vrot.lane.b32.xlu0 %v3403, 64
      %v4393 = vpop.permute.xlu0 %4392
      %4394 = vrot.lane.b32.xlu0 %v3408, 64
      %v4395 = vpop.permute.xlu0 %4394
      %4396 = vrot.lane.b32.xlu0 %v3413, 64
      %v4397 = vpop.permute.xlu0 %4396
      %4398 = vrot.lane.b32.xlu0 %v3418, 64
      %v4399 = vpop.permute.xlu0 %4398
      %4400 = vrot.lane.b32.xlu0 %v3423, 64
      %v4401 = vpop.permute.xlu0 %4400
      %4402 = vrot.lane.b32.xlu0 %v3428, 64
      %v4403 = vpop.permute.xlu0 %4402
      %4404 = vrot.lane.b32.xlu0 %v3433, 64
      %v4405 = vpop.permute.xlu0 %4404
      %4406 = vrot.lane.b32.xlu0 %v3438, 64
      %v4407 = vpop.permute.xlu0 %4406
      %4408 = vrot.lane.b32.xlu0 %v3443, 64
      %v4409 = vpop.permute.xlu0 %4408
      %4410 = vrot.lane.b32.xlu0 %v3448, 64
      %v4411 = vpop.permute.xlu0 %4410
      %4412 = vrot.lane.b32.xlu0 %v3453, 64
      %v4413 = vpop.permute.xlu0 %4412
      %4414 = vrot.lane.b32.xlu0 %v3458, 64
      %v4415 = vpop.permute.xlu0 %4414
      %4416 = vrot.lane.b32.xlu0 %v3463, 64
      %v4417 = vpop.permute.xlu0 %4416
      %4418 = vrot.lane.b32.xlu0 %v3468, 64
      %v4419 = vpop.permute.xlu0 %4418
      %4420 = vrot.lane.b32.xlu0 %v3473, 64
      %v4421 = vpop.permute.xlu0 %4420
      %4454 = vrot.lane.b32.xlu0 %v4232, 96
      %v4455 = vpop.permute.xlu0 %4454
      %4456 = vrot.lane.b32.xlu0 %v4237, 96
      %v4457 = vpop.permute.xlu0 %4456
      %4458 = vrot.lane.b32.xlu0 %v4242, 96
      %v4459 = vpop.permute.xlu0 %4458
      %4460 = vrot.lane.b32.xlu0 %v4247, 96
      %v4461 = vpop.permute.xlu0 %4460
      %4462 = vrot.lane.b32.xlu0 %v4252, 96
      %v4463 = vpop.permute.xlu0 %4462
      %4464 = vrot.lane.b32.xlu0 %v4257, 96
      %v4465 = vpop.permute.xlu0 %4464
      %4466 = vrot.lane.b32.xlu0 %v4262, 96
      %v4467 = vpop.permute.xlu0 %4466
      %4468 = vrot.lane.b32.xlu0 %v4267, 96
      %v4469 = vpop.permute.xlu0 %4468
      %4470 = vrot.lane.b32.xlu0 %v4272, 96
      %v4471 = vpop.permute.xlu0 %4470
      %4472 = vrot.lane.b32.xlu0 %v4277, 96
      %v4473 = vpop.permute.xlu0 %4472
      %4474 = vrot.lane.b32.xlu0 %v4282, 96
      %v4475 = vpop.permute.xlu0 %4474
      %4476 = vrot.lane.b32.xlu0 %v4287, 96
      %v4477 = vpop.permute.xlu0 %4476
      %4478 = vrot.lane.b32.xlu0 %v4292, 96
      %v4479 = vpop.permute.xlu0 %4478
      %4480 = vrot.lane.b32.xlu0 %v4297, 96
      %v4481 = vpop.permute.xlu0 %4480
      %4482 = vrot.lane.b32.xlu0 %v4302, 96
      %v4483 = vpop.permute.xlu0 %4482
      %4484 = vrot.lane.b32.xlu0 %v4307, 96
      %v4485 = vpop.permute.xlu0 %4484
      %v4502 = vsel %vm1085, %v1698, %v4327
      %v4503 = vsel %vm1085, %v1703, %v4329
      %v4504 = vsel %vm1085, %v1708, %v4331
      %v4505 = vsel %vm1085, %v1713, %v4333
      %v4506 = vsel %vm1085, %v1718, %v4335
      %v4507 = vsel %vm1085, %v1723, %v4337
      %v4508 = vsel %vm1085, %v1728, %v4339
      %v4509 = vsel %vm1085, %v1733, %v4341
      %v4510 = vsel %vm1085, %v1738, %v4343
      %v4511 = vsel %vm1085, %v1743, %v4345
      %v4512 = vsel %vm1085, %v1748, %v4347
      %v4513 = vsel %vm1085, %v1753, %v4349
      %v4514 = vsel %vm1085, %v1758, %v4351
      %v4515 = vsel %vm1085, %v1763, %v4353
      %v4516 = vsel %vm1085, %v1768, %v4355
      %v4517 = vsel %vm1085, %v1773, %v4357
      %vm4518 = vcmask 523264
      %v4519 = vsel %vm4518, %v4502, %v4391
      %v4520 = vsel %vm4518, %v4503, %v4393
      %v4521 = vsel %vm4518, %v4504, %v4395
      %v4522 = vsel %vm4518, %v4505, %v4397
      %v4523 = vsel %vm4518, %v4506, %v4399
      %v4524 = vsel %vm4518, %v4507, %v4401
      %v4525 = vsel %vm4518, %v4508, %v4403
      %v4526 = vsel %vm4518, %v4509, %v4405
      %v4527 = vsel %vm4518, %v4510, %v4407
      %v4528 = vsel %vm4518, %v4511, %v4409
      %v4529 = vsel %vm4518, %v4512, %v4411
      %v4530 = vsel %vm4518, %v4513, %v4413
      %v4531 = vsel %vm4518, %v4514, %v4415
      %v4532 = vsel %vm4518, %v4515, %v4417
      %v4533 = vsel %vm4518, %v4516, %v4419
      %v4534 = vsel %vm4518, %v4517, %v4421
      %vm4535 = vcmask 785408
      %v4536 = vsel %vm4535, %v4519, %v4455
      %v4537 = vsel %vm4535, %v4520, %v4457
      %v4538 = vsel %vm4535, %v4521, %v4459
      %v4539 = vsel %vm4535, %v4522, %v4461
      %v4540 = vsel %vm4535, %v4523, %v4463
      %v4541 = vsel %vm4535, %v4524, %v4465
      %v4542 = vsel %vm4535, %v4525, %v4467
      %v4543 = vsel %vm4535, %v4526, %v4469
      %v4544 = vsel %vm4535, %v4527, %v4471
      %v4545 = vsel %vm4535, %v4528, %v4473
      %v4546 = vsel %vm4535, %v4529, %v4475
      %v4547 = vsel %vm4535, %v4530, %v4477
      %v4548 = vsel %vm4535, %v4531, %v4479
      %v4549 = vsel %vm4535, %v4532, %v4481
      %v4550 = vsel %vm4535, %v4533, %v4483
      %v4551 = vsel %vm4535, %v4534, %v4485
      %v4552 = vpack.c.bf16 %v4537, %v4536
      %v4553 = vpack.c.bf16 %v4539, %v4538
      %v4554 = vpack.c.bf16 %v4541, %v4540
      %v4555 = vpack.c.bf16 %v4543, %v4542
      %v4556 = vpack.c.bf16 %v4545, %v4544
      %v4557 = vpack.c.bf16 %v4547, %v4546
      %v4558 = vpack.c.bf16 %v4549, %v4548
      %v4559 = vpack.c.bf16 %v4551, %v4550
      %v4560 = vld [vmem:[%s2] sm:$0xf]
      %v4561 = vld [vmem:[%s2 + $0x4] sm:$0xf]
      %v4562 = vld [vmem:[%s2 + $0x8] sm:$0xf]
      %v4563 = vld [vmem:[%s2 + $0xc] sm:$0xf]
      %v4564 = vld [vmem:[%s2 + $0x10] sm:$0xf]
      %v4565 = vld [vmem:[%s2 + $0x14] sm:$0xf]
      %v4566 = vld [vmem:[%s2 + $0x18] sm:$0xf]
      %v4567 = vld [vmem:[%s2 + $0x1c] sm:$0xf]
      %v4568 = vld [vmem:[%s2 + $0x20] sm:$0xf]
      %v4569 = vld [vmem:[%s2 + $0x24] sm:$0xf]
      %v4570 = vld [vmem:[%s2 + $0x28] sm:$0xf]
      %v4571 = vld [vmem:[%s2 + $0x2c] sm:$0xf]
      %v4572 = vld [vmem:[%s2 + $0x30] sm:$0xf]
      %v4573 = vld [vmem:[%s2 + $0x34] sm:$0xf]
      %v4574 = vld [vmem:[%s2 + $0x38] sm:$0xf]
      %v4575 = vld [vmem:[%s2 + $0x3c] sm:$0xf]
      %v4576 = vld [vmem:[%s3] sm:$0x1]
      %v4578 = vlaneseq
      %v4579 = vshrl.u32 %v4578, 7
      %v4580 = vsub.s32 0, %v4579
      %v4581 = vrot.slane %v4576, %v4580
      %v4599 = vunpack.c.l.b16 %v4560
      %v4600 = vunpack.c.l.b16 %v4561
      %v4601 = vunpack.c.l.b16 %v4562
      %v4602 = vunpack.c.l.b16 %v4563
      %v4603 = vunpack.c.l.b16 %v4564
      %v4604 = vunpack.c.l.b16 %v4565
      %v4605 = vunpack.c.l.b16 %v4566
      %v4606 = vunpack.c.l.b16 %v4567
      %v4607 = vunpack.c.l.b16 %v4568
      %v4608 = vunpack.c.l.b16 %v4569
      %v4609 = vunpack.c.l.b16 %v4570
      %v4610 = vunpack.c.l.b16 %v4571
      %v4611 = vunpack.c.l.b16 %v4572
      %v4612 = vunpack.c.l.b16 %v4573
      %v4613 = vunpack.c.l.b16 %v4574
      %v4614 = vunpack.c.l.b16 %v4575
      %v4615 = vpack.c.b16 %v4600, %v4599
      %v4616 = vpack.c.b16 %v4602, %v4601
      %v4617 = vpack.c.b16 %v4604, %v4603
      %v4618 = vpack.c.b16 %v4606, %v4605
      %v4619 = vpack.c.b16 %v4608, %v4607
      %v4620 = vpack.c.b16 %v4610, %v4609
      %v4621 = vpack.c.b16 %v4612, %v4611
      %v4622 = vpack.c.b16 %v4614, %v4613
      %4631 = vmatprep.subr.bf16.mxu0 0
      %4632 = vmatpush1.bf16.msra.mxu0 %v4615
      %4633 = vmatprep.subr.bf16.mxu0 0
      %4634 = vmatpush1.bf16.msra.mxu0 %v4616
      %4635 = vmatprep.subr.bf16.mxu0 0
      %4636 = vmatpush1.bf16.msra.mxu0 %v4617
      %4637 = vmatprep.subr.bf16.mxu0 0
      %4638 = vmatpush1.bf16.msra.mxu0 %v4618
      %4639 = vmatprep.subr.bf16.mxu0 0
      %4640 = vmatpush1.bf16.msra.mxu0 %v4619
      %4641 = vmatprep.subr.bf16.mxu0 0
      %4642 = vmatpush1.bf16.msra.mxu0 %v4620
      %4643 = vmatprep.subr.bf16.mxu0 0
      %4644 = vmatpush1.bf16.msra.mxu0 %v4621
      %4645 = vmatprep.subr.bf16.mxu0 0
      %4646 = vmatpush1.bf16.msra.mxu0 %v4622
      %4647 = vmatprep.subr.bf16.mxu0 0
      %4648 = vmatpush1.bf16.msra.mxu0 0
      %4649 = vmatprep.subr.bf16.mxu0 0
      %4650 = vmatpush1.bf16.msra.mxu0 0
      %4651 = vmatprep.subr.bf16.mxu0 0
      %4652 = vmatpush1.bf16.msra.mxu0 0
      %4653 = vmatprep.subr.bf16.mxu0 0
      %4654 = vmatpush1.bf16.msra.mxu0 0
      %4655 = vmatprep.subr.bf16.mxu0 0
      %4656 = vmatpush1.bf16.msra.mxu0 0
      %4657 = vmatprep.subr.bf16.mxu0 0
      %4658 = vmatpush1.bf16.msra.mxu0 0
      %4659 = vmatprep.subr.bf16.mxu0 0
      %4660 = vmatpush1.bf16.msra.mxu0 0
      %4661 = vmatprep.subr.bf16.mxu0 0
      %4662 = vmatpush1.bf16.msra.mxu0 0
      %4663 = vmatprep.mubr.bf16.mxu0 0
      %4664 = vmatmul.mubr.bf16.gmra.mrb[0].mxu0 %v4552
      %v4665 = vpop.f32.mrb[0].mxu0
      %v4666 = vadd.f32 %v4581, %v4665
      %v4667 = vpop.f32.mrb[0].mxu0
      %v4668 = vpop.f32.mrb[0].mxu0
      %v4669 = vadd.f32 %v4581, %v4668
      %v4670 = vpop.f32.mrb[0].mxu0
      %4671 = vmatprep.mubr.bf16.mxu0 0
      %4672 = vmatmul.mubr.bf16.gmra.mrb[0].mxu0 %v4553
      %v4673 = vpop.f32.mrb[0].mxu0
      %v4674 = vadd.f32 %v4581, %v4673
      %v4675 = vpop.f32.mrb[0].mxu0
      %v4676 = vpop.f32.mrb[0].mxu0
      %v4677 = vadd.f32 %v4581, %v4676
      %v4678 = vpop.f32.mrb[0].mxu0
      %4679 = vmatprep.mubr.bf16.mxu0 0
      %4680 = vmatmul.mubr.bf16.gmra.mrb[0].mxu0 %v4554
      %v4681 = vpop.f32.mrb[0].mxu0
      %v4682 = vadd.f32 %v4581, %v4681
      %v4683 = vpop.f32.mrb[0].mxu0
      %v4684 = vpop.f32.mrb[0].mxu0
      %v4685 = vadd.f32 %v4581, %v4684
      %v4686 = vpop.f32.mrb[0].mxu0
      %4687 = vmatprep.mubr.bf16.mxu0 0
      %4688 = vmatmul.mubr.bf16.gmra.mrb[0].mxu0 %v4555
      %v4689 = vpop.f32.mrb[0].mxu0
      %v4690 = vadd.f32 %v4581, %v4689
      %v4691 = vpop.f32.mrb[0].mxu0
      %v4692 = vpop.f32.mrb[0].mxu0
      %v4693 = vadd.f32 %v4581, %v4692
      %v4694 = vpop.f32.mrb[0].mxu0
      %4695 = vmatprep.mubr.bf16.mxu0 0
      %4696 = vmatmul.mubr.bf16.gmra.mrb[0].mxu0 %v4556
      %v4697 = vpop.f32.mrb[0].mxu0
      %v4698 = vadd.f32 %v4581, %v4697
      %v4699 = vpop.f32.mrb[0].mxu0
      %v4700 = vpop.f32.mrb[0].mxu0
      %v4701 = vadd.f32 %v4581, %v4700
      %v4702 = vpop.f32.mrb[0].mxu0
      %4703 = vmatprep.mubr.bf16.mxu0 0
      %4704 = vmatmul.mubr.bf16.gmra.mrb[0].mxu0 %v4557
      %v4705 = vpop.f32.mrb[0].mxu0
      %v4706 = vadd.f32 %v4581, %v4705
      %v4707 = vpop.f32.mrb[0].mxu0
      %v4708 = vpop.f32.mrb[0].mxu0
      %v4709 = vadd.f32 %v4581, %v4708
      %v4710 = vpop.f32.mrb[0].mxu0
      %4711 = vmatprep.mubr.bf16.mxu0 0
      %4712 = vmatmul.mubr.bf16.gmra.mrb[0].mxu0 %v4558
      %v4713 = vpop.f32.mrb[0].mxu0
      %v4714 = vadd.f32 %v4581, %v4713
      %v4715 = vpop.f32.mrb[0].mxu0
      %v4716 = vpop.f32.mrb[0].mxu0
      %v4717 = vadd.f32 %v4581, %v4716
      %v4718 = vpop.f32.mrb[0].mxu0
      %4719 = vmatprep.mubr.bf16.mxu0 0
      %4720 = vmatmul.mubr.bf16.gmra.mrb[0].mxu0 %v4559
      %v4721 = vpop.f32.mrb[0].mxu0
      %v4722 = vadd.f32 %v4581, %v4721
      %v4723 = vpop.f32.mrb[0].mxu0
      %v4724 = vpop.f32.mrb[0].mxu0
      %v4725 = vadd.f32 %v4581, %v4724
      %v4726 = vpop.f32.mrb[0].mxu0
      %4727 = vdwg.mxu0
      %4728 = vst [vmem:[%s284] sm:$0xff] %v4666
      %4729 = vst [vmem:[%s284 + $0x8] sm:$0xff] %v4669
      %4730 = vst [vmem:[%s284 + $0x10] sm:$0xff] %v4674
      %4731 = vst [vmem:[%s284 + $0x18] sm:$0xff] %v4677
      %4732 = vst [vmem:[%s284 + $0x20] sm:$0xff] %v4682
      %4733 = vst [vmem:[%s284 + $0x28] sm:$0xff] %v4685
      %4734 = vst [vmem:[%s284 + $0x30] sm:$0xff] %v4690
      %4735 = vst [vmem:[%s284 + $0x38] sm:$0xff] %v4693
      %4736 = vst [vmem:[%s284 + $0x40] sm:$0xff] %v4698
      %4737 = vst [vmem:[%s284 + $0x48] sm:$0xff] %v4701
      %4738 = vst [vmem:[%s284 + $0x50] sm:$0xff] %v4706
      %4739 = vst [vmem:[%s284 + $0x58] sm:$0xff] %v4709
      %4740 = vst [vmem:[%s284 + $0x60] sm:$0xff] %v4714
      %4741 = vst [vmem:[%s284 + $0x68] sm:$0xff] %v4717
      %4742 = vst [vmem:[%s284 + $0x70] sm:$0xff] %v4722
      %4743 = vst [vmem:[%s284 + $0x78] sm:$0xff] %v4725
      %p4744 = scmp.eq.s32.totalorder %s23, 0
      // Predicated region
      $region37: #{attention_forward.2} parent=35 // pred_check
        %p4745 = pneg %p4744
      $region38: #{attention_forward.2} parent=35 // pred_check_branch
        %4747 = sbr.rel (%p4745) target = $region40
      $region39: #{attention_forward.2} parent=35 // pred_region
        %4748 = vst [vmem:[%s288] sm:$0x1] 0.0
        %4749 = vst [vmem:[%s291] sm:$0x1] 0.0
      $region40: #{attention_forward.2} parent=35 // pred_fallthru
        _
      %v4750 = vld [vmem:[%s288] sm:$0x1]
      %v4751 = vadd.f32 %v4666, %v4669
      %v4752 = vadd.f32 %v4751, %v4674
      %v4753 = vadd.f32 %v4752, %v4677
      %v4754 = vadd.f32 %v4753, %v4682
      %v4755 = vadd.f32 %v4754, %v4685
      %v4756 = vadd.f32 %v4755, %v4690
      %v4757 = vadd.f32 %v4756, %v4693
      %v4758 = vadd.f32 %v4757, %v4698
      %v4759 = vadd.f32 %v4758, %v4701
      %v4760 = vadd.f32 %v4759, %v4706
      %v4761 = vadd.f32 %v4760, %v4709
      %v4762 = vadd.f32 %v4761, %v4714
      %v4763 = vadd.f32 %v4762, %v4717
      %v4764 = vadd.f32 %v4763, %v4722
      %v4765 = vadd.f32 %v4764, %v4725
      %v4766 = vrot.slane %v4765, 4
      %v4767 = vadd.f32 %v4765, %v4766
      %v4768 = vrot.slane %v4767, 2
      %v4769 = vadd.f32 %v4767, %v4768
      %v4770 = vrot.slane %v4769, 1
      %v4771 = vadd.f32 %v4769, %v4770
      %v4772 = vadd.f32 %v4750, %v4771
      %4773 = vst [vmem:[%s288] sm:$0x1] %v4772
      %v4774 = vld [vmem:[%s291] sm:$0x1]
      %v4775 = vmul.f32 %v4666, %v4666
      %v4776 = vmul.f32 %v4669, %v4669
      %v4777 = vmul.f32 %v4674, %v4674
      %v4778 = vmul.f32 %v4677, %v4677
      %v4779 = vmul.f32 %v4682, %v4682
      %v4780 = vmul.f32 %v4685, %v4685
      %v4781 = vmul.f32 %v4690, %v4690
      %v4782 = vmul.f32 %v4693, %v4693
      %v4783 = vmul.f32 %v4698, %v4698
      %v4784 = vmul.f32 %v4701, %v4701
      %v4785 = vmul.f32 %v4706, %v4706
      %v4786 = vmul.f32 %v4709, %v4709
      %v4787 = vmul.f32 %v4714, %v4714
      %v4788 = vmul.f32 %v4717, %v4717
      %v4789 = vmul.f32 %v4722, %v4722
      %v4790 = vmul.f32 %v4725, %v4725
      %v4791 = vadd.f32 %v4775, %v4776
      %v4792 = vadd.f32 %v4791, %v4777
      %v4793 = vadd.f32 %v4792, %v4778
      %v4794 = vadd.f32 %v4793, %v4779
      %v4795 = vadd.f32 %v4794, %v4780
      %v4796 = vadd.f32 %v4795, %v4781
      %v4797 = vadd.f32 %v4796, %v4782
      %v4798 = vadd.f32 %v4797, %v4783
      %v4799 = vadd.f32 %v4798, %v4784
      %v4800 = vadd.f32 %v4799, %v4785
      %v4801 = vadd.f32 %v4800, %v4786
      %v4802 = vadd.f32 %v4801, %v4787
      %v4803 = vadd.f32 %v4802, %v4788
      %v4804 = vadd.f32 %v4803, %v4789
      %v4805 = vadd.f32 %v4804, %v4790
      %v4806 = vrot.slane %v4805, 4
      %v4807 = vadd.f32 %v4805, %v4806
      %v4808 = vrot.slane %v4807, 2
      %v4809 = vadd.f32 %v4807, %v4808
      %v4810 = vrot.slane %v4809, 1
      %v4811 = vadd.f32 %v4809, %v4810
      %v4812 = vadd.f32 %v4774, %v4811
      %4813 = vst [vmem:[%s291] sm:$0x1] %v4812
      %s4814 = smul.u32 16, %s23
      %p4815 = scmp.lt.s32.totalorder %s22, 1
      %s4816 = scalar_select %p4815, %s22, 1
      %p4817 = scmp.lt.s32.totalorder %s4814, 31
      %s4818 = scalar_select %p4817, %s4814, 31
      %s4819 = smul.addr %s4816, 32
      %s4820 = sadd.s32 %s4818, %s4819
      %s4821 = smul.addr %s4820, 8
      %s4822 = scalar_lea.vmem %s4, %s4821
      %p4823 = scmp.lt.s32.totalorder %s22, 1
      %s4824 = scalar_select %p4823, %s22, 1
      %s4825 = scalar_lea.vmem %s5, %s4824
      %p4826 = scmp.lt.s32.totalorder %s22, 1
      %s4827 = scalar_select %p4826, %s22, 1
      %s4828 = scalar_lea.vmem %s6, %s4827
      // Predicated region
      $region41: #{attention_forward.2} parent=35 // pred_check
        %p4829 = pneg %p139
      $region42: #{attention_forward.2} parent=35 // pred_check_branch
        %4831 = sbr.rel (%p4829) target = $region44
      $region43: #{attention_forward.2} parent=35 // pred_region
        %s4832 = smul.u32 16, %s23
      $region44: #{attention_forward.2} parent=35 // pred_fallthru
        _
      // Predicated region
      $region45: #{attention_forward.2} parent=35 // pred_check
        %p4833 = pneg %p165
      $region46: #{attention_forward.2} parent=35 // pred_check_branch
        %4835 = sbr.rel (%p4833) target = $region48
      $region47: #{attention_forward.2} parent=35 // pred_region
        _
      $region48: #{attention_forward.2} parent=35 // pred_fallthru
        _
      // Predicated region
      $region49: #{attention_forward.2} parent=35 // pred_check
        %p4836 = pneg %p191
      $region50: #{attention_forward.2} parent=35 // pred_check_branch
        %4838 = sbr.rel (%p4836) target = $region52
      $region51: #{attention_forward.2} parent=35 // pred_region
        _
      $region52: #{attention_forward.2} parent=35 // pred_fallthru
        _
    $region36: #{attention_forward.2} parent=5 // pred_fallthru
      _
    %p4839 = scmp.le.s32.totalorder 2, %s13
    // Predicated region
    $region53: #{attention_forward.2} parent=5 // pred_check
      %p4840 = pneg %p4839
    $region54: #{attention_forward.2} parent=5 // pred_check_branch
      %4842 = sbr.rel (%p4840) target = $region56
    $region55: #{attention_forward.2} parent=5 // pred_region
      %s4843 = ssub.s32 %s13, 2
      // Predicated region
      $region57: #{attention_forward.2} parent=55 // pred_check
        %p4844 = pneg %p145
      $region58: #{attention_forward.2} parent=55 // pred_check_branch
        %4846 = sbr.rel (%p4844) target = $region60
      $region59: #{attention_forward.2} parent=55 // pred_region
        %s4847 = smul.u32 16, %s25
        %p4848 = scmp.lt.s32.totalorder %s24, 1
        %s4849 = scalar_select %p4848, %s24, 1
        %p4850 = scmp.lt.s32.totalorder %s4847, 31
        %s4851 = scalar_select %p4850, %s4847, 31
        %s4852 = smul.addr %s4849, 32
        %s4853 = sadd.s32 %s4851, %s4852
        %s4854 = smul.addr %s4853, 8
        %s4855 = scalar_lea.vmem %s4, %s4854
      $region60: #{attention_forward.2} parent=55 // pred_fallthru
        _
      // Predicated region
      $region61: #{attention_forward.2} parent=55 // pred_check
        %p4856 = pneg %p171
      $region62: #{attention_forward.2} parent=55 // pred_check_branch
        %4858 = sbr.rel (%p4856) target = $region64
      $region63: #{attention_forward.2} parent=55 // pred_region
        %p4859 = scmp.lt.s32.totalorder %s24, 1
        %s4860 = scalar_select %p4859, %s24, 1
        %s4861 = scalar_lea.vmem %s5, %s4860
      $region64: #{attention_forward.2} parent=55 // pred_fallthru
        _
      // Predicated region
      $region65: #{attention_forward.2} parent=55 // pred_check
        %p4862 = pneg %p197
      $region66: #{attention_forward.2} parent=55 // pred_check_branch
        %4864 = sbr.rel (%p4862) target = $region68
      $region67: #{attention_forward.2} parent=55 // pred_region
        %p4865 = scmp.lt.s32.totalorder %s24, 1
        %s4866 = scalar_select %p4865, %s24, 1
        %s4867 = scalar_lea.vmem %s6, %s4866
      $region68: #{attention_forward.2} parent=55 // pred_fallthru
        _
    $region56: #{attention_forward.2} parent=5 // pred_fallthru
      _
  $region6: #{attention_forward.2} parent=0 // loop_footer
    %s17 = sadd.s32 1, %s13
  $region7: #{attention_forward.2} parent=0 // loop_footer_branch
    %12 = sbr.rel target = $region3
  $region8: #{attention_forward.2} parent=0 // loop_exit
    _

</llo_original>
